<compile_context>
chip_gen: v7x
topology: tpu7x:2x2x1
jax: 0.10.0
libtpu: 0.0.40
codegen_flags: <defaults>
</compile_context>

<pallas_src>
import functools

import jax
import jax.numpy as jnp
from jax import lax
from jax.experimental import pallas as pl
from jax.experimental.pallas import tpu as pltpu


def _encoder_patch_kernel(x_ref, w_ref, shift_ref, o_ref, acc_ref, *,
                          tile_n, co_chunk, n_points, need_mask):
    # x_ref:     (C_in, TN)     current N-tile of one batch element (NCW layout, lane-dense)
    # w_ref:     (C_out, C_in)  fused weight: bn_scale * (W_fuse @ W_head)   (grid-resident)
    # shift_ref: (C_out, 1)     bn_shift = beta - mean * scale               (grid-resident)
    # o_ref:     (C_out, 1)     per-batch output column
    # acc_ref:   (C_out, 128)   running per-channel max (VMEM scratch, f32)
    n = pl.program_id(1)
    c_out = acc_ref.shape[0]
    num_strips = tile_n // 128
    base = n * tile_n                                  # first point index of this tile

    @pl.when(n == 0)
    def _init():
        acc_ref[...] = jnp.full(acc_ref.shape, -jnp.inf, dtype=acc_ref.dtype)

    # Row-chunk x lane-strip decomposition: the running max stays in vregs across the
    # (unrolled) strip loop; acc_ref is touched once per row-chunk per tile.
    for rc in range(c_out // co_chunk):                # static, small (C_out / co_chunk iters)
        row0 = rc * co_chunk
        w_chunk = w_ref[row0:row0 + co_chunk, :]       # (co_chunk, C_in)

        def strip_body(s, running):
            start = pl.multiple_of(s * 128, 128)
            x_strip = x_ref[:, pl.ds(start, 128)]      # (C_in, 128)
            z = jnp.dot(w_chunk, x_strip,
                        preferred_element_type=jnp.float32)     # (co_chunk, 128)
            if need_mask:
                lane = lax.broadcasted_iota(jnp.int32, (1, 128), 1)
                valid = (base + start + lane) < n_points
                z = jnp.where(valid, z, -jnp.inf)      # tail points never win the max
            return jnp.maximum(running, z)

        running = lax.fori_loop(
            0, num_strips, strip_body,
            jnp.full((co_chunk, 128), -jnp.inf, dtype=jnp.float32),
            unroll=True)

        acc_ref[row0:row0 + co_chunk, :] = jnp.maximum(
            acc_ref[row0:row0 + co_chunk, :], running)

    # Finalize once per batch element: one cross-lane reduce, then the deferred BN shift
    # + LeakyReLU(0.2) (both monotone increasing => they commute with the max).
    @pl.when(n == pl.num_programs(1) - 1)
    def _finalize():
        col = jnp.max(acc_ref[...], axis=-1, keepdims=True)     # (C_out, 1)
        y = col + shift_ref[...]
        y = jnp.where(y > 0, y, 0.2 * y)
        o_ref[...] = y.astype(o_ref.dtype)


def encoder_patch(x_ncw, w_head, w_fuse, bn_gamma, bn_beta, bn_mean, bn_var,
                  eps=1e-5, *, tile_n=1024, co_chunk=256, compute_dtype=None):
    """x_ncw: (B, C_in, N) in PyTorch NCW layout.  Returns (B, 1, 1024) float32."""
    B, C_in, N = x_ncw.shape
    C_mid, C_out = w_head.shape[0], w_fuse.shape[0]
    assert w_head.shape == (C_mid, C_in)       # torch Conv1d weight (out, in, 1) squeezed
    assert w_fuse.shape == (C_out, C_mid)
    assert C_out % co_chunk == 0 and co_chunk % 8 == 0

    if compute_dtype is None:
        compute_dtype = x_ncw.dtype            # no extra HBM pass just to cast x

    # --- offline fusion (exact: no nonlinearity between the two 1x1 convs / BN scale) ---
    scale = (bn_gamma / jnp.sqrt(bn_var + eps)).astype(jnp.float32)
    shift = (bn_beta - bn_mean * scale).astype(jnp.float32)
    w_all = (w_fuse.astype(jnp.float32) @ w_head.astype(jnp.float32)) * scale[:, None]
    w_all = w_all.astype(compute_dtype)                              # (C_out, C_in)
    shift_col = shift.reshape(C_out, 1)                              # (C_out, 1) f32

    x = x_ncw.astype(compute_dtype)            # no-op when compute_dtype == x.dtype

    # --- tile the points axis; NO padding copy, tail handled by in-kernel masking --------
    tn = min(int(tile_n), 128 * pl.cdiv(N, 128))
    tn = max(128, (tn // 128) * 128)
    n_tiles = pl.cdiv(N, tn)
    need_mask = (n_tiles * tn != N)

    kernel = functools.partial(_encoder_patch_kernel, tile_n=tn, co_chunk=co_chunk,
                               n_points=N, need_mask=need_mask)
    out = pl.pallas_call(
        kernel,
        out_shape=jax.ShapeDtypeStruct((B, C_out, 1), jnp.float32),
        grid_spec=pltpu.PrefetchScalarGridSpec(
            num_scalar_prefetch=0,
            grid=(B, n_tiles),
            in_specs=[
                pl.BlockSpec((None, C_in, tn), lambda b, n: (b, 0, n)),   # x tile (lane-dense)
                pl.BlockSpec((C_out, C_in), lambda b, n: (0, 0)),         # fused weight (resident)
                pl.BlockSpec((C_out, 1), lambda b, n: (0, 0)),            # bn shift (resident)
            ],
            out_specs=pl.BlockSpec((None, C_out, 1), lambda b, n: (b, 0, 0)),
            scratch_shapes=[pltpu.VMEM((C_out, 128), jnp.float32)],
        ),
        compiler_params=pltpu.CompilerParams(
            dimension_semantics=("parallel", "arbitrary"),
        ),
    )(x, w_all, shift_col)

    # (B, C_out, 1) -> (B, 1, C_out): trailing dim is 1 so this is a free (bitcast) reshape.
    return out.reshape(B, 1, C_out)


def _reference(x_ncw, w_head, w_fuse, bn_gamma, bn_beta, bn_mean, bn_var, eps=1e-5):
    # Plain-JAX reference mirroring the PyTorch forward (eval-mode BN).
    feat = jnp.einsum('mc,bcn->bmn', w_head, x_ncw)                  # (B, 256, N)
    pa = jnp.einsum('om,bmn->bon', w_fuse, feat)                     # (B, 1024, N)
    scale = bn_gamma / jnp.sqrt(bn_var + eps)
    pa = pa * scale[None, :, None] + (bn_beta - bn_mean * scale)[None, :, None]
    pa = jnp.where(pa > 0, pa, 0.2 * pa)
    return jnp.max(pa, axis=2).reshape(x_ncw.shape[0], 1, -1)


if __name__ == "__main__":
    key = jax.random.PRNGKey(0)
    B, C_in, N = 2, 16, 320          # N deliberately NOT a multiple of 128 -> exercises masking
    C_mid, C_out = 256, 1024

    k1, k2, k3, k4, k5, k6, k7 = jax.random.split(key, 7)
    x = jax.random.normal(k1, (B, C_in, N), dtype=jnp.float32)           # NCW like PyTorch
    w_head = jax.random.normal(k2, (C_mid, C_in), dtype=jnp.float32) * 0.1
    w_fuse = jax.random.normal(k3, (C_out, C_mid), dtype=jnp.float32) * 0.05
    bn_gamma = 1.0 + 0.1 * jax.random.normal(k4, (C_out,), dtype=jnp.float32)
    bn_beta = 0.1 * jax.random.normal(k5, (C_out,), dtype=jnp.float32)
    bn_mean = 0.1 * jax.random.normal(k6, (C_out,), dtype=jnp.float32)
    bn_var = jnp.abs(jax.random.normal(k7, (C_out,), dtype=jnp.float32)) + 0.5

    ref = _reference(x, w_head, w_fuse, bn_gamma, bn_beta, bn_mean, bn_var)

    # f32 path, small tile + small row-chunk (v5e-style sizes): exercises the multi-tile
    # running max, the per-tile tail masking, and the chunked strip loop.
    out_f32 = encoder_patch(x, w_head, w_fuse, bn_gamma, bn_beta, bn_mean, bn_var,
                            tile_n=128, co_chunk=128)
    out_f32 = jax.block_until_ready(out_f32)
    assert out_f32.shape == (B, 1, C_out), out_f32.shape
    assert jnp.allclose(out_f32, ref, atol=1e-3, rtol=1e-3), \
        float(jnp.max(jnp.abs(out_f32 - ref)))

    # bf16 production-style path: bf16 activations from the producer, weight follows dtype,
    # default tile_n / co_chunk.  (bf16 weights are not bit-parity with the f32 reference.)
    out_bf16 = encoder_patch(x.astype(jnp.bfloat16), w_head, w_fuse,
                             bn_gamma, bn_beta, bn_mean, bn_var)
    out_bf16 = jax.block_until_ready(out_bf16)
    assert out_bf16.shape == (B, 1, C_out), out_bf16.shape
    assert jnp.allclose(out_bf16, ref, atol=3e-2, rtol=3e-2), \
        float(jnp.max(jnp.abs(out_bf16 - ref)))

    print("KERNEL_OK")
</pallas_src>

<mosaic_0001>
module attributes {stable_mosaic.version = 11 : i64} {
  func.func @_encoder_patch_kernel(%arg0: i32, %arg1: i32, %arg2: memref<1x16x128xf32, #tpu.memory_space<vmem>>, %arg3: memref<1024x16xf32, #tpu.memory_space<vmem>>, %arg4: memref<1024x1xf32, #tpu.memory_space<vmem>>, %arg5: memref<1x1024x1xf32, #tpu.memory_space<vmem>>, %arg6: memref<1024x128xf32, #tpu.memory_space<vmem>>) attributes {dimension_semantics = [#tpu.dimension_semantics<parallel>, #tpu.dimension_semantics<arbitrary>], iteration_bounds = array<i64: 2, 3>, scalar_prefetch = 0 : i64, scratch_operands = 1 : i64, tpu.core_type = #tpu.core_type<tc>, window_params = [{transform_indices = @transform_0, window_bounds = array<i64: 1, 16, 128>}, {pipeline_mode = #tpu.pipeline_mode<synchronous>, transform_indices = @transform_1, window_bounds = array<i64: 1024, 16>}, {pipeline_mode = #tpu.pipeline_mode<synchronous>, transform_indices = @transform_2, window_bounds = array<i64: 1024, 1>}, {transform_indices = @transform_3, window_bounds = array<i64: 1, 1024, 1>}]} {
    %c128_i32 = arith.constant 128 : i32
    %0 = arith.muli %arg1, %c128_i32 : i32
    %c0_i32 = arith.constant 0 : i32
    %1 = arith.cmpi eq, %arg1, %c0_i32 : i32
    %2 = arith.extui %1 : i1 to i32
    %c0_i32_0 = arith.constant 0 : i32
    %3 = arith.cmpi ne, %2, %c0_i32_0 : i32
    scf.if %3 {
      %cst_111 = arith.constant 0xFF800000 : f32
      %183 = vector.broadcast %cst_111 : f32 to vector<1024x128xf32>
      %c0_112 = arith.constant 0 : index
      %c0_113 = arith.constant 0 : index
      %184 = vector.load %arg6[%c0_112, %c0_113] : memref<1024x128xf32, #tpu.memory_space<vmem>>, vector<1024x128xf32>
      tpu.vector_store %arg6[%c0_112, %c0_113], %183 {strides = array<i32>} : memref<1024x128xf32, #tpu.memory_space<vmem>>, vector<1024x128xf32>,
    } else {
    }
    %c0 = arith.constant 0 : index
    %c0_1 = arith.constant 0 : index
    %4 = vector.load %arg3[%c0, %c0_1] : memref<1024x16xf32, #tpu.memory_space<vmem>>, vector<128x16xf32>
    %cst = arith.constant 0xFF800000 : f32
    %5 = vector.broadcast %cst : f32 to vector<128x128xf32>
    %c0_i32_2 = arith.constant 0 : i32
    %c128_i32_3 = arith.constant 128 : i32
    %6 = arith.muli %c0_i32_2, %c128_i32_3 : i32
    %7 = tpu.assume_multiple %6, 128 : i32
    %c0_4 = arith.constant 0 : index
    %c0_5 = arith.constant 0 : index
    %8 = arith.index_cast %7 : i32 to index
    %9 = vector.load %arg2[%c0_4, %c0_5, %8] : memref<1x16x128xf32, #tpu.memory_space<vmem>>, vector<1x16x128xf32>
    %10 = vector.shape_cast %9 : vector<1x16x128xf32> to vector<16x128xf32>
    %cst_6 = arith.constant dense<0.000000e+00> : vector<128x128xf32>
    %11 = tpu.matmul %4, %10, %cst_6 {dimension_numbers = #tpu.dot_dimension_numbers<[1], [0], [0], [1], [0, 0, 1, 1], [], []>} : vector<128x16xf32>, vector<16x128xf32>, vector<128x128xf32> -> vector<128x128xf32>
    %12 = tpu.iota {dimensions = array<i32: 1>} : vector<1x128xi32>
    %13 = arith.addi %0, %7 : i32
    %14 = vector.broadcast %13 : i32 to vector<1x128xi32>
    %15 = arith.addi %14, %12 : vector<1x128xi32>
    %c320_i32 = arith.constant 320 : i32
    %16 = vector.broadcast %c320_i32 : i32 to vector<1x128xi32>
    %17 = arith.cmpi slt, %15, %16 : vector<1x128xi32>
    %cst_7 = arith.constant 0xFF800000 : f32
    %18 = vector.shape_cast %17 : vector<1x128xi1> to vector<1x128xi1>
    %19 = vector.broadcast %18 : vector<1x128xi1> to vector<128x128xi1>
    %20 = vector.broadcast %cst_7 : f32 to vector<128x128xf32>
    %21 = arith.select %19, %11, %20 : vector<128x128xi1>, vector<128x128xf32>
    %22 = arith.maximumf %5, %21 : vector<128x128xf32>
    %c1_i32 = arith.constant 1 : i32
    %c0_8 = arith.constant 0 : index
    %c0_9 = arith.constant 0 : index
    %23 = vector.load %arg6[%c0_8, %c0_9] : memref<1024x128xf32, #tpu.memory_space<vmem>>, vector<128x128xf32>
    %24 = arith.maximumf %23, %22 : vector<128x128xf32>
    %c0_10 = arith.constant 0 : index
    %c0_11 = arith.constant 0 : index
    %25 = vector.load %arg6[%c0_10, %c0_11] : memref<1024x128xf32, #tpu.memory_space<vmem>>, vector<128x128xf32>
    tpu.vector_store %arg6[%c0_10, %c0_11], %24 {strides = array<i32>} : memref<1024x128xf32, #tpu.memory_space<vmem>>, vector<128x128xf32>,
    %c128 = arith.constant 128 : index
    %c0_12 = arith.constant 0 : index
    %26 = vector.load %arg3[%c128, %c0_12] : memref<1024x16xf32, #tpu.memory_space<vmem>>, vector<128x16xf32>
    %cst_13 = arith.constant 0xFF800000 : f32
    %27 = vector.broadcast %cst_13 : f32 to vector<128x128xf32>
    %c0_i32_14 = arith.constant 0 : i32
    %c128_i32_15 = arith.constant 128 : i32
    %28 = arith.muli %c0_i32_14, %c128_i32_15 : i32
    %29 = tpu.assume_multiple %28, 128 : i32
    %c0_16 = arith.constant 0 : index
    %c0_17 = arith.constant 0 : index
    %30 = arith.index_cast %29 : i32 to index
    %31 = vector.load %arg2[%c0_16, %c0_17, %30] : memref<1x16x128xf32, #tpu.memory_space<vmem>>, vector<1x16x128xf32>
    %32 = vector.shape_cast %31 : vector<1x16x128xf32> to vector<16x128xf32>
    %cst_18 = arith.constant dense<0.000000e+00> : vector<128x128xf32>
    %33 = tpu.matmul %26, %32, %cst_18 {dimension_numbers = #tpu.dot_dimension_numbers<[1], [0], [0], [1], [0, 0, 1, 1], [], []>} : vector<128x16xf32>, vector<16x128xf32>, vector<128x128xf32> -> vector<128x128xf32>
    %34 = tpu.iota {dimensions = array<i32: 1>} : vector<1x128xi32>
    %35 = arith.addi %0, %29 : i32
    %36 = vector.broadcast %35 : i32 to vector<1x128xi32>
    %37 = arith.addi %36, %34 : vector<1x128xi32>
    %c320_i32_19 = arith.constant 320 : i32
    %38 = vector.broadcast %c320_i32_19 : i32 to vector<1x128xi32>
    %39 = arith.cmpi slt, %37, %38 : vector<1x128xi32>
    %cst_20 = arith.constant 0xFF800000 : f32
    %40 = vector.shape_cast %39 : vector<1x128xi1> to vector<1x128xi1>
    %41 = vector.broadcast %40 : vector<1x128xi1> to vector<128x128xi1>
    %42 = vector.broadcast %cst_20 : f32 to vector<128x128xf32>
    %43 = arith.select %41, %33, %42 : vector<128x128xi1>, vector<128x128xf32>
    %44 = arith.maximumf %27, %43 : vector<128x128xf32>
    %c1_i32_21 = arith.constant 1 : i32
    %c128_22 = arith.constant 128 : index
    %c0_23 = arith.constant 0 : index
    %45 = vector.load %arg6[%c128_22, %c0_23] : memref<1024x128xf32, #tpu.memory_space<vmem>>, vector<128x128xf32>
    %46 = arith.maximumf %45, %44 : vector<128x128xf32>
    %c128_24 = arith.constant 128 : index
    %c0_25 = arith.constant 0 : index
    %47 = vector.load %arg6[%c128_24, %c0_25] : memref<1024x128xf32, #tpu.memory_space<vmem>>, vector<128x128xf32>
    tpu.vector_store %arg6[%c128_24, %c0_25], %46 {strides = array<i32>} : memref<1024x128xf32, #tpu.memory_space<vmem>>, vector<128x128xf32>,
    %c256 = arith.constant 256 : index
    %c0_26 = arith.constant 0 : index
    %48 = vector.load %arg3[%c256, %c0_26] : memref<1024x16xf32, #tpu.memory_space<vmem>>, vector<128x16xf32>
    %cst_27 = arith.constant 0xFF800000 : f32
    %49 = vector.broadcast %cst_27 : f32 to vector<128x128xf32>
    %c0_i32_28 = arith.constant 0 : i32
    %c128_i32_29 = arith.constant 128 : i32
    %50 = arith.muli %c0_i32_28, %c128_i32_29 : i32
    %51 = tpu.assume_multiple %50, 128 : i32
    %c0_30 = arith.constant 0 : index
    %c0_31 = arith.constant 0 : index
    %52 = arith.index_cast %51 : i32 to index
    %53 = vector.load %arg2[%c0_30, %c0_31, %52] : memref<1x16x128xf32, #tpu.memory_space<vmem>>, vector<1x16x128xf32>
    %54 = vector.shape_cast %53 : vector<1x16x128xf32> to vector<16x128xf32>
    %cst_32 = arith.constant dense<0.000000e+00> : vector<128x128xf32>
    %55 = tpu.matmul %48, %54, %cst_32 {dimension_numbers = #tpu.dot_dimension_numbers<[1], [0], [0], [1], [0, 0, 1, 1], [], []>} : vector<128x16xf32>, vector<16x128xf32>, vector<128x128xf32> -> vector<128x128xf32>
    %56 = tpu.iota {dimensions = array<i32: 1>} : vector<1x128xi32>
    %57 = arith.addi %0, %51 : i32
    %58 = vector.broadcast %57 : i32 to vector<1x128xi32>
    %59 = arith.addi %58, %56 : vector<1x128xi32>
    %c320_i32_33 = arith.constant 320 : i32
    %60 = vector.broadcast %c320_i32_33 : i32 to vector<1x128xi32>
    %61 = arith.cmpi slt, %59, %60 : vector<1x128xi32>
    %cst_34 = arith.constant 0xFF800000 : f32
    %62 = vector.shape_cast %61 : vector<1x128xi1> to vector<1x128xi1>
    %63 = vector.broadcast %62 : vector<1x128xi1> to vector<128x128xi1>
    %64 = vector.broadcast %cst_34 : f32 to vector<128x128xf32>
    %65 = arith.select %63, %55, %64 : vector<128x128xi1>, vector<128x128xf32>
    %66 = arith.maximumf %49, %65 : vector<128x128xf32>
    %c1_i32_35 = arith.constant 1 : i32
    %c256_36 = arith.constant 256 : index
    %c0_37 = arith.constant 0 : index
    %67 = vector.load %arg6[%c256_36, %c0_37] : memref<1024x128xf32, #tpu.memory_space<vmem>>, vector<128x128xf32>
    %68 = arith.maximumf %67, %66 : vector<128x128xf32>
    %c256_38 = arith.constant 256 : index
    %c0_39 = arith.constant 0 : index
    %69 = vector.load %arg6[%c256_38, %c0_39] : memref<1024x128xf32, #tpu.memory_space<vmem>>, vector<128x128xf32>
    tpu.vector_store %arg6[%c256_38, %c0_39], %68 {strides = array<i32>} : memref<1024x128xf32, #tpu.memory_space<vmem>>, vector<128x128xf32>,
    %c384 = arith.constant 384 : index
    %c0_40 = arith.constant 0 : index
    %70 = vector.load %arg3[%c384, %c0_40] : memref<1024x16xf32, #tpu.memory_space<vmem>>, vector<128x16xf32>
    %cst_41 = arith.constant 0xFF800000 : f32
    %71 = vector.broadcast %cst_41 : f32 to vector<128x128xf32>
    %c0_i32_42 = arith.constant 0 : i32
    %c128_i32_43 = arith.constant 128 : i32
    %72 = arith.muli %c0_i32_42, %c128_i32_43 : i32
    %73 = tpu.assume_multiple %72, 128 : i32
    %c0_44 = arith.constant 0 : index
    %c0_45 = arith.constant 0 : index
    %74 = arith.index_cast %73 : i32 to index
    %75 = vector.load %arg2[%c0_44, %c0_45, %74] : memref<1x16x128xf32, #tpu.memory_space<vmem>>, vector<1x16x128xf32>
    %76 = vector.shape_cast %75 : vector<1x16x128xf32> to vector<16x128xf32>
    %cst_46 = arith.constant dense<0.000000e+00> : vector<128x128xf32>
    %77 = tpu.matmul %70, %76, %cst_46 {dimension_numbers = #tpu.dot_dimension_numbers<[1], [0], [0], [1], [0, 0, 1, 1], [], []>} : vector<128x16xf32>, vector<16x128xf32>, vector<128x128xf32> -> vector<128x128xf32>
    %78 = tpu.iota {dimensions = array<i32: 1>} : vector<1x128xi32>
    %79 = arith.addi %0, %73 : i32
    %80 = vector.broadcast %79 : i32 to vector<1x128xi32>
    %81 = arith.addi %80, %78 : vector<1x128xi32>
    %c320_i32_47 = arith.constant 320 : i32
    %82 = vector.broadcast %c320_i32_47 : i32 to vector<1x128xi32>
    %83 = arith.cmpi slt, %81, %82 : vector<1x128xi32>
    %cst_48 = arith.constant 0xFF800000 : f32
    %84 = vector.shape_cast %83 : vector<1x128xi1> to vector<1x128xi1>
    %85 = vector.broadcast %84 : vector<1x128xi1> to vector<128x128xi1>
    %86 = vector.broadcast %cst_48 : f32 to vector<128x128xf32>
    %87 = arith.select %85, %77, %86 : vector<128x128xi1>, vector<128x128xf32>
    %88 = arith.maximumf %71, %87 : vector<128x128xf32>
    %c1_i32_49 = arith.constant 1 : i32
    %c384_50 = arith.constant 384 : index
    %c0_51 = arith.constant 0 : index
    %89 = vector.load %arg6[%c384_50, %c0_51] : memref<1024x128xf32, #tpu.memory_space<vmem>>, vector<128x128xf32>
    %90 = arith.maximumf %89, %88 : vector<128x128xf32>
    %c384_52 = arith.constant 384 : index
    %c0_53 = arith.constant 0 : index
    %91 = vector.load %arg6[%c384_52, %c0_53] : memref<1024x128xf32, #tpu.memory_space<vmem>>, vector<128x128xf32>
    tpu.vector_store %arg6[%c384_52, %c0_53], %90 {strides = array<i32>} : memref<1024x128xf32, #tpu.memory_space<vmem>>, vector<128x128xf32>,
    %c512 = arith.constant 512 : index
    %c0_54 = arith.constant 0 : index
    %92 = vector.load %arg3[%c512, %c0_54] : memref<1024x16xf32, #tpu.memory_space<vmem>>, vector<128x16xf32>
    %cst_55 = arith.constant 0xFF800000 : f32
    %93 = vector.broadcast %cst_55 : f32 to vector<128x128xf32>
    %c0_i32_56 = arith.constant 0 : i32
    %c128_i32_57 = arith.constant 128 : i32
    %94 = arith.muli %c0_i32_56, %c128_i32_57 : i32
    %95 = tpu.assume_multiple %94, 128 : i32
    %c0_58 = arith.constant 0 : index
    %c0_59 = arith.constant 0 : index
    %96 = arith.index_cast %95 : i32 to index
    %97 = vector.load %arg2[%c0_58, %c0_59, %96] : memref<1x16x128xf32, #tpu.memory_space<vmem>>, vector<1x16x128xf32>
    %98 = vector.shape_cast %97 : vector<1x16x128xf32> to vector<16x128xf32>
    %cst_60 = arith.constant dense<0.000000e+00> : vector<128x128xf32>
    %99 = tpu.matmul %92, %98, %cst_60 {dimension_numbers = #tpu.dot_dimension_numbers<[1], [0], [0], [1], [0, 0, 1, 1], [], []>} : vector<128x16xf32>, vector<16x128xf32>, vector<128x128xf32> -> vector<128x128xf32>
    %100 = tpu.iota {dimensions = array<i32: 1>} : vector<1x128xi32>
    %101 = arith.addi %0, %95 : i32
    %102 = vector.broadcast %101 : i32 to vector<1x128xi32>
    %103 = arith.addi %102, %100 : vector<1x128xi32>
    %c320_i32_61 = arith.constant 320 : i32
    %104 = vector.broadcast %c320_i32_61 : i32 to vector<1x128xi32>
    %105 = arith.cmpi slt, %103, %104 : vector<1x128xi32>
    %cst_62 = arith.constant 0xFF800000 : f32
    %106 = vector.shape_cast %105 : vector<1x128xi1> to vector<1x128xi1>
    %107 = vector.broadcast %106 : vector<1x128xi1> to vector<128x128xi1>
    %108 = vector.broadcast %cst_62 : f32 to vector<128x128xf32>
    %109 = arith.select %107, %99, %108 : vector<128x128xi1>, vector<128x128xf32>
    %110 = arith.maximumf %93, %109 : vector<128x128xf32>
    %c1_i32_63 = arith.constant 1 : i32
    %c512_64 = arith.constant 512 : index
    %c0_65 = arith.constant 0 : index
    %111 = vector.load %arg6[%c512_64, %c0_65] : memref<1024x128xf32, #tpu.memory_space<vmem>>, vector<128x128xf32>
    %112 = arith.maximumf %111, %110 : vector<128x128xf32>
    %c512_66 = arith.constant 512 : index
    %c0_67 = arith.constant 0 : index
    %113 = vector.load %arg6[%c512_66, %c0_67] : memref<1024x128xf32, #tpu.memory_space<vmem>>, vector<128x128xf32>
    tpu.vector_store %arg6[%c512_66, %c0_67], %112 {strides = array<i32>} : memref<1024x128xf32, #tpu.memory_space<vmem>>, vector<128x128xf32>,
    %c640 = arith.constant 640 : index
    %c0_68 = arith.constant 0 : index
    %114 = vector.load %arg3[%c640, %c0_68] : memref<1024x16xf32, #tpu.memory_space<vmem>>, vector<128x16xf32>
    %cst_69 = arith.constant 0xFF800000 : f32
    %115 = vector.broadcast %cst_69 : f32 to vector<128x128xf32>
    %c0_i32_70 = arith.constant 0 : i32
    %c128_i32_71 = arith.constant 128 : i32
    %116 = arith.muli %c0_i32_70, %c128_i32_71 : i32
    %117 = tpu.assume_multiple %116, 128 : i32
    %c0_72 = arith.constant 0 : index
    %c0_73 = arith.constant 0 : index
    %118 = arith.index_cast %117 : i32 to index
    %119 = vector.load %arg2[%c0_72, %c0_73, %118] : memref<1x16x128xf32, #tpu.memory_space<vmem>>, vector<1x16x128xf32>
    %120 = vector.shape_cast %119 : vector<1x16x128xf32> to vector<16x128xf32>
    %cst_74 = arith.constant dense<0.000000e+00> : vector<128x128xf32>
    %121 = tpu.matmul %114, %120, %cst_74 {dimension_numbers = #tpu.dot_dimension_numbers<[1], [0], [0], [1], [0, 0, 1, 1], [], []>} : vector<128x16xf32>, vector<16x128xf32>, vector<128x128xf32> -> vector<128x128xf32>
    %122 = tpu.iota {dimensions = array<i32: 1>} : vector<1x128xi32>
    %123 = arith.addi %0, %117 : i32
    %124 = vector.broadcast %123 : i32 to vector<1x128xi32>
    %125 = arith.addi %124, %122 : vector<1x128xi32>
    %c320_i32_75 = arith.constant 320 : i32
    %126 = vector.broadcast %c320_i32_75 : i32 to vector<1x128xi32>
    %127 = arith.cmpi slt, %125, %126 : vector<1x128xi32>
    %cst_76 = arith.constant 0xFF800000 : f32
    %128 = vector.shape_cast %127 : vector<1x128xi1> to vector<1x128xi1>
    %129 = vector.broadcast %128 : vector<1x128xi1> to vector<128x128xi1>
    %130 = vector.broadcast %cst_76 : f32 to vector<128x128xf32>
    %131 = arith.select %129, %121, %130 : vector<128x128xi1>, vector<128x128xf32>
    %132 = arith.maximumf %115, %131 : vector<128x128xf32>
    %c1_i32_77 = arith.constant 1 : i32
    %c640_78 = arith.constant 640 : index
    %c0_79 = arith.constant 0 : index
    %133 = vector.load %arg6[%c640_78, %c0_79] : memref<1024x128xf32, #tpu.memory_space<vmem>>, vector<128x128xf32>
    %134 = arith.maximumf %133, %132 : vector<128x128xf32>
    %c640_80 = arith.constant 640 : index
    %c0_81 = arith.constant 0 : index
    %135 = vector.load %arg6[%c640_80, %c0_81] : memref<1024x128xf32, #tpu.memory_space<vmem>>, vector<128x128xf32>
    tpu.vector_store %arg6[%c640_80, %c0_81], %134 {strides = array<i32>} : memref<1024x128xf32, #tpu.memory_space<vmem>>, vector<128x128xf32>,
    %c768 = arith.constant 768 : index
    %c0_82 = arith.constant 0 : index
    %136 = vector.load %arg3[%c768, %c0_82] : memref<1024x16xf32, #tpu.memory_space<vmem>>, vector<128x16xf32>
    %cst_83 = arith.constant 0xFF800000 : f32
    %137 = vector.broadcast %cst_83 : f32 to vector<128x128xf32>
    %c0_i32_84 = arith.constant 0 : i32
    %c128_i32_85 = arith.constant 128 : i32
    %138 = arith.muli %c0_i32_84, %c128_i32_85 : i32
    %139 = tpu.assume_multiple %138, 128 : i32
    %c0_86 = arith.constant 0 : index
    %c0_87 = arith.constant 0 : index
    %140 = arith.index_cast %139 : i32 to index
    %141 = vector.load %arg2[%c0_86, %c0_87, %140] : memref<1x16x128xf32, #tpu.memory_space<vmem>>, vector<1x16x128xf32>
    %142 = vector.shape_cast %141 : vector<1x16x128xf32> to vector<16x128xf32>
    %cst_88 = arith.constant dense<0.000000e+00> : vector<128x128xf32>
    %143 = tpu.matmul %136, %142, %cst_88 {dimension_numbers = #tpu.dot_dimension_numbers<[1], [0], [0], [1], [0, 0, 1, 1], [], []>} : vector<128x16xf32>, vector<16x128xf32>, vector<128x128xf32> -> vector<128x128xf32>
    %144 = tpu.iota {dimensions = array<i32: 1>} : vector<1x128xi32>
    %145 = arith.addi %0, %139 : i32
    %146 = vector.broadcast %145 : i32 to vector<1x128xi32>
    %147 = arith.addi %146, %144 : vector<1x128xi32>
    %c320_i32_89 = arith.constant 320 : i32
    %148 = vector.broadcast %c320_i32_89 : i32 to vector<1x128xi32>
    %149 = arith.cmpi slt, %147, %148 : vector<1x128xi32>
    %cst_90 = arith.constant 0xFF800000 : f32
    %150 = vector.shape_cast %149 : vector<1x128xi1> to vector<1x128xi1>
    %151 = vector.broadcast %150 : vector<1x128xi1> to vector<128x128xi1>
    %152 = vector.broadcast %cst_90 : f32 to vector<128x128xf32>
    %153 = arith.select %151, %143, %152 : vector<128x128xi1>, vector<128x128xf32>
    %154 = arith.maximumf %137, %153 : vector<128x128xf32>
    %c1_i32_91 = arith.constant 1 : i32
    %c768_92 = arith.constant 768 : index
    %c0_93 = arith.constant 0 : index
    %155 = vector.load %arg6[%c768_92, %c0_93] : memref<1024x128xf32, #tpu.memory_space<vmem>>, vector<128x128xf32>
    %156 = arith.maximumf %155, %154 : vector<128x128xf32>
    %c768_94 = arith.constant 768 : index
    %c0_95 = arith.constant 0 : index
    %157 = vector.load %arg6[%c768_94, %c0_95] : memref<1024x128xf32, #tpu.memory_space<vmem>>, vector<128x128xf32>
    tpu.vector_store %arg6[%c768_94, %c0_95], %156 {strides = array<i32>} : memref<1024x128xf32, #tpu.memory_space<vmem>>, vector<128x128xf32>,
    %c896 = arith.constant 896 : index
    %c0_96 = arith.constant 0 : index
    %158 = vector.load %arg3[%c896, %c0_96] : memref<1024x16xf32, #tpu.memory_space<vmem>>, vector<128x16xf32>
    %cst_97 = arith.constant 0xFF800000 : f32
    %159 = vector.broadcast %cst_97 : f32 to vector<128x128xf32>
    %c0_i32_98 = arith.constant 0 : i32
    %c128_i32_99 = arith.constant 128 : i32
    %160 = arith.muli %c0_i32_98, %c128_i32_99 : i32
    %161 = tpu.assume_multiple %160, 128 : i32
    %c0_100 = arith.constant 0 : index
    %c0_101 = arith.constant 0 : index
    %162 = arith.index_cast %161 : i32 to index
    %163 = vector.load %arg2[%c0_100, %c0_101, %162] : memref<1x16x128xf32, #tpu.memory_space<vmem>>, vector<1x16x128xf32>
    %164 = vector.shape_cast %163 : vector<1x16x128xf32> to vector<16x128xf32>
    %cst_102 = arith.constant dense<0.000000e+00> : vector<128x128xf32>
    %165 = tpu.matmul %158, %164, %cst_102 {dimension_numbers = #tpu.dot_dimension_numbers<[1], [0], [0], [1], [0, 0, 1, 1], [], []>} : vector<128x16xf32>, vector<16x128xf32>, vector<128x128xf32> -> vector<128x128xf32>
    %166 = tpu.iota {dimensions = array<i32: 1>} : vector<1x128xi32>
    %167 = arith.addi %0, %161 : i32
    %168 = vector.broadcast %167 : i32 to vector<1x128xi32>
    %169 = arith.addi %168, %166 : vector<1x128xi32>
    %c320_i32_103 = arith.constant 320 : i32
    %170 = vector.broadcast %c320_i32_103 : i32 to vector<1x128xi32>
    %171 = arith.cmpi slt, %169, %170 : vector<1x128xi32>
    %cst_104 = arith.constant 0xFF800000 : f32
    %172 = vector.shape_cast %171 : vector<1x128xi1> to vector<1x128xi1>
    %173 = vector.broadcast %172 : vector<1x128xi1> to vector<128x128xi1>
    %174 = vector.broadcast %cst_104 : f32 to vector<128x128xf32>
    %175 = arith.select %173, %165, %174 : vector<128x128xi1>, vector<128x128xf32>
    %176 = arith.maximumf %159, %175 : vector<128x128xf32>
    %c1_i32_105 = arith.constant 1 : i32
    %c896_106 = arith.constant 896 : index
    %c0_107 = arith.constant 0 : index
    %177 = vector.load %arg6[%c896_106, %c0_107] : memref<1024x128xf32, #tpu.memory_space<vmem>>, vector<128x128xf32>
    %178 = arith.maximumf %177, %176 : vector<128x128xf32>
    %c896_108 = arith.constant 896 : index
    %c0_109 = arith.constant 0 : index
    %179 = vector.load %arg6[%c896_108, %c0_109] : memref<1024x128xf32, #tpu.memory_space<vmem>>, vector<128x128xf32>
    tpu.vector_store %arg6[%c896_108, %c0_109], %178 {strides = array<i32>} : memref<1024x128xf32, #tpu.memory_space<vmem>>, vector<128x128xf32>,
    %c2_i32 = arith.constant 2 : i32
    %180 = arith.cmpi eq, %arg1, %c2_i32 : i32
    %181 = arith.extui %180 : i1 to i32
    %c0_i32_110 = arith.constant 0 : i32
    %182 = arith.cmpi ne, %181, %c0_i32_110 : i32
    scf.if %182 {
      %c0_111 = arith.constant 0 : index
      %c0_112 = arith.constant 0 : index
      %183 = vector.load %arg6[%c0_111, %c0_112] : memref<1024x128xf32, #tpu.memory_space<vmem>>, vector<1024x128xf32>
      %cst_113 = arith.constant dense<0xFF800000> : vector<1024xf32>
      %184 = vector.multi_reduction <maximumf>, %183, %cst_113 [1] : vector<1024x128xf32> to vector<1024xf32>
      %185 = vector.shape_cast %184 : vector<1024xf32> to vector<1024x1xf32>
      %c0_114 = arith.constant 0 : index
      %c0_115 = arith.constant 0 : index
      %186 = vector.load %arg4[%c0_114, %c0_115] : memref<1024x1xf32, #tpu.memory_space<vmem>>, vector<1024x1xf32>
      %187 = arith.addf %185, %186 : vector<1024x1xf32>
      %cst_116 = arith.constant 0.000000e+00 : f32
      %188 = vector.broadcast %cst_116 : f32 to vector<1024x1xf32>
      %189 = arith.cmpf ogt, %187, %188 : vector<1024x1xf32>
      %cst_117 = arith.constant 2.000000e-01 : f32
      %190 = vector.broadcast %cst_117 : f32 to vector<1024x1xf32>
      %191 = arith.mulf %190, %187 : vector<1024x1xf32>
      %192 = arith.select %189, %187, %191 : vector<1024x1xi1>, vector<1024x1xf32>
      %c0_118 = arith.constant 0 : index
      %c0_119 = arith.constant 0 : index
      %c0_120 = arith.constant 0 : index
      %193 = vector.load %arg5[%c0_118, %c0_119, %c0_120] : memref<1x1024x1xf32, #tpu.memory_space<vmem>>, vector<1x1024x1xf32>
      %194 = vector.shape_cast %193 : vector<1x1024x1xf32> to vector<1024x1xf32>
      %195 = vector.shape_cast %192 : vector<1024x1xf32> to vector<1x1024x1xf32>
      tpu.vector_store %arg5[%c0_118, %c0_119, %c0_120], %195 {strides = array<i32>} : memref<1x1024x1xf32, #tpu.memory_space<vmem>>, vector<1x1024x1xf32>,
    } else {
    }
    return
  }
  func.func @transform_0(%arg0: i32, %arg1: i32) -> (i32, i32, i32) {
    %c0_i32 = arith.constant 0 : i32
    %c0_i32_0 = arith.constant 0 : i32
    return %arg0, %c0_i32, %arg1 : i32, i32, i32
  }
  func.func @transform_1(%arg0: i32, %arg1: i32) -> (i32, i32) {
    %c0_i32 = arith.constant 0 : i32
    %c0_i32_0 = arith.constant 0 : i32
    %c0_i32_1 = arith.constant 0 : i32
    return %c0_i32, %c0_i32_0 : i32, i32
  }
  func.func @transform_2(%arg0: i32, %arg1: i32) -> (i32, i32) {
    %c0_i32 = arith.constant 0 : i32
    %c0_i32_0 = arith.constant 0 : i32
    %c0_i32_1 = arith.constant 0 : i32
    return %c0_i32, %c0_i32_0 : i32, i32
  }
  func.func @transform_3(%arg0: i32, %arg1: i32) -> (i32, i32, i32) {
    %c0_i32 = arith.constant 0 : i32
    %c0_i32_0 = arith.constant 0 : i32
    %c0_i32_1 = arith.constant 0 : i32
    return %arg0, %c0_i32, %c0_i32_0 : i32, i32, i32
  }
}

</mosaic_0001>

<llo_original>
// kernel: tpu_custom_call.1
$region0: #{tpu_custom_call.1}
  #allocation0 [shape = 'u32[]', space=smem, size = 0x4, offset = 0x4, fixed_abs, tag = 'smem constant byte address 0x4 - core index']
  #allocation1 [shape = 'u32[144,128]{1,0:T(1,128)}', space=vmem, size = 0x12000, scoped, tag = 'internal scratch']
  #allocation2 [shape = 'f32[1024,128]{1,0:T(8,128)}', space=vmem, size = 0x80000, scoped, tag = 'scratch operand']
  %s0 = inlined_call_operand.vmem [shape: f32[2,16,320], index: 0, kind: input, shape index: {}]
  %s1 = inlined_call_operand.vmem [shape: f32[1024,16], index: 1, kind: input, shape index: {}]
  %s2 = inlined_call_operand.vmem [shape: f32[1024,1], index: 2, kind: input, shape index: {}]
  %s3 = inlined_call_operand.vmem [shape: f32[2,1024,1], index: 3, kind: output, shape index: {}]
  %s4 = sld [smem:[#allocation0]]
  $region91: #{tpu_custom_call.1} parent=0
    _
  %s6 = ssub.s32 1, %s4
  %s7 = scalar_select 0, %s6, %s4
  $region1: #{tpu_custom_call.1} parent=0
    #allocation3 [shape = 'u8[16384]{0}', space=vmem, size = 0x4000, scoped, tag = 'input window, operand 0']
    loop: start=0, step=1, limit=8
    $region2: #{tpu_custom_call.1} parent=1 // loop_pre_header
      _
    $region3: #{tpu_custom_call.1} parent=1 // loop_header
      %s9 = sphi 0, %s13
      %p10 = scmp.ge.s32.totalorder %s9, 8
      %s16 = sphi 0, %s28
      %s17 = sphi 0, %s24
      %s18 = sphi 0, %s16
      %s19 = sphi 0, %s17
      %s20 = sphi 0, %s18
      %s21 = sphi 0, %s19
      %s33 = sphi 0, %s35
      %s36 = sphi 0, %s33
      %s37 = sphi 0, %s36
      %s53 = sphi 0, %s37
      %s57 = sphi 0, %s57
      %s59 = sphi 0, %s57
      %s60 = sphi 0, %s59
      %s74 = sphi 0, %s60
      %s78 = sphi 0, %s78
      %s80 = sphi 0, %s78
      %s81 = sphi 0, %s80
      %s95 = sphi 0, %s81
      %s101 = sphi 0, %s103
      %s104 = sphi 0, %s101
      %s105 = sphi 0, %s104
      %s121 = sphi 0, %s105
    $region4: #{tpu_custom_call.1} parent=1 // loop_header_branch
      %12 = sbr.rel (%p10) target = $region8
    $region5: #{tpu_custom_call.1} parent=1 // loop_body
      %s14 = ssub.s32 %s9, 1
      %s15 = ssub.s32 %s9, 2
      %s22 = sadd.s32 1, %s17
      %p23 = scmp.ge.s32.totalorder %s22, 3
      %s24 = scalar_select %p23, 0, %s22
      %s25 = sadd.s32 1, %s16
      %s26 = scalar_select %p23, %s25, %s16
      %p27 = scmp.ge.s32.totalorder %s26, 2
      %s28 = scalar_select %p27, 0, %s26
      %s29 = ssub.s32 %s16, %s28
      %s30 = ssub.s32 %s17, %s24
      %s31 = sor.u32 %s29, %s30
      %p32 = scmp.eq.s32.totalorder %s31, 0
      %s34 = sadd.s32 %s33, 1
      %s35 = scalar_select %p32, %s33, %s34
      %p38 = pneg %p32
      %p39 = scmp.eq.s32.totalorder %s9, 5
      %p40 = por %p38, %p39
      %p41 = scmp.ne.s32.totalorder %s33, %s36
      %p42 = scmp.eq.s32.totalorder %s9, 0
      %p43 = por %p41, %p42
      %p44 = scmp.ne.s32.totalorder %s33, %s36
      %p45 = scmp.eq.s32.totalorder %s14, 5
      %p46 = por %p44, %p45
      %p47 = scmp.ne.s32.totalorder %s36, %s37
      %p48 = scmp.eq.s32.totalorder %s14, 0
      %p49 = por %p47, %p48
      %p50 = scmp.ne.s32.totalorder %s36, %s37
      %p51 = scmp.eq.s32.totalorder %s15, 5
      %p52 = por %p50, %p51
      %p54 = scmp.ne.s32.totalorder %s37, %s53
      %p55 = scmp.eq.s32.totalorder %s15, 0
      %p56 = por %p54, %p55
      %s58 = sadd.s32 %s57, 1
      %p61 = scmp.eq.s32.totalorder %s9, 5
      %p62 = scmp.ne.s32.totalorder %s57, %s59
      %p63 = scmp.eq.s32.totalorder %s9, 0
      %p64 = por %p62, %p63
      %p65 = scmp.ne.s32.totalorder %s57, %s59
      %p66 = scmp.eq.s32.totalorder %s14, 5
      %p67 = por %p65, %p66
      %p68 = scmp.ne.s32.totalorder %s59, %s60
      %p69 = scmp.eq.s32.totalorder %s14, 0
      %p70 = por %p68, %p69
      %p71 = scmp.ne.s32.totalorder %s59, %s60
      %p72 = scmp.eq.s32.totalorder %s15, 5
      %p73 = por %p71, %p72
      %p75 = scmp.ne.s32.totalorder %s60, %s74
      %p76 = scmp.eq.s32.totalorder %s15, 0
      %p77 = por %p75, %p76
      %s79 = sadd.s32 %s78, 1
      %p82 = scmp.eq.s32.totalorder %s9, 5
      %p83 = scmp.ne.s32.totalorder %s78, %s80
      %p84 = scmp.eq.s32.totalorder %s9, 0
      %p85 = por %p83, %p84
      %p86 = scmp.ne.s32.totalorder %s78, %s80
      %p87 = scmp.eq.s32.totalorder %s14, 5
      %p88 = por %p86, %p87
      %p89 = scmp.ne.s32.totalorder %s80, %s81
      %p90 = scmp.eq.s32.totalorder %s14, 0
      %p91 = por %p89, %p90
      %p92 = scmp.ne.s32.totalorder %s80, %s81
      %p93 = scmp.eq.s32.totalorder %s15, 5
      %p94 = por %p92, %p93
      %p96 = scmp.ne.s32.totalorder %s81, %s95
      %p97 = scmp.eq.s32.totalorder %s15, 0
      %p98 = por %p96, %p97
      %s99 = ssub.s32 %s16, %s28
      %p100 = scmp.eq.s32.totalorder %s99, 0
      %s102 = sadd.s32 %s101, 1
      %s103 = scalar_select %p100, %s101, %s102
      %p106 = pneg %p100
      %p107 = scmp.eq.s32.totalorder %s9, 5
      %p108 = por %p106, %p107
      %p109 = scmp.ne.s32.totalorder %s101, %s104
      %p110 = scmp.eq.s32.totalorder %s9, 0
      %p111 = por %p109, %p110
      %p112 = scmp.ne.s32.totalorder %s101, %s104
      %p113 = scmp.eq.s32.totalorder %s14, 5
      %p114 = por %p112, %p113
      %p115 = scmp.ne.s32.totalorder %s104, %s105
      %p116 = scmp.eq.s32.totalorder %s14, 0
      %p117 = por %p115, %p116
      %p118 = scmp.ne.s32.totalorder %s104, %s105
      %p119 = scmp.eq.s32.totalorder %s15, 5
      %p120 = por %p118, %p119
      %p122 = scmp.ne.s32.totalorder %s105, %s121
      %p123 = scmp.eq.s32.totalorder %s15, 0
      %p124 = por %p122, %p123
      %p125 = scmp.le.s32.totalorder 1, %s9
      %p126 = scmp.lt.s32.totalorder %s9, 7
      %p127 = pnand %p125, %p126
      %p128 = pneg %p127
      // Predicated region
      $region9: #{tpu_custom_call.1} parent=5 // pred_check
        _
      $region10: #{tpu_custom_call.1} parent=5 // pred_check_branch
        %130 = sbr.rel (%p127) target = $region12
      $region11: #{tpu_custom_call.1} parent=5 // pred_region
        %s131 = ssub.s32 %s9, 1
        // Predicated region
        $region13: #{tpu_custom_call.1} parent=11 // pred_check
          %p132 = pneg %p70
        $region14: #{tpu_custom_call.1} parent=11 // pred_check_branch
          %134 = sbr.rel (%p132) target = $region16
        $region15: #{tpu_custom_call.1} parent=11 // pred_region
          _
        $region16: #{tpu_custom_call.1} parent=11 // pred_fallthru
          _
        // Predicated region
        $region17: #{tpu_custom_call.1} parent=11 // pred_check
          %p135 = pneg %p91
        $region18: #{tpu_custom_call.1} parent=11 // pred_check_branch
          %137 = sbr.rel (%p135) target = $region20
        $region19: #{tpu_custom_call.1} parent=11 // pred_region
          _
        $region20: #{tpu_custom_call.1} parent=11 // pred_fallthru
          _
      $region12: #{tpu_custom_call.1} parent=5 // pred_fallthru
        _
      %p138 = scmp.lt.s32.totalorder %s9, 6
      // Predicated region
      $region21: #{tpu_custom_call.1} parent=5 // pred_check
        %p139 = pneg %p138
      $region22: #{tpu_custom_call.1} parent=5 // pred_check_branch
        %141 = sbr.rel (%p139) target = $region24
      $region23: #{tpu_custom_call.1} parent=5 // pred_region
        // Predicated region
        $region25: #{tpu_custom_call.1} parent=23 // pred_check
          %p142 = pneg %p43
        $region26: #{tpu_custom_call.1} parent=23 // pred_check_branch
          %144 = sbr.rel (%p142) target = $region28
        $region27: #{tpu_custom_call.1} parent=23 // pred_region
          %s145 = sand.u32 %s33, 1
          %s146 = sand.u32 %s33, 1
          %s147 = smul.addr %s146, 16
          %s148 = scalar_lea.vmem [#allocation3], %s147
          %s149 = smul.addr %s16, 6
          %s150 = sadd.s32 %s17, %s149
          %s151 = smul.addr %s150, 8
          %s152 = scalar_lea.vmem %s0, %s151
          // Predicated region
          $region29: #{tpu_custom_call.1} parent=27 // pred_check
            _
          $region30: #{tpu_custom_call.1} parent=27 // pred_check_branch
            %154 = sbr.rel (0) target = $region32
          $region31: #{tpu_custom_call.1} parent=27 // pred_region
            // Predicated region
            $region33: #{tpu_custom_call.1} parent=31 // pred_check
              _
            $region34: #{tpu_custom_call.1} parent=31 // pred_check_branch
              %156 = sbr.rel (0) target = $region36
            $region35: #{tpu_custom_call.1} parent=31 // pred_region
              // Predicated region
              $region48: #{tpu_custom_call.1} parent=35 // pred_check
                _
              $region49: #{tpu_custom_call.1} parent=35 // pred_check_branch
                %173 = sbr.rel (0) target = $region51
              $region50: #{tpu_custom_call.1} parent=35 // pred_region
                loop: start=0, step=1, limit=1
                $region52: #{tpu_custom_call.1} parent=50 // loop_pre_header
                  _
                $region53: #{tpu_custom_call.1} parent=50 // loop_header
                  %s175 = sphi 0, %s179
                  %p176 = scmp.ge.s32.totalorder %s175, 1
                  %s180 = sphi %s152, %s152
                  %s181 = sphi %s148, %s148
                $region54: #{tpu_custom_call.1} parent=50 // loop_header_branch
                  %178 = sbr.rel (%p176) target = $region58
                $region55: #{tpu_custom_call.1} parent=50 // loop_body
                  %v182 = vld [vmem:[%s180] sm:$0xff]
                  %183 = vst [vmem:[%s181] sm:$0xff] %v182
                  %v184 = vld [vmem:[%s180 + $0x18] sm:$0xff]
                  %185 = vst [vmem:[%s181 + $0x8] sm:$0xff] %v184
                $region56: #{tpu_custom_call.1} parent=50 // loop_footer
                  %s179 = sadd.s32 1, %s175
                $region57: #{tpu_custom_call.1} parent=50 // loop_footer_branch
                  %174 = sbr.rel target = $region53
                $region58: #{tpu_custom_call.1} parent=50 // loop_exit
                  _
              $region51: #{tpu_custom_call.1} parent=35 // pred_fallthru
                _
              // Predicated region
              $region59: #{tpu_custom_call.1} parent=35 // pred_check
                _
              $region60: #{tpu_custom_call.1} parent=35 // pred_check_branch
                %187 = sbr.rel target = $region62
              $region61: #{tpu_custom_call.1} parent=35 // pred_region
                _
              $region62: #{tpu_custom_call.1} parent=35 // pred_fallthru
                _
            $region36: #{tpu_custom_call.1} parent=31 // pred_fallthru
              _
            // Predicated region
            $region37: #{tpu_custom_call.1} parent=31 // pred_check
              _
            $region38: #{tpu_custom_call.1} parent=31 // pred_check_branch
              %158 = sbr.rel target = $region40
            $region39: #{tpu_custom_call.1} parent=31 // pred_region
              loop: start=0, step=1, limit=1
              $region41: #{tpu_custom_call.1} parent=39 // loop_pre_header
                _
              $region42: #{tpu_custom_call.1} parent=39 // loop_header
                %s161 = sphi 0, %s165
                %p162 = scmp.ge.s32.totalorder %s161, 1
                %s166 = sphi %s152, %s152
                %s167 = sphi %s148, %s148
              $region43: #{tpu_custom_call.1} parent=39 // loop_header_branch
                %164 = sbr.rel (%p162) target = $region47
              $region44: #{tpu_custom_call.1} parent=39 // loop_body
                %v168 = vld [vmem:[%s166] sm:$0xff]
                %169 = vst [vmem:[%s167] sm:$0xff] %v168
                %v170 = vld [vmem:[%s166 + $0x18] sm:$0xff]
                %171 = vst [vmem:[%s167 + $0x8] sm:$0xff] %v170
              $region45: #{tpu_custom_call.1} parent=39 // loop_footer
                %s165 = sadd.s32 1, %s161
              $region46: #{tpu_custom_call.1} parent=39 // loop_footer_branch
                %160 = sbr.rel target = $region42
              $region47: #{tpu_custom_call.1} parent=39 // loop_exit
                _
            $region40: #{tpu_custom_call.1} parent=31 // pred_fallthru
              _
          $region32: #{tpu_custom_call.1} parent=27 // pred_fallthru
            _
          %188 = vnop
        $region28: #{tpu_custom_call.1} parent=23 // pred_fallthru
          _
      $region24: #{tpu_custom_call.1} parent=5 // pred_fallthru
        _
      %p189 = scmp.le.s32.totalorder 1, %s9
      %p190 = scmp.lt.s32.totalorder %s9, 7
      %p191 = pnand %p189, %p190
      %p192 = pneg %p191
      // Predicated region
      $region63: #{tpu_custom_call.1} parent=5 // pred_check
        _
      $region64: #{tpu_custom_call.1} parent=5 // pred_check_branch
        %194 = sbr.rel (%p191) target = $region66
      $region65: #{tpu_custom_call.1} parent=5 // pred_region
        %s195 = ssub.s32 %s9, 1
        %s196 = sand.u32 %s36, 1
        %s197 = sand.u32 %s36, 1
        %s198 = smul.addr %s197, 16
        %s199 = scalar_lea.vmem [#allocation3], %s198
        // Predicated region
        $region67: #{tpu_custom_call.1} parent=65 // pred_check
          %p200 = pneg %p49
        $region68: #{tpu_custom_call.1} parent=65 // pred_check_branch
          %202 = sbr.rel (%p200) target = $region70
        $region69: #{tpu_custom_call.1} parent=65 // pred_region
          _
        $region70: #{tpu_custom_call.1} parent=65 // pred_fallthru
          _
        %s203 = sand.u32 %s36, 1
        %s204 = sand.u32 %s36, 1
        %s205 = smul.addr %s204, 16
        %s206 = scalar_lea.vmem [#allocation3], %s205
        %p207 = pneg %p49
        %p208 = pneg %p46
        %p209 = pneg %p70
        %p210 = pneg %p67
        %p211 = pneg %p91
        %p212 = pneg %p88
        %p213 = pneg %p117
        %p214 = pneg %p114
        %p215 = scmp.lt.s32.totalorder %s18, 1
        %s216 = scalar_select %p215, %s18, 1
        %s217 = smul.addr %s216, 128
        %s218 = smul.addr %s217, 8
        %s219 = scalar_lea.vmem %s3, %s218
        %p220 = scmp.lt.s32.totalorder %s18, 1
        %s221 = scalar_select %p220, %s18, 1
        %s222 = smul.addr %s221, 128
        %s223 = smul.addr %s222, 8
        %s224 = scalar_lea.vmem %s3, %s223
        %s225 = smul.u32 %s19, 128
        %p226 = scmp.eq.s32.totalorder %s19, 0
        // Predicated region
        $region71: #{tpu_custom_call.1} parent=65 // pred_check
          %p227 = pneg %p226
        $region72: #{tpu_custom_call.1} parent=65 // pred_check_branch
          %229 = sbr.rel (%p227) target = $region74
        $region73: #{tpu_custom_call.1} parent=65 // pred_region
          %230 = vst [vmem:[#allocation2] sm:$0xff] -inf
          %231 = vst [vmem:[#allocation2 + $0x8] sm:$0xff] -inf
          %232 = vst [vmem:[#allocation2 + $0x10] sm:$0xff] -inf
          %233 = vst [vmem:[#allocation2 + $0x18] sm:$0xff] -inf
          %234 = vst [vmem:[#allocation2 + $0x20] sm:$0xff] -inf
          %235 = vst [vmem:[#allocation2 + $0x28] sm:$0xff] -inf
          %236 = vst [vmem:[#allocation2 + $0x30] sm:$0xff] -inf
          %237 = vst [vmem:[#allocation2 + $0x38] sm:$0xff] -inf
          %238 = vst [vmem:[#allocation2 + $0x40] sm:$0xff] -inf
          %239 = vst [vmem:[#allocation2 + $0x48] sm:$0xff] -inf
          %240 = vst [vmem:[#allocation2 + $0x50] sm:$0xff] -inf
          %241 = vst [vmem:[#allocation2 + $0x58] sm:$0xff] -inf
          %242 = vst [vmem:[#allocation2 + $0x60] sm:$0xff] -inf
          %243 = vst [vmem:[#allocation2 + $0x68] sm:$0xff] -inf
          %244 = vst [vmem:[#allocation2 + $0x70] sm:$0xff] -inf
          %245 = vst [vmem:[#allocation2 + $0x78] sm:$0xff] -inf
          %246 = vst [vmem:[#allocation2 + $0x80] sm:$0xff] -inf
          %247 = vst [vmem:[#allocation2 + $0x88] sm:$0xff] -inf
          %248 = vst [vmem:[#allocation2 + $0x90] sm:$0xff] -inf
          %249 = vst [vmem:[#allocation2 + $0x98] sm:$0xff] -inf
          %250 = vst [vmem:[#allocation2 + $0xa0] sm:$0xff] -inf
          %251 = vst [vmem:[#allocation2 + $0xa8] sm:$0xff] -inf
          %252 = vst [vmem:[#allocation2 + $0xb0] sm:$0xff] -inf
          %253 = vst [vmem:[#allocation2 + $0xb8] sm:$0xff] -inf
          %254 = vst [vmem:[#allocation2 + $0xc0] sm:$0xff] -inf
          %255 = vst [vmem:[#allocation2 + $0xc8] sm:$0xff] -inf
          %256 = vst [vmem:[#allocation2 + $0xd0] sm:$0xff] -inf
          %257 = vst [vmem:[#allocation2 + $0xd8] sm:$0xff] -inf
          %258 = vst [vmem:[#allocation2 + $0xe0] sm:$0xff] -inf
          %259 = vst [vmem:[#allocation2 + $0xe8] sm:$0xff] -inf
          %260 = vst [vmem:[#allocation2 + $0xf0] sm:$0xff] -inf
          %261 = vst [vmem:[#allocation2 + $0xf8] sm:$0xff] -inf
          %262 = vst [vmem:[#allocation2 + $0x100] sm:$0xff] -inf
          %263 = vst [vmem:[#allocation2 + $0x108] sm:$0xff] -inf
          %264 = vst [vmem:[#allocation2 + $0x110] sm:$0xff] -inf
          %265 = vst [vmem:[#allocation2 + $0x118] sm:$0xff] -inf
          %266 = vst [vmem:[#allocation2 + $0x120] sm:$0xff] -inf
          %267 = vst [vmem:[#allocation2 + $0x128] sm:$0xff] -inf
          %268 = vst [vmem:[#allocation2 + $0x130] sm:$0xff] -inf
          %269 = vst [vmem:[#allocation2 + $0x138] sm:$0xff] -inf
          %270 = vst [vmem:[#allocation2 + $0x140] sm:$0xff] -inf
          %271 = vst [vmem:[#allocation2 + $0x148] sm:$0xff] -inf
          %272 = vst [vmem:[#allocation2 + $0x150] sm:$0xff] -inf
          %273 = vst [vmem:[#allocation2 + $0x158] sm:$0xff] -inf
          %274 = vst [vmem:[#allocation2 + $0x160] sm:$0xff] -inf
          %275 = vst [vmem:[#allocation2 + $0x168] sm:$0xff] -inf
          %276 = vst [vmem:[#allocation2 + $0x170] sm:$0xff] -inf
          %277 = vst [vmem:[#allocation2 + $0x178] sm:$0xff] -inf
          %278 = vst [vmem:[#allocation2 + $0x180] sm:$0xff] -inf
          %279 = vst [vmem:[#allocation2 + $0x188] sm:$0xff] -inf
          %280 = vst [vmem:[#allocation2 + $0x190] sm:$0xff] -inf
          %281 = vst [vmem:[#allocation2 + $0x198] sm:$0xff] -inf
          %282 = vst [vmem:[#allocation2 + $0x1a0] sm:$0xff] -inf
          %283 = vst [vmem:[#allocation2 + $0x1a8] sm:$0xff] -inf
          %284 = vst [vmem:[#allocation2 + $0x1b0] sm:$0xff] -inf
          %285 = vst [vmem:[#allocation2 + $0x1b8] sm:$0xff] -inf
          %286 = vst [vmem:[#allocation2 + $0x1c0] sm:$0xff] -inf
          %287 = vst [vmem:[#allocation2 + $0x1c8] sm:$0xff] -inf
          %288 = vst [vmem:[#allocation2 + $0x1d0] sm:$0xff] -inf
          %289 = vst [vmem:[#allocation2 + $0x1d8] sm:$0xff] -inf
          %290 = vst [vmem:[#allocation2 + $0x1e0] sm:$0xff] -inf
          %291 = vst [vmem:[#allocation2 + $0x1e8] sm:$0xff] -inf
          %292 = vst [vmem:[#allocation2 + $0x1f0] sm:$0xff] -inf
          %293 = vst [vmem:[#allocation2 + $0x1f8] sm:$0xff] -inf
          %294 = vst [vmem:[#allocation2 + $0x200] sm:$0xff] -inf
          %295 = vst [vmem:[#allocation2 + $0x208] sm:$0xff] -inf
          %296 = vst [vmem:[#allocation2 + $0x210] sm:$0xff] -inf
          %297 = vst [vmem:[#allocation2 + $0x218] sm:$0xff] -inf
          %298 = vst [vmem:[#allocation2 + $0x220] sm:$0xff] -inf
          %299 = vst [vmem:[#allocation2 + $0x228] sm:$0xff] -inf
          %300 = vst [vmem:[#allocation2 + $0x230] sm:$0xff] -inf
          %301 = vst [vmem:[#allocation2 + $0x238] sm:$0xff] -inf
          %302 = vst [vmem:[#allocation2 + $0x240] sm:$0xff] -inf
          %303 = vst [vmem:[#allocation2 + $0x248] sm:$0xff] -inf
          %304 = vst [vmem:[#allocation2 + $0x250] sm:$0xff] -inf
          %305 = vst [vmem:[#allocation2 + $0x258] sm:$0xff] -inf
          %306 = vst [vmem:[#allocation2 + $0x260] sm:$0xff] -inf
          %307 = vst [vmem:[#allocation2 + $0x268] sm:$0xff] -inf
          %308 = vst [vmem:[#allocation2 + $0x270] sm:$0xff] -inf
          %309 = vst [vmem:[#allocation2 + $0x278] sm:$0xff] -inf
          %310 = vst [vmem:[#allocation2 + $0x280] sm:$0xff] -inf
          %311 = vst [vmem:[#allocation2 + $0x288] sm:$0xff] -inf
          %312 = vst [vmem:[#allocation2 + $0x290] sm:$0xff] -inf
          %313 = vst [vmem:[#allocation2 + $0x298] sm:$0xff] -inf
          %314 = vst [vmem:[#allocation2 + $0x2a0] sm:$0xff] -inf
          %315 = vst [vmem:[#allocation2 + $0x2a8] sm:$0xff] -inf
          %316 = vst [vmem:[#allocation2 + $0x2b0] sm:$0xff] -inf
          %317 = vst [vmem:[#allocation2 + $0x2b8] sm:$0xff] -inf
          %318 = vst [vmem:[#allocation2 + $0x2c0] sm:$0xff] -inf
          %319 = vst [vmem:[#allocation2 + $0x2c8] sm:$0xff] -inf
          %320 = vst [vmem:[#allocation2 + $0x2d0] sm:$0xff] -inf
          %321 = vst [vmem:[#allocation2 + $0x2d8] sm:$0xff] -inf
          %322 = vst [vmem:[#allocation2 + $0x2e0] sm:$0xff] -inf
          %323 = vst [vmem:[#allocation2 + $0x2e8] sm:$0xff] -inf
          %324 = vst [vmem:[#allocation2 + $0x2f0] sm:$0xff] -inf
          %325 = vst [vmem:[#allocation2 + $0x2f8] sm:$0xff] -inf
          %326 = vst [vmem:[#allocation2 + $0x300] sm:$0xff] -inf
          %327 = vst [vmem:[#allocation2 + $0x308] sm:$0xff] -inf
          %328 = vst [vmem:[#allocation2 + $0x310] sm:$0xff] -inf
          %329 = vst [vmem:[#allocation2 + $0x318] sm:$0xff] -inf
          %330 = vst [vmem:[#allocation2 + $0x320] sm:$0xff] -inf
          %331 = vst [vmem:[#allocation2 + $0x328] sm:$0xff] -inf
          %332 = vst [vmem:[#allocation2 + $0x330] sm:$0xff] -inf
          %333 = vst [vmem:[#allocation2 + $0x338] sm:$0xff] -inf
          %334 = vst [vmem:[#allocation2 + $0x340] sm:$0xff] -inf
          %335 = vst [vmem:[#allocation2 + $0x348] sm:$0xff] -inf
          %336 = vst [vmem:[#allocation2 + $0x350] sm:$0xff] -inf
          %337 = vst [vmem:[#allocation2 + $0x358] sm:$0xff] -inf
          %338 = vst [vmem:[#allocation2 + $0x360] sm:$0xff] -inf
          %339 = vst [vmem:[#allocation2 + $0x368] sm:$0xff] -inf
          %340 = vst [vmem:[#allocation2 + $0x370] sm:$0xff] -inf
          %341 = vst [vmem:[#allocation2 + $0x378] sm:$0xff] -inf
          %342 = vst [vmem:[#allocation2 + $0x380] sm:$0xff] -inf
          %343 = vst [vmem:[#allocation2 + $0x388] sm:$0xff] -inf
          %344 = vst [vmem:[#allocation2 + $0x390] sm:$0xff] -inf
          %345 = vst [vmem:[#allocation2 + $0x398] sm:$0xff] -inf
          %346 = vst [vmem:[#allocation2 + $0x3a0] sm:$0xff] -inf
          %347 = vst [vmem:[#allocation2 + $0x3a8] sm:$0xff] -inf
          %348 = vst [vmem:[#allocation2 + $0x3b0] sm:$0xff] -inf
          %349 = vst [vmem:[#allocation2 + $0x3b8] sm:$0xff] -inf
          %350 = vst [vmem:[#allocation2 + $0x3c0] sm:$0xff] -inf
          %351 = vst [vmem:[#allocation2 + $0x3c8] sm:$0xff] -inf
          %352 = vst [vmem:[#allocation2 + $0x3d0] sm:$0xff] -inf
          %353 = vst [vmem:[#allocation2 + $0x3d8] sm:$0xff] -inf
          %354 = vst [vmem:[#allocation2 + $0x3e0] sm:$0xff] -inf
          %355 = vst [vmem:[#allocation2 + $0x3e8] sm:$0xff] -inf
          %356 = vst [vmem:[#allocation2 + $0x3f0] sm:$0xff] -inf
          %357 = vst [vmem:[#allocation2 + $0x3f8] sm:$0xff] -inf
        $region74: #{tpu_custom_call.1} parent=65 // pred_fallthru
          _
        %v358 = vld [vmem:[%s1] sm:$0xff]
        %v359 = vld [vmem:[%s1 + $0x8] sm:$0xff]
        %v360 = vld [vmem:[%s1 + $0x10] sm:$0xff]
        %v361 = vld [vmem:[%s1 + $0x18] sm:$0xff]
        %v362 = vld [vmem:[%s1 + $0x20] sm:$0xff]
        %v363 = vld [vmem:[%s1 + $0x28] sm:$0xff]
        %v364 = vld [vmem:[%s1 + $0x30] sm:$0xff]
        %v365 = vld [vmem:[%s1 + $0x38] sm:$0xff]
        %v366 = vld [vmem:[%s1 + $0x40] sm:$0xff]
        %v367 = vld [vmem:[%s1 + $0x48] sm:$0xff]
        %v368 = vld [vmem:[%s1 + $0x50] sm:$0xff]
        %v369 = vld [vmem:[%s1 + $0x58] sm:$0xff]
        %v370 = vld [vmem:[%s1 + $0x60] sm:$0xff]
        %v371 = vld [vmem:[%s1 + $0x68] sm:$0xff]
        %v372 = vld [vmem:[%s1 + $0x70] sm:$0xff]
        %v373 = vld [vmem:[%s1 + $0x78] sm:$0xff]
        %v374 = vld [vmem:[%s199] sm:$0xff]
        %v375 = vld [vmem:[%s199 + $0x8] sm:$0xff]
        %vm376 = vcmask 130048
        %v378 = vsel %vm376, %v358, 0
        %v381 = vsel %vm376, %v359, 0
        %v384 = vsel %vm376, %v360, 0
        %v387 = vsel %vm376, %v361, 0
        %v390 = vsel %vm376, %v362, 0
        %v393 = vsel %vm376, %v363, 0
        %v396 = vsel %vm376, %v364, 0
        %v399 = vsel %vm376, %v365, 0
        %v402 = vsel %vm376, %v366, 0
        %v405 = vsel %vm376, %v367, 0
        %v408 = vsel %vm376, %v368, 0
        %v411 = vsel %vm376, %v369, 0
        %v414 = vsel %vm376, %v370, 0
        %v417 = vsel %vm376, %v371, 0
        %v420 = vsel %vm376, %v372, 0
        %v423 = vsel %vm376, %v373, 0
        %425 = vmatprep.subr.mxu0 0.0
        %426 = vmatpush1.msra.mxu0 %v374
        %427 = vmatprep.subr.mxu0 0.0
        %428 = vmatpush1.msra.mxu0 %v375
        %429 = vmatprep.subr.mxu0 0.0
        %430 = vmatpush1.msra.mxu0 0.0
        %431 = vmatprep.subr.mxu0 0.0
        %432 = vmatpush1.msra.mxu0 0.0
        %433 = vmatprep.subr.mxu0 0.0
        %434 = vmatpush1.msra.mxu0 0.0
        %435 = vmatprep.subr.mxu0 0.0
        %436 = vmatpush1.msra.mxu0 0.0
        %437 = vmatprep.subr.mxu0 0.0
        %438 = vmatpush1.msra.mxu0 0.0
        %439 = vmatprep.subr.mxu0 0.0
        %440 = vmatpush1.msra.mxu0 0.0
        %441 = vmatprep.subr.mxu0 0.0
        %442 = vmatpush1.msra.mxu0 0.0
        %443 = vmatprep.subr.mxu0 0.0
        %444 = vmatpush1.msra.mxu0 0.0
        %445 = vmatprep.subr.mxu0 0.0
        %446 = vmatpush1.msra.mxu0 0.0
        %447 = vmatprep.subr.mxu0 0.0
        %448 = vmatpush1.msra.mxu0 0.0
        %449 = vmatprep.subr.mxu0 0.0
        %450 = vmatpush1.msra.mxu0 0.0
        %451 = vmatprep.subr.mxu0 0.0
        %452 = vmatpush1.msra.mxu0 0.0
        %453 = vmatprep.subr.mxu0 0.0
        %454 = vmatpush1.msra.mxu0 0.0
        %455 = vmatprep.subr.mxu0 0.0
        %456 = vmatpush1.msra.mxu0 0.0
        %457 = vmatprep.subr.mxu0 0.0
        %458 = vmatpush1.msra.mxu0 0.0
        %459 = vmatprep.subr.mxu0 0.0
        %460 = vmatpush1.msra.mxu0 0.0
        %461 = vmatprep.subr.mxu0 0.0
        %462 = vmatpush1.msra.mxu0 0.0
        %463 = vmatprep.subr.mxu0 0.0
        %464 = vmatpush1.msra.mxu0 0.0
        %465 = vmatprep.subr.mxu0 0.0
        %466 = vmatpush1.msra.mxu0 0.0
        %467 = vmatprep.subr.mxu0 0.0
        %468 = vmatpush1.msra.mxu0 0.0
        %469 = vmatprep.subr.mxu0 0.0
        %470 = vmatpush1.msra.mxu0 0.0
        %471 = vmatprep.subr.mxu0 0.0
        %472 = vmatpush1.msra.mxu0 0.0
        %473 = vmatprep.subr.mxu0 0.0
        %474 = vmatpush1.msra.mxu0 0.0
        %475 = vmatprep.subr.mxu0 0.0
        %476 = vmatpush1.msra.mxu0 0.0
        %477 = vmatprep.subr.mxu0 0.0
        %478 = vmatpush1.msra.mxu0 0.0
        %479 = vmatprep.subr.mxu0 0.0
        %480 = vmatpush1.msra.mxu0 0.0
        %481 = vmatprep.subr.mxu0 0.0
        %482 = vmatpush1.msra.mxu0 0.0
        %483 = vmatprep.subr.mxu0 0.0
        %484 = vmatpush1.msra.mxu0 0.0
        %485 = vmatprep.subr.mxu0 0.0
        %486 = vmatpush1.msra.mxu0 0.0
        %487 = vmatprep.subr.mxu0 0.0
        %488 = vmatpush1.msra.mxu0 0.0
        %489 = vmatprep.mubr.f32.mxu0 0.0
        %490 = vmatmul.mubr.f32.gmra.mrb[0].mxu0 %v378
        %v491 = vpop.f32.mrb[0].mxu0
        %v492 = vadd.f32 0.0, %v491
        %v493 = vpop.f32.mrb[0].mxu0
        %494 = vmatprep.mubr.f32.mxu0 0.0
        %495 = vmatmul.mubr.f32.gmra.mrb[0].mxu0 %v381
        %v496 = vpop.f32.mrb[0].mxu0
        %v497 = vadd.f32 0.0, %v496
        %v498 = vpop.f32.mrb[0].mxu0
        %499 = vmatprep.mubr.f32.mxu0 0.0
        %500 = vmatmul.mubr.f32.gmra.mrb[0].mxu0 %v384
        %v501 = vpop.f32.mrb[0].mxu0
        %v502 = vadd.f32 0.0, %v501
        %v503 = vpop.f32.mrb[0].mxu0
        %504 = vmatprep.mubr.f32.mxu0 0.0
        %505 = vmatmul.mubr.f32.gmra.mrb[0].mxu0 %v387
        %v506 = vpop.f32.mrb[0].mxu0
        %v507 = vadd.f32 0.0, %v506
        %v508 = vpop.f32.mrb[0].mxu0
        %509 = vmatprep.mubr.f32.mxu0 0.0
        %510 = vmatmul.mubr.f32.gmra.mrb[0].mxu0 %v390
        %v511 = vpop.f32.mrb[0].mxu0
        %v512 = vadd.f32 0.0, %v511
        %v513 = vpop.f32.mrb[0].mxu0
        %514 = vmatprep.mubr.f32.mxu0 0.0
        %515 = vmatmul.mubr.f32.gmra.mrb[0].mxu0 %v393
        %v516 = vpop.f32.mrb[0].mxu0
        %v517 = vadd.f32 0.0, %v516
        %v518 = vpop.f32.mrb[0].mxu0
        %519 = vmatprep.mubr.f32.mxu0 0.0
        %520 = vmatmul.mubr.f32.gmra.mrb[0].mxu0 %v396
        %v521 = vpop.f32.mrb[0].mxu0
        %v522 = vadd.f32 0.0, %v521
        %v523 = vpop.f32.mrb[0].mxu0
        %524 = vmatprep.mubr.f32.mxu0 0.0
        %525 = vmatmul.mubr.f32.gmra.mrb[0].mxu0 %v399
        %v526 = vpop.f32.mrb[0].mxu0
        %v527 = vadd.f32 0.0, %v526
        %v528 = vpop.f32.mrb[0].mxu0
        %529 = vmatprep.mubr.f32.mxu0 0.0
        %530 = vmatmul.mubr.f32.gmra.mrb[0].mxu0 %v402
        %v531 = vpop.f32.mrb[0].mxu0
        %v532 = vadd.f32 0.0, %v531
        %v533 = vpop.f32.mrb[0].mxu0
        %534 = vmatprep.mubr.f32.mxu0 0.0
        %535 = vmatmul.mubr.f32.gmra.mrb[0].mxu0 %v405
        %v536 = vpop.f32.mrb[0].mxu0
        %v537 = vadd.f32 0.0, %v536
        %v538 = vpop.f32.mrb[0].mxu0
        %539 = vmatprep.mubr.f32.mxu0 0.0
        %540 = vmatmul.mubr.f32.gmra.mrb[0].mxu0 %v408
        %v541 = vpop.f32.mrb[0].mxu0
        %v542 = vadd.f32 0.0, %v541
        %v543 = vpop.f32.mrb[0].mxu0
        %544 = vmatprep.mubr.f32.mxu0 0.0
        %545 = vmatmul.mubr.f32.gmra.mrb[0].mxu0 %v411
        %v546 = vpop.f32.mrb[0].mxu0
        %v547 = vadd.f32 0.0, %v546
        %v548 = vpop.f32.mrb[0].mxu0
        %549 = vmatprep.mubr.f32.mxu0 0.0
        %550 = vmatmul.mubr.f32.gmra.mrb[0].mxu0 %v414
        %v551 = vpop.f32.mrb[0].mxu0
        %v552 = vadd.f32 0.0, %v551
        %v553 = vpop.f32.mrb[0].mxu0
        %554 = vmatprep.mubr.f32.mxu0 0.0
        %555 = vmatmul.mubr.f32.gmra.mrb[0].mxu0 %v417
        %v556 = vpop.f32.mrb[0].mxu0
        %v557 = vadd.f32 0.0, %v556
        %v558 = vpop.f32.mrb[0].mxu0
        %559 = vmatprep.mubr.f32.mxu0 0.0
        %560 = vmatmul.mubr.f32.gmra.mrb[0].mxu0 %v420
        %v561 = vpop.f32.mrb[0].mxu0
        %v562 = vadd.f32 0.0, %v561
        %v563 = vpop.f32.mrb[0].mxu0
        %564 = vmatprep.mubr.f32.mxu0 0.0
        %565 = vmatmul.mubr.f32.gmra.mrb[0].mxu0 %v423
        %v566 = vpop.f32.mrb[0].mxu0
        %v567 = vadd.f32 0.0, %v566
        %v568 = vpop.f32.mrb[0].mxu0
        %569 = vdwg.mxu0
        %v570 = vlaneseq
        %v571 = vand.u32 %v570, 127
        %s572 = sadd.s32 %s225, 0
        %v573 = vstv %s572
        %v574 = vadd.s32 %v573, %v571
        %vm575 = vcmp.lt.s32.totalorder %v574, 320
        %v576 = vsel %vm575, 1, 0
        %vm577 = vcmp.eq.s32.totalorder %v576, 1
        %v578 = vsel %vm577, %v492, -inf
        %v579 = vsel %vm577, %v497, -inf
        %v580 = vsel %vm577, %v502, -inf
        %v581 = vsel %vm577, %v507, -inf
        %v582 = vsel %vm577, %v512, -inf
        %v583 = vsel %vm577, %v517, -inf
        %v584 = vsel %vm577, %v522, -inf
        %v585 = vsel %vm577, %v527, -inf
        %v586 = vsel %vm577, %v532, -inf
        %v587 = vsel %vm577, %v537, -inf
        %v588 = vsel %vm577, %v542, -inf
        %v589 = vsel %vm577, %v547, -inf
        %v590 = vsel %vm577, %v552, -inf
        %v591 = vsel %vm577, %v557, -inf
        %v592 = vsel %vm577, %v562, -inf
        %v593 = vsel %vm577, %v567, -inf
        %v594 = vld [vmem:[#allocation2] sm:$0xff]
        %v595 = vld [vmem:[#allocation2 + $0x8] sm:$0xff]
        %v596 = vld [vmem:[#allocation2 + $0x10] sm:$0xff]
        %v597 = vld [vmem:[#allocation2 + $0x18] sm:$0xff]
        %v598 = vld [vmem:[#allocation2 + $0x20] sm:$0xff]
        %v599 = vld [vmem:[#allocation2 + $0x28] sm:$0xff]
        %v600 = vld [vmem:[#allocation2 + $0x30] sm:$0xff]
        %v601 = vld [vmem:[#allocation2 + $0x38] sm:$0xff]
        %v602 = vld [vmem:[#allocation2 + $0x40] sm:$0xff]
        %v603 = vld [vmem:[#allocation2 + $0x48] sm:$0xff]
        %v604 = vld [vmem:[#allocation2 + $0x50] sm:$0xff]
        %v605 = vld [vmem:[#allocation2 + $0x58] sm:$0xff]
        %v606 = vld [vmem:[#allocation2 + $0x60] sm:$0xff]
        %v607 = vld [vmem:[#allocation2 + $0x68] sm:$0xff]
        %v608 = vld [vmem:[#allocation2 + $0x70] sm:$0xff]
        %v609 = vld [vmem:[#allocation2 + $0x78] sm:$0xff]
        %v610 = vmax.f32 %v594, %v578
        %v611 = vmax.f32 %v595, %v579
        %v612 = vmax.f32 %v596, %v580
        %v613 = vmax.f32 %v597, %v581
        %v614 = vmax.f32 %v598, %v582
        %v615 = vmax.f32 %v599, %v583
        %v616 = vmax.f32 %v600, %v584
        %v617 = vmax.f32 %v601, %v585
        %v618 = vmax.f32 %v602, %v586
        %v619 = vmax.f32 %v603, %v587
        %v620 = vmax.f32 %v604, %v588
        %v621 = vmax.f32 %v605, %v589
        %v622 = vmax.f32 %v606, %v590
        %v623 = vmax.f32 %v607, %v591
        %v624 = vmax.f32 %v608, %v592
        %v625 = vmax.f32 %v609, %v593
        %626 = vst [vmem:[#allocation2] sm:$0xff] %v610
        %627 = vst [vmem:[#allocation2 + $0x8] sm:$0xff] %v611
        %628 = vst [vmem:[#allocation2 + $0x10] sm:$0xff] %v612
        %629 = vst [vmem:[#allocation2 + $0x18] sm:$0xff] %v613
        %630 = vst [vmem:[#allocation2 + $0x20] sm:$0xff] %v614
        %631 = vst [vmem:[#allocation2 + $0x28] sm:$0xff] %v615
        %632 = vst [vmem:[#allocation2 + $0x30] sm:$0xff] %v616
        %633 = vst [vmem:[#allocation2 + $0x38] sm:$0xff] %v617
        %634 = vst [vmem:[#allocation2 + $0x40] sm:$0xff] %v618
        %635 = vst [vmem:[#allocation2 + $0x48] sm:$0xff] %v619
        %636 = vst [vmem:[#allocation2 + $0x50] sm:$0xff] %v620
        %637 = vst [vmem:[#allocation2 + $0x58] sm:$0xff] %v621
        %638 = vst [vmem:[#allocation2 + $0x60] sm:$0xff] %v622
        %639 = vst [vmem:[#allocation2 + $0x68] sm:$0xff] %v623
        %640 = vst [vmem:[#allocation2 + $0x70] sm:$0xff] %v624
        %641 = vst [vmem:[#allocation2 + $0x78] sm:$0xff] %v625
        %v642 = vld [vmem:[%s1 + $0x80] sm:$0xff]
        %v643 = vld [vmem:[%s1 + $0x88] sm:$0xff]
        %v644 = vld [vmem:[%s1 + $0x90] sm:$0xff]
        %v645 = vld [vmem:[%s1 + $0x98] sm:$0xff]
        %v646 = vld [vmem:[%s1 + $0xa0] sm:$0xff]
        %v647 = vld [vmem:[%s1 + $0xa8] sm:$0xff]
        %v648 = vld [vmem:[%s1 + $0xb0] sm:$0xff]
        %v649 = vld [vmem:[%s1 + $0xb8] sm:$0xff]
        %v650 = vld [vmem:[%s1 + $0xc0] sm:$0xff]
        %v651 = vld [vmem:[%s1 + $0xc8] sm:$0xff]
        %v652 = vld [vmem:[%s1 + $0xd0] sm:$0xff]
        %v653 = vld [vmem:[%s1 + $0xd8] sm:$0xff]
        %v654 = vld [vmem:[%s1 + $0xe0] sm:$0xff]
        %v655 = vld [vmem:[%s1 + $0xe8] sm:$0xff]
        %v656 = vld [vmem:[%s1 + $0xf0] sm:$0xff]
        %v657 = vld [vmem:[%s1 + $0xf8] sm:$0xff]
        %v658 = vld [vmem:[%s199] sm:$0xff]
        %v659 = vld [vmem:[%s199 + $0x8] sm:$0xff]
        %v661 = vsel %vm376, %v642, 0
        %v664 = vsel %vm376, %v643, 0
        %v667 = vsel %vm376, %v644, 0
        %v670 = vsel %vm376, %v645, 0
        %v673 = vsel %vm376, %v646, 0
        %v676 = vsel %vm376, %v647, 0
        %v679 = vsel %vm376, %v648, 0
        %v682 = vsel %vm376, %v649, 0
        %v685 = vsel %vm376, %v650, 0
        %v688 = vsel %vm376, %v651, 0
        %v691 = vsel %vm376, %v652, 0
        %v694 = vsel %vm376, %v653, 0
        %v697 = vsel %vm376, %v654, 0
        %v700 = vsel %vm376, %v655, 0
        %v703 = vsel %vm376, %v656, 0
        %v706 = vsel %vm376, %v657, 0
        %708 = vmatprep.subr.mxu0 0.0
        %709 = vmatpush1.msra.mxu0 %v658
        %710 = vmatprep.subr.mxu0 0.0
        %711 = vmatpush1.msra.mxu0 %v659
        %712 = vmatprep.subr.mxu0 0.0
        %713 = vmatpush1.msra.mxu0 0.0
        %714 = vmatprep.subr.mxu0 0.0
        %715 = vmatpush1.msra.mxu0 0.0
        %716 = vmatprep.subr.mxu0 0.0
        %717 = vmatpush1.msra.mxu0 0.0
        %718 = vmatprep.subr.mxu0 0.0
        %719 = vmatpush1.msra.mxu0 0.0
        %720 = vmatprep.subr.mxu0 0.0
        %721 = vmatpush1.msra.mxu0 0.0
        %722 = vmatprep.subr.mxu0 0.0
        %723 = vmatpush1.msra.mxu0 0.0
        %724 = vmatprep.subr.mxu0 0.0
        %725 = vmatpush1.msra.mxu0 0.0
        %726 = vmatprep.subr.mxu0 0.0
        %727 = vmatpush1.msra.mxu0 0.0
        %728 = vmatprep.subr.mxu0 0.0
        %729 = vmatpush1.msra.mxu0 0.0
        %730 = vmatprep.subr.mxu0 0.0
        %731 = vmatpush1.msra.mxu0 0.0
        %732 = vmatprep.subr.mxu0 0.0
        %733 = vmatpush1.msra.mxu0 0.0
        %734 = vmatprep.subr.mxu0 0.0
        %735 = vmatpush1.msra.mxu0 0.0
        %736 = vmatprep.subr.mxu0 0.0
        %737 = vmatpush1.msra.mxu0 0.0
        %738 = vmatprep.subr.mxu0 0.0
        %739 = vmatpush1.msra.mxu0 0.0
        %740 = vmatprep.subr.mxu0 0.0
        %741 = vmatpush1.msra.mxu0 0.0
        %742 = vmatprep.subr.mxu0 0.0
        %743 = vmatpush1.msra.mxu0 0.0
        %744 = vmatprep.subr.mxu0 0.0
        %745 = vmatpush1.msra.mxu0 0.0
        %746 = vmatprep.subr.mxu0 0.0
        %747 = vmatpush1.msra.mxu0 0.0
        %748 = vmatprep.subr.mxu0 0.0
        %749 = vmatpush1.msra.mxu0 0.0
        %750 = vmatprep.subr.mxu0 0.0
        %751 = vmatpush1.msra.mxu0 0.0
        %752 = vmatprep.subr.mxu0 0.0
        %753 = vmatpush1.msra.mxu0 0.0
        %754 = vmatprep.subr.mxu0 0.0
        %755 = vmatpush1.msra.mxu0 0.0
        %756 = vmatprep.subr.mxu0 0.0
        %757 = vmatpush1.msra.mxu0 0.0
        %758 = vmatprep.subr.mxu0 0.0
        %759 = vmatpush1.msra.mxu0 0.0
        %760 = vmatprep.subr.mxu0 0.0
        %761 = vmatpush1.msra.mxu0 0.0
        %762 = vmatprep.subr.mxu0 0.0
        %763 = vmatpush1.msra.mxu0 0.0
        %764 = vmatprep.subr.mxu0 0.0
        %765 = vmatpush1.msra.mxu0 0.0
        %766 = vmatprep.subr.mxu0 0.0
        %767 = vmatpush1.msra.mxu0 0.0
        %768 = vmatprep.subr.mxu0 0.0
        %769 = vmatpush1.msra.mxu0 0.0
        %770 = vmatprep.subr.mxu0 0.0
        %771 = vmatpush1.msra.mxu0 0.0
        %772 = vmatprep.mubr.f32.mxu0 0.0
        %773 = vmatmul.mubr.f32.gmra.mrb[0].mxu0 %v661
        %v774 = vpop.f32.mrb[0].mxu0
        %v775 = vadd.f32 0.0, %v774
        %v776 = vpop.f32.mrb[0].mxu0
        %777 = vmatprep.mubr.f32.mxu0 0.0
        %778 = vmatmul.mubr.f32.gmra.mrb[0].mxu0 %v664
        %v779 = vpop.f32.mrb[0].mxu0
        %v780 = vadd.f32 0.0, %v779
        %v781 = vpop.f32.mrb[0].mxu0
        %782 = vmatprep.mubr.f32.mxu0 0.0
        %783 = vmatmul.mubr.f32.gmra.mrb[0].mxu0 %v667
        %v784 = vpop.f32.mrb[0].mxu0
        %v785 = vadd.f32 0.0, %v784
        %v786 = vpop.f32.mrb[0].mxu0
        %787 = vmatprep.mubr.f32.mxu0 0.0
        %788 = vmatmul.mubr.f32.gmra.mrb[0].mxu0 %v670
        %v789 = vpop.f32.mrb[0].mxu0
        %v790 = vadd.f32 0.0, %v789
        %v791 = vpop.f32.mrb[0].mxu0
        %792 = vmatprep.mubr.f32.mxu0 0.0
        %793 = vmatmul.mubr.f32.gmra.mrb[0].mxu0 %v673
        %v794 = vpop.f32.mrb[0].mxu0
        %v795 = vadd.f32 0.0, %v794
        %v796 = vpop.f32.mrb[0].mxu0
        %797 = vmatprep.mubr.f32.mxu0 0.0
        %798 = vmatmul.mubr.f32.gmra.mrb[0].mxu0 %v676
        %v799 = vpop.f32.mrb[0].mxu0
        %v800 = vadd.f32 0.0, %v799
        %v801 = vpop.f32.mrb[0].mxu0
        %802 = vmatprep.mubr.f32.mxu0 0.0
        %803 = vmatmul.mubr.f32.gmra.mrb[0].mxu0 %v679
        %v804 = vpop.f32.mrb[0].mxu0
        %v805 = vadd.f32 0.0, %v804
        %v806 = vpop.f32.mrb[0].mxu0
        %807 = vmatprep.mubr.f32.mxu0 0.0
        %808 = vmatmul.mubr.f32.gmra.mrb[0].mxu0 %v682
        %v809 = vpop.f32.mrb[0].mxu0
        %v810 = vadd.f32 0.0, %v809
        %v811 = vpop.f32.mrb[0].mxu0
        %812 = vmatprep.mubr.f32.mxu0 0.0
        %813 = vmatmul.mubr.f32.gmra.mrb[0].mxu0 %v685
        %v814 = vpop.f32.mrb[0].mxu0
        %v815 = vadd.f32 0.0, %v814
        %v816 = vpop.f32.mrb[0].mxu0
        %817 = vmatprep.mubr.f32.mxu0 0.0
        %818 = vmatmul.mubr.f32.gmra.mrb[0].mxu0 %v688
        %v819 = vpop.f32.mrb[0].mxu0
        %v820 = vadd.f32 0.0, %v819
        %v821 = vpop.f32.mrb[0].mxu0
        %822 = vmatprep.mubr.f32.mxu0 0.0
        %823 = vmatmul.mubr.f32.gmra.mrb[0].mxu0 %v691
        %v824 = vpop.f32.mrb[0].mxu0
        %v825 = vadd.f32 0.0, %v824
        %v826 = vpop.f32.mrb[0].mxu0
        %827 = vmatprep.mubr.f32.mxu0 0.0
        %828 = vmatmul.mubr.f32.gmra.mrb[0].mxu0 %v694
        %v829 = vpop.f32.mrb[0].mxu0
        %v830 = vadd.f32 0.0, %v829
        %v831 = vpop.f32.mrb[0].mxu0
        %832 = vmatprep.mubr.f32.mxu0 0.0
        %833 = vmatmul.mubr.f32.gmra.mrb[0].mxu0 %v697
        %v834 = vpop.f32.mrb[0].mxu0
        %v835 = vadd.f32 0.0, %v834
        %v836 = vpop.f32.mrb[0].mxu0
        %837 = vmatprep.mubr.f32.mxu0 0.0
        %838 = vmatmul.mubr.f32.gmra.mrb[0].mxu0 %v700
        %v839 = vpop.f32.mrb[0].mxu0
        %v840 = vadd.f32 0.0, %v839
        %v841 = vpop.f32.mrb[0].mxu0
        %842 = vmatprep.mubr.f32.mxu0 0.0
        %843 = vmatmul.mubr.f32.gmra.mrb[0].mxu0 %v703
        %v844 = vpop.f32.mrb[0].mxu0
        %v845 = vadd.f32 0.0, %v844
        %v846 = vpop.f32.mrb[0].mxu0
        %847 = vmatprep.mubr.f32.mxu0 0.0
        %848 = vmatmul.mubr.f32.gmra.mrb[0].mxu0 %v706
        %v849 = vpop.f32.mrb[0].mxu0
        %v850 = vadd.f32 0.0, %v849
        %v851 = vpop.f32.mrb[0].mxu0
        %852 = vdwg.mxu0
        %v853 = vsel %vm577, %v775, -inf
        %v854 = vsel %vm577, %v780, -inf
        %v855 = vsel %vm577, %v785, -inf
        %v856 = vsel %vm577, %v790, -inf
        %v857 = vsel %vm577, %v795, -inf
        %v858 = vsel %vm577, %v800, -inf
        %v859 = vsel %vm577, %v805, -inf
        %v860 = vsel %vm577, %v810, -inf
        %v861 = vsel %vm577, %v815, -inf
        %v862 = vsel %vm577, %v820, -inf
        %v863 = vsel %vm577, %v825, -inf
        %v864 = vsel %vm577, %v830, -inf
        %v865 = vsel %vm577, %v835, -inf
        %v866 = vsel %vm577, %v840, -inf
        %v867 = vsel %vm577, %v845, -inf
        %v868 = vsel %vm577, %v850, -inf
        %v869 = vld [vmem:[#allocation2 + $0x80] sm:$0xff]
        %v870 = vld [vmem:[#allocation2 + $0x88] sm:$0xff]
        %v871 = vld [vmem:[#allocation2 + $0x90] sm:$0xff]
        %v872 = vld [vmem:[#allocation2 + $0x98] sm:$0xff]
        %v873 = vld [vmem:[#allocation2 + $0xa0] sm:$0xff]
        %v874 = vld [vmem:[#allocation2 + $0xa8] sm:$0xff]
        %v875 = vld [vmem:[#allocation2 + $0xb0] sm:$0xff]
        %v876 = vld [vmem:[#allocation2 + $0xb8] sm:$0xff]
        %v877 = vld [vmem:[#allocation2 + $0xc0] sm:$0xff]
        %v878 = vld [vmem:[#allocation2 + $0xc8] sm:$0xff]
        %v879 = vld [vmem:[#allocation2 + $0xd0] sm:$0xff]
        %v880 = vld [vmem:[#allocation2 + $0xd8] sm:$0xff]
        %v881 = vld [vmem:[#allocation2 + $0xe0] sm:$0xff]
        %v882 = vld [vmem:[#allocation2 + $0xe8] sm:$0xff]
        %v883 = vld [vmem:[#allocation2 + $0xf0] sm:$0xff]
        %v884 = vld [vmem:[#allocation2 + $0xf8] sm:$0xff]
        %v885 = vmax.f32 %v869, %v853
        %v886 = vmax.f32 %v870, %v854
        %v887 = vmax.f32 %v871, %v855
        %v888 = vmax.f32 %v872, %v856
        %v889 = vmax.f32 %v873, %v857
        %v890 = vmax.f32 %v874, %v858
        %v891 = vmax.f32 %v875, %v859
        %v892 = vmax.f32 %v876, %v860
        %v893 = vmax.f32 %v877, %v861
        %v894 = vmax.f32 %v878, %v862
        %v895 = vmax.f32 %v879, %v863
        %v896 = vmax.f32 %v880, %v864
        %v897 = vmax.f32 %v881, %v865
        %v898 = vmax.f32 %v882, %v866
        %v899 = vmax.f32 %v883, %v867
        %v900 = vmax.f32 %v884, %v868
        %901 = vst [vmem:[#allocation2 + $0x80] sm:$0xff] %v885
        %902 = vst [vmem:[#allocation2 + $0x88] sm:$0xff] %v886
        %903 = vst [vmem:[#allocation2 + $0x90] sm:$0xff] %v887
        %904 = vst [vmem:[#allocation2 + $0x98] sm:$0xff] %v888
        %905 = vst [vmem:[#allocation2 + $0xa0] sm:$0xff] %v889
        %906 = vst [vmem:[#allocation2 + $0xa8] sm:$0xff] %v890
        %907 = vst [vmem:[#allocation2 + $0xb0] sm:$0xff] %v891
        %908 = vst [vmem:[#allocation2 + $0xb8] sm:$0xff] %v892
        %909 = vst [vmem:[#allocation2 + $0xc0] sm:$0xff] %v893
        %910 = vst [vmem:[#allocation2 + $0xc8] sm:$0xff] %v894
        %911 = vst [vmem:[#allocation2 + $0xd0] sm:$0xff] %v895
        %912 = vst [vmem:[#allocation2 + $0xd8] sm:$0xff] %v896
        %913 = vst [vmem:[#allocation2 + $0xe0] sm:$0xff] %v897
        %914 = vst [vmem:[#allocation2 + $0xe8] sm:$0xff] %v898
        %915 = vst [vmem:[#allocation2 + $0xf0] sm:$0xff] %v899
        %916 = vst [vmem:[#allocation2 + $0xf8] sm:$0xff] %v900
        %v917 = vld [vmem:[%s1 + $0x100] sm:$0xff]
        %v918 = vld [vmem:[%s1 + $0x108] sm:$0xff]
        %v919 = vld [vmem:[%s1 + $0x110] sm:$0xff]
        %v920 = vld [vmem:[%s1 + $0x118] sm:$0xff]
        %v921 = vld [vmem:[%s1 + $0x120] sm:$0xff]
        %v922 = vld [vmem:[%s1 + $0x128] sm:$0xff]
        %v923 = vld [vmem:[%s1 + $0x130] sm:$0xff]
        %v924 = vld [vmem:[%s1 + $0x138] sm:$0xff]
        %v925 = vld [vmem:[%s1 + $0x140] sm:$0xff]
        %v926 = vld [vmem:[%s1 + $0x148] sm:$0xff]
        %v927 = vld [vmem:[%s1 + $0x150] sm:$0xff]
        %v928 = vld [vmem:[%s1 + $0x158] sm:$0xff]
        %v929 = vld [vmem:[%s1 + $0x160] sm:$0xff]
        %v930 = vld [vmem:[%s1 + $0x168] sm:$0xff]
        %v931 = vld [vmem:[%s1 + $0x170] sm:$0xff]
        %v932 = vld [vmem:[%s1 + $0x178] sm:$0xff]
        %v933 = vld [vmem:[%s199] sm:$0xff]
        %v934 = vld [vmem:[%s199 + $0x8] sm:$0xff]
        %v936 = vsel %vm376, %v917, 0
        %v939 = vsel %vm376, %v918, 0
        %v942 = vsel %vm376, %v919, 0
        %v945 = vsel %vm376, %v920, 0
        %v948 = vsel %vm376, %v921, 0
        %v951 = vsel %vm376, %v922, 0
        %v954 = vsel %vm376, %v923, 0
        %v957 = vsel %vm376, %v924, 0
        %v960 = vsel %vm376, %v925, 0
        %v963 = vsel %vm376, %v926, 0
        %v966 = vsel %vm376, %v927, 0
        %v969 = vsel %vm376, %v928, 0
        %v972 = vsel %vm376, %v929, 0
        %v975 = vsel %vm376, %v930, 0
        %v978 = vsel %vm376, %v931, 0
        %v981 = vsel %vm376, %v932, 0
        %983 = vmatprep.subr.mxu0 0.0
        %984 = vmatpush1.msra.mxu0 %v933
        %985 = vmatprep.subr.mxu0 0.0
        %986 = vmatpush1.msra.mxu0 %v934
        %987 = vmatprep.subr.mxu0 0.0
        %988 = vmatpush1.msra.mxu0 0.0
        %989 = vmatprep.subr.mxu0 0.0
        %990 = vmatpush1.msra.mxu0 0.0
        %991 = vmatprep.subr.mxu0 0.0
        %992 = vmatpush1.msra.mxu0 0.0
        %993 = vmatprep.subr.mxu0 0.0
        %994 = vmatpush1.msra.mxu0 0.0
        %995 = vmatprep.subr.mxu0 0.0
        %996 = vmatpush1.msra.mxu0 0.0
        %997 = vmatprep.subr.mxu0 0.0
        %998 = vmatpush1.msra.mxu0 0.0
        %999 = vmatprep.subr.mxu0 0.0
        %1000 = vmatpush1.msra.mxu0 0.0
        %1001 = vmatprep.subr.mxu0 0.0
        %1002 = vmatpush1.msra.mxu0 0.0
        %1003 = vmatprep.subr.mxu0 0.0
        %1004 = vmatpush1.msra.mxu0 0.0
        %1005 = vmatprep.subr.mxu0 0.0
        %1006 = vmatpush1.msra.mxu0 0.0
        %1007 = vmatprep.subr.mxu0 0.0
        %1008 = vmatpush1.msra.mxu0 0.0
        %1009 = vmatprep.subr.mxu0 0.0
        %1010 = vmatpush1.msra.mxu0 0.0
        %1011 = vmatprep.subr.mxu0 0.0
        %1012 = vmatpush1.msra.mxu0 0.0
        %1013 = vmatprep.subr.mxu0 0.0
        %1014 = vmatpush1.msra.mxu0 0.0
        %1015 = vmatprep.subr.mxu0 0.0
        %1016 = vmatpush1.msra.mxu0 0.0
        %1017 = vmatprep.subr.mxu0 0.0
        %1018 = vmatpush1.msra.mxu0 0.0
        %1019 = vmatprep.subr.mxu0 0.0
        %1020 = vmatpush1.msra.mxu0 0.0
        %1021 = vmatprep.subr.mxu0 0.0
        %1022 = vmatpush1.msra.mxu0 0.0
        %1023 = vmatprep.subr.mxu0 0.0
        %1024 = vmatpush1.msra.mxu0 0.0
        %1025 = vmatprep.subr.mxu0 0.0
        %1026 = vmatpush1.msra.mxu0 0.0
        %1027 = vmatprep.subr.mxu0 0.0
        %1028 = vmatpush1.msra.mxu0 0.0
        %1029 = vmatprep.subr.mxu0 0.0
        %1030 = vmatpush1.msra.mxu0 0.0
        %1031 = vmatprep.subr.mxu0 0.0
        %1032 = vmatpush1.msra.mxu0 0.0
        %1033 = vmatprep.subr.mxu0 0.0
        %1034 = vmatpush1.msra.mxu0 0.0
        %1035 = vmatprep.subr.mxu0 0.0
        %1036 = vmatpush1.msra.mxu0 0.0
        %1037 = vmatprep.subr.mxu0 0.0
        %1038 = vmatpush1.msra.mxu0 0.0
        %1039 = vmatprep.subr.mxu0 0.0
        %1040 = vmatpush1.msra.mxu0 0.0
        %1041 = vmatprep.subr.mxu0 0.0
        %1042 = vmatpush1.msra.mxu0 0.0
        %1043 = vmatprep.subr.mxu0 0.0
        %1044 = vmatpush1.msra.mxu0 0.0
        %1045 = vmatprep.subr.mxu0 0.0
        %1046 = vmatpush1.msra.mxu0 0.0
        %1047 = vmatprep.mubr.f32.mxu0 0.0
        %1048 = vmatmul.mubr.f32.gmra.mrb[0].mxu0 %v936
        %v1049 = vpop.f32.mrb[0].mxu0
        %v1050 = vadd.f32 0.0, %v1049
        %v1051 = vpop.f32.mrb[0].mxu0
        %1052 = vmatprep.mubr.f32.mxu0 0.0
        %1053 = vmatmul.mubr.f32.gmra.mrb[0].mxu0 %v939
        %v1054 = vpop.f32.mrb[0].mxu0
        %v1055 = vadd.f32 0.0, %v1054
        %v1056 = vpop.f32.mrb[0].mxu0
        %1057 = vmatprep.mubr.f32.mxu0 0.0
        %1058 = vmatmul.mubr.f32.gmra.mrb[0].mxu0 %v942
        %v1059 = vpop.f32.mrb[0].mxu0
        %v1060 = vadd.f32 0.0, %v1059
        %v1061 = vpop.f32.mrb[0].mxu0
        %1062 = vmatprep.mubr.f32.mxu0 0.0
        %1063 = vmatmul.mubr.f32.gmra.mrb[0].mxu0 %v945
        %v1064 = vpop.f32.mrb[0].mxu0
        %v1065 = vadd.f32 0.0, %v1064
        %v1066 = vpop.f32.mrb[0].mxu0
        %1067 = vmatprep.mubr.f32.mxu0 0.0
        %1068 = vmatmul.mubr.f32.gmra.mrb[0].mxu0 %v948
        %v1069 = vpop.f32.mrb[0].mxu0
        %v1070 = vadd.f32 0.0, %v1069
        %v1071 = vpop.f32.mrb[0].mxu0
        %1072 = vmatprep.mubr.f32.mxu0 0.0
        %1073 = vmatmul.mubr.f32.gmra.mrb[0].mxu0 %v951
        %v1074 = vpop.f32.mrb[0].mxu0
        %v1075 = vadd.f32 0.0, %v1074
        %v1076 = vpop.f32.mrb[0].mxu0
        %1077 = vmatprep.mubr.f32.mxu0 0.0
        %1078 = vmatmul.mubr.f32.gmra.mrb[0].mxu0 %v954
        %v1079 = vpop.f32.mrb[0].mxu0
        %v1080 = vadd.f32 0.0, %v1079
        %v1081 = vpop.f32.mrb[0].mxu0
        %1082 = vmatprep.mubr.f32.mxu0 0.0
        %1083 = vmatmul.mubr.f32.gmra.mrb[0].mxu0 %v957
        %v1084 = vpop.f32.mrb[0].mxu0
        %v1085 = vadd.f32 0.0, %v1084
        %v1086 = vpop.f32.mrb[0].mxu0
        %1087 = vmatprep.mubr.f32.mxu0 0.0
        %1088 = vmatmul.mubr.f32.gmra.mrb[0].mxu0 %v960
        %v1089 = vpop.f32.mrb[0].mxu0
        %v1090 = vadd.f32 0.0, %v1089
        %v1091 = vpop.f32.mrb[0].mxu0
        %1092 = vmatprep.mubr.f32.mxu0 0.0
        %1093 = vmatmul.mubr.f32.gmra.mrb[0].mxu0 %v963
        %v1094 = vpop.f32.mrb[0].mxu0
        %v1095 = vadd.f32 0.0, %v1094
        %v1096 = vpop.f32.mrb[0].mxu0
        %1097 = vmatprep.mubr.f32.mxu0 0.0
        %1098 = vmatmul.mubr.f32.gmra.mrb[0].mxu0 %v966
        %v1099 = vpop.f32.mrb[0].mxu0
        %v1100 = vadd.f32 0.0, %v1099
        %v1101 = vpop.f32.mrb[0].mxu0
        %1102 = vmatprep.mubr.f32.mxu0 0.0
        %1103 = vmatmul.mubr.f32.gmra.mrb[0].mxu0 %v969
        %v1104 = vpop.f32.mrb[0].mxu0
        %v1105 = vadd.f32 0.0, %v1104
        %v1106 = vpop.f32.mrb[0].mxu0
        %1107 = vmatprep.mubr.f32.mxu0 0.0
        %1108 = vmatmul.mubr.f32.gmra.mrb[0].mxu0 %v972
        %v1109 = vpop.f32.mrb[0].mxu0
        %v1110 = vadd.f32 0.0, %v1109
        %v1111 = vpop.f32.mrb[0].mxu0
        %1112 = vmatprep.mubr.f32.mxu0 0.0
        %1113 = vmatmul.mubr.f32.gmra.mrb[0].mxu0 %v975
        %v1114 = vpop.f32.mrb[0].mxu0
        %v1115 = vadd.f32 0.0, %v1114
        %v1116 = vpop.f32.mrb[0].mxu0
        %1117 = vmatprep.mubr.f32.mxu0 0.0
        %1118 = vmatmul.mubr.f32.gmra.mrb[0].mxu0 %v978
        %v1119 = vpop.f32.mrb[0].mxu0
        %v1120 = vadd.f32 0.0, %v1119
        %v1121 = vpop.f32.mrb[0].mxu0
        %1122 = vmatprep.mubr.f32.mxu0 0.0
        %1123 = vmatmul.mubr.f32.gmra.mrb[0].mxu0 %v981
        %v1124 = vpop.f32.mrb[0].mxu0
        %v1125 = vadd.f32 0.0, %v1124
        %v1126 = vpop.f32.mrb[0].mxu0
        %1127 = vdwg.mxu0
        %v1128 = vsel %vm577, %v1050, -inf
        %v1129 = vsel %vm577, %v1055, -inf
        %v1130 = vsel %vm577, %v1060, -inf
        %v1131 = vsel %vm577, %v1065, -inf
        %v1132 = vsel %vm577, %v1070, -inf
        %v1133 = vsel %vm577, %v1075, -inf
        %v1134 = vsel %vm577, %v1080, -inf
        %v1135 = vsel %vm577, %v1085, -inf
        %v1136 = vsel %vm577, %v1090, -inf
        %v1137 = vsel %vm577, %v1095, -inf
        %v1138 = vsel %vm577, %v1100, -inf
        %v1139 = vsel %vm577, %v1105, -inf
        %v1140 = vsel %vm577, %v1110, -inf
        %v1141 = vsel %vm577, %v1115, -inf
        %v1142 = vsel %vm577, %v1120, -inf
        %v1143 = vsel %vm577, %v1125, -inf
        %v1144 = vld [vmem:[#allocation2 + $0x100] sm:$0xff]
        %v1145 = vld [vmem:[#allocation2 + $0x108] sm:$0xff]
        %v1146 = vld [vmem:[#allocation2 + $0x110] sm:$0xff]
        %v1147 = vld [vmem:[#allocation2 + $0x118] sm:$0xff]
        %v1148 = vld [vmem:[#allocation2 + $0x120] sm:$0xff]
        %v1149 = vld [vmem:[#allocation2 + $0x128] sm:$0xff]
        %v1150 = vld [vmem:[#allocation2 + $0x130] sm:$0xff]
        %v1151 = vld [vmem:[#allocation2 + $0x138] sm:$0xff]
        %v1152 = vld [vmem:[#allocation2 + $0x140] sm:$0xff]
        %v1153 = vld [vmem:[#allocation2 + $0x148] sm:$0xff]
        %v1154 = vld [vmem:[#allocation2 + $0x150] sm:$0xff]
        %v1155 = vld [vmem:[#allocation2 + $0x158] sm:$0xff]
        %v1156 = vld [vmem:[#allocation2 + $0x160] sm:$0xff]
        %v1157 = vld [vmem:[#allocation2 + $0x168] sm:$0xff]
        %v1158 = vld [vmem:[#allocation2 + $0x170] sm:$0xff]
        %v1159 = vld [vmem:[#allocation2 + $0x178] sm:$0xff]
        %v1160 = vmax.f32 %v1144, %v1128
        %v1161 = vmax.f32 %v1145, %v1129
        %v1162 = vmax.f32 %v1146, %v1130
        %v1163 = vmax.f32 %v1147, %v1131
        %v1164 = vmax.f32 %v1148, %v1132
        %v1165 = vmax.f32 %v1149, %v1133
        %v1166 = vmax.f32 %v1150, %v1134
        %v1167 = vmax.f32 %v1151, %v1135
        %v1168 = vmax.f32 %v1152, %v1136
        %v1169 = vmax.f32 %v1153, %v1137
        %v1170 = vmax.f32 %v1154, %v1138
        %v1171 = vmax.f32 %v1155, %v1139
        %v1172 = vmax.f32 %v1156, %v1140
        %v1173 = vmax.f32 %v1157, %v1141
        %v1174 = vmax.f32 %v1158, %v1142
        %v1175 = vmax.f32 %v1159, %v1143
        %1176 = vst [vmem:[#allocation2 + $0x100] sm:$0xff] %v1160
        %1177 = vst [vmem:[#allocation2 + $0x108] sm:$0xff] %v1161
        %1178 = vst [vmem:[#allocation2 + $0x110] sm:$0xff] %v1162
        %1179 = vst [vmem:[#allocation2 + $0x118] sm:$0xff] %v1163
        %1180 = vst [vmem:[#allocation2 + $0x120] sm:$0xff] %v1164
        %1181 = vst [vmem:[#allocation2 + $0x128] sm:$0xff] %v1165
        %1182 = vst [vmem:[#allocation2 + $0x130] sm:$0xff] %v1166
        %1183 = vst [vmem:[#allocation2 + $0x138] sm:$0xff] %v1167
        %1184 = vst [vmem:[#allocation2 + $0x140] sm:$0xff] %v1168
        %1185 = vst [vmem:[#allocation2 + $0x148] sm:$0xff] %v1169
        %1186 = vst [vmem:[#allocation2 + $0x150] sm:$0xff] %v1170
        %1187 = vst [vmem:[#allocation2 + $0x158] sm:$0xff] %v1171
        %1188 = vst [vmem:[#allocation2 + $0x160] sm:$0xff] %v1172
        %1189 = vst [vmem:[#allocation2 + $0x168] sm:$0xff] %v1173
        %1190 = vst [vmem:[#allocation2 + $0x170] sm:$0xff] %v1174
        %1191 = vst [vmem:[#allocation2 + $0x178] sm:$0xff] %v1175
        %v1192 = vld [vmem:[%s1 + $0x180] sm:$0xff]
        %v1193 = vld [vmem:[%s1 + $0x188] sm:$0xff]
        %v1194 = vld [vmem:[%s1 + $0x190] sm:$0xff]
        %v1195 = vld [vmem:[%s1 + $0x198] sm:$0xff]
        %v1196 = vld [vmem:[%s1 + $0x1a0] sm:$0xff]
        %v1197 = vld [vmem:[%s1 + $0x1a8] sm:$0xff]
        %v1198 = vld [vmem:[%s1 + $0x1b0] sm:$0xff]
        %v1199 = vld [vmem:[%s1 + $0x1b8] sm:$0xff]
        %v1200 = vld [vmem:[%s1 + $0x1c0] sm:$0xff]
        %v1201 = vld [vmem:[%s1 + $0x1c8] sm:$0xff]
        %v1202 = vld [vmem:[%s1 + $0x1d0] sm:$0xff]
        %v1203 = vld [vmem:[%s1 + $0x1d8] sm:$0xff]
        %v1204 = vld [vmem:[%s1 + $0x1e0] sm:$0xff]
        %v1205 = vld [vmem:[%s1 + $0x1e8] sm:$0xff]
        %v1206 = vld [vmem:[%s1 + $0x1f0] sm:$0xff]
        %v1207 = vld [vmem:[%s1 + $0x1f8] sm:$0xff]
        %v1208 = vld [vmem:[%s199] sm:$0xff]
        %v1209 = vld [vmem:[%s199 + $0x8] sm:$0xff]
        %v1211 = vsel %vm376, %v1192, 0
        %v1214 = vsel %vm376, %v1193, 0
        %v1217 = vsel %vm376, %v1194, 0
        %v1220 = vsel %vm376, %v1195, 0
        %v1223 = vsel %vm376, %v1196, 0
        %v1226 = vsel %vm376, %v1197, 0
        %v1229 = vsel %vm376, %v1198, 0
        %v1232 = vsel %vm376, %v1199, 0
        %v1235 = vsel %vm376, %v1200, 0
        %v1238 = vsel %vm376, %v1201, 0
        %v1241 = vsel %vm376, %v1202, 0
        %v1244 = vsel %vm376, %v1203, 0
        %v1247 = vsel %vm376, %v1204, 0
        %v1250 = vsel %vm376, %v1205, 0
        %v1253 = vsel %vm376, %v1206, 0
        %v1256 = vsel %vm376, %v1207, 0
        %1258 = vmatprep.subr.mxu0 0.0
        %1259 = vmatpush1.msra.mxu0 %v1208
        %1260 = vmatprep.subr.mxu0 0.0
        %1261 = vmatpush1.msra.mxu0 %v1209
        %1262 = vmatprep.subr.mxu0 0.0
        %1263 = vmatpush1.msra.mxu0 0.0
        %1264 = vmatprep.subr.mxu0 0.0
        %1265 = vmatpush1.msra.mxu0 0.0
        %1266 = vmatprep.subr.mxu0 0.0
        %1267 = vmatpush1.msra.mxu0 0.0
        %1268 = vmatprep.subr.mxu0 0.0
        %1269 = vmatpush1.msra.mxu0 0.0
        %1270 = vmatprep.subr.mxu0 0.0
        %1271 = vmatpush1.msra.mxu0 0.0
        %1272 = vmatprep.subr.mxu0 0.0
        %1273 = vmatpush1.msra.mxu0 0.0
        %1274 = vmatprep.subr.mxu0 0.0
        %1275 = vmatpush1.msra.mxu0 0.0
        %1276 = vmatprep.subr.mxu0 0.0
        %1277 = vmatpush1.msra.mxu0 0.0
        %1278 = vmatprep.subr.mxu0 0.0
        %1279 = vmatpush1.msra.mxu0 0.0
        %1280 = vmatprep.subr.mxu0 0.0
        %1281 = vmatpush1.msra.mxu0 0.0
        %1282 = vmatprep.subr.mxu0 0.0
        %1283 = vmatpush1.msra.mxu0 0.0
        %1284 = vmatprep.subr.mxu0 0.0
        %1285 = vmatpush1.msra.mxu0 0.0
        %1286 = vmatprep.subr.mxu0 0.0
        %1287 = vmatpush1.msra.mxu0 0.0
        %1288 = vmatprep.subr.mxu0 0.0
        %1289 = vmatpush1.msra.mxu0 0.0
        %1290 = vmatprep.subr.mxu0 0.0
        %1291 = vmatpush1.msra.mxu0 0.0
        %1292 = vmatprep.subr.mxu0 0.0
        %1293 = vmatpush1.msra.mxu0 0.0
        %1294 = vmatprep.subr.mxu0 0.0
        %1295 = vmatpush1.msra.mxu0 0.0
        %1296 = vmatprep.subr.mxu0 0.0
        %1297 = vmatpush1.msra.mxu0 0.0
        %1298 = vmatprep.subr.mxu0 0.0
        %1299 = vmatpush1.msra.mxu0 0.0
        %1300 = vmatprep.subr.mxu0 0.0
        %1301 = vmatpush1.msra.mxu0 0.0
        %1302 = vmatprep.subr.mxu0 0.0
        %1303 = vmatpush1.msra.mxu0 0.0
        %1304 = vmatprep.subr.mxu0 0.0
        %1305 = vmatpush1.msra.mxu0 0.0
        %1306 = vmatprep.subr.mxu0 0.0
        %1307 = vmatpush1.msra.mxu0 0.0
        %1308 = vmatprep.subr.mxu0 0.0
        %1309 = vmatpush1.msra.mxu0 0.0
        %1310 = vmatprep.subr.mxu0 0.0
        %1311 = vmatpush1.msra.mxu0 0.0
        %1312 = vmatprep.subr.mxu0 0.0
        %1313 = vmatpush1.msra.mxu0 0.0
        %1314 = vmatprep.subr.mxu0 0.0
        %1315 = vmatpush1.msra.mxu0 0.0
        %1316 = vmatprep.subr.mxu0 0.0
        %1317 = vmatpush1.msra.mxu0 0.0
        %1318 = vmatprep.subr.mxu0 0.0
        %1319 = vmatpush1.msra.mxu0 0.0
        %1320 = vmatprep.subr.mxu0 0.0
        %1321 = vmatpush1.msra.mxu0 0.0
        %1322 = vmatprep.mubr.f32.mxu0 0.0
        %1323 = vmatmul.mubr.f32.gmra.mrb[0].mxu0 %v1211
        %v1324 = vpop.f32.mrb[0].mxu0
        %v1325 = vadd.f32 0.0, %v1324
        %v1326 = vpop.f32.mrb[0].mxu0
        %1327 = vmatprep.mubr.f32.mxu0 0.0
        %1328 = vmatmul.mubr.f32.gmra.mrb[0].mxu0 %v1214
        %v1329 = vpop.f32.mrb[0].mxu0
        %v1330 = vadd.f32 0.0, %v1329
        %v1331 = vpop.f32.mrb[0].mxu0
        %1332 = vmatprep.mubr.f32.mxu0 0.0
        %1333 = vmatmul.mubr.f32.gmra.mrb[0].mxu0 %v1217
        %v1334 = vpop.f32.mrb[0].mxu0
        %v1335 = vadd.f32 0.0, %v1334
        %v1336 = vpop.f32.mrb[0].mxu0
        %1337 = vmatprep.mubr.f32.mxu0 0.0
        %1338 = vmatmul.mubr.f32.gmra.mrb[0].mxu0 %v1220
        %v1339 = vpop.f32.mrb[0].mxu0
        %v1340 = vadd.f32 0.0, %v1339
        %v1341 = vpop.f32.mrb[0].mxu0
        %1342 = vmatprep.mubr.f32.mxu0 0.0
        %1343 = vmatmul.mubr.f32.gmra.mrb[0].mxu0 %v1223
        %v1344 = vpop.f32.mrb[0].mxu0
        %v1345 = vadd.f32 0.0, %v1344
        %v1346 = vpop.f32.mrb[0].mxu0
        %1347 = vmatprep.mubr.f32.mxu0 0.0
        %1348 = vmatmul.mubr.f32.gmra.mrb[0].mxu0 %v1226
        %v1349 = vpop.f32.mrb[0].mxu0
        %v1350 = vadd.f32 0.0, %v1349
        %v1351 = vpop.f32.mrb[0].mxu0
        %1352 = vmatprep.mubr.f32.mxu0 0.0
        %1353 = vmatmul.mubr.f32.gmra.mrb[0].mxu0 %v1229
        %v1354 = vpop.f32.mrb[0].mxu0
        %v1355 = vadd.f32 0.0, %v1354
        %v1356 = vpop.f32.mrb[0].mxu0
        %1357 = vmatprep.mubr.f32.mxu0 0.0
        %1358 = vmatmul.mubr.f32.gmra.mrb[0].mxu0 %v1232
        %v1359 = vpop.f32.mrb[0].mxu0
        %v1360 = vadd.f32 0.0, %v1359
        %v1361 = vpop.f32.mrb[0].mxu0
        %1362 = vmatprep.mubr.f32.mxu0 0.0
        %1363 = vmatmul.mubr.f32.gmra.mrb[0].mxu0 %v1235
        %v1364 = vpop.f32.mrb[0].mxu0
        %v1365 = vadd.f32 0.0, %v1364
        %v1366 = vpop.f32.mrb[0].mxu0
        %1367 = vmatprep.mubr.f32.mxu0 0.0
        %1368 = vmatmul.mubr.f32.gmra.mrb[0].mxu0 %v1238
        %v1369 = vpop.f32.mrb[0].mxu0
        %v1370 = vadd.f32 0.0, %v1369
        %v1371 = vpop.f32.mrb[0].mxu0
        %1372 = vmatprep.mubr.f32.mxu0 0.0
        %1373 = vmatmul.mubr.f32.gmra.mrb[0].mxu0 %v1241
        %v1374 = vpop.f32.mrb[0].mxu0
        %v1375 = vadd.f32 0.0, %v1374
        %v1376 = vpop.f32.mrb[0].mxu0
        %1377 = vmatprep.mubr.f32.mxu0 0.0
        %1378 = vmatmul.mubr.f32.gmra.mrb[0].mxu0 %v1244
        %v1379 = vpop.f32.mrb[0].mxu0
        %v1380 = vadd.f32 0.0, %v1379
        %v1381 = vpop.f32.mrb[0].mxu0
        %1382 = vmatprep.mubr.f32.mxu0 0.0
        %1383 = vmatmul.mubr.f32.gmra.mrb[0].mxu0 %v1247
        %v1384 = vpop.f32.mrb[0].mxu0
        %v1385 = vadd.f32 0.0, %v1384
        %v1386 = vpop.f32.mrb[0].mxu0
        %1387 = vmatprep.mubr.f32.mxu0 0.0
        %1388 = vmatmul.mubr.f32.gmra.mrb[0].mxu0 %v1250
        %v1389 = vpop.f32.mrb[0].mxu0
        %v1390 = vadd.f32 0.0, %v1389
        %v1391 = vpop.f32.mrb[0].mxu0
        %1392 = vmatprep.mubr.f32.mxu0 0.0
        %1393 = vmatmul.mubr.f32.gmra.mrb[0].mxu0 %v1253
        %v1394 = vpop.f32.mrb[0].mxu0
        %v1395 = vadd.f32 0.0, %v1394
        %v1396 = vpop.f32.mrb[0].mxu0
        %1397 = vmatprep.mubr.f32.mxu0 0.0
        %1398 = vmatmul.mubr.f32.gmra.mrb[0].mxu0 %v1256
        %v1399 = vpop.f32.mrb[0].mxu0
        %v1400 = vadd.f32 0.0, %v1399
        %v1401 = vpop.f32.mrb[0].mxu0
        %1402 = vdwg.mxu0
        %v1403 = vsel %vm577, %v1325, -inf
        %v1404 = vsel %vm577, %v1330, -inf
        %v1405 = vsel %vm577, %v1335, -inf
        %v1406 = vsel %vm577, %v1340, -inf
        %v1407 = vsel %vm577, %v1345, -inf
        %v1408 = vsel %vm577, %v1350, -inf
        %v1409 = vsel %vm577, %v1355, -inf
        %v1410 = vsel %vm577, %v1360, -inf
        %v1411 = vsel %vm577, %v1365, -inf
        %v1412 = vsel %vm577, %v1370, -inf
        %v1413 = vsel %vm577, %v1375, -inf
        %v1414 = vsel %vm577, %v1380, -inf
        %v1415 = vsel %vm577, %v1385, -inf
        %v1416 = vsel %vm577, %v1390, -inf
        %v1417 = vsel %vm577, %v1395, -inf
        %v1418 = vsel %vm577, %v1400, -inf
        %v1419 = vld [vmem:[#allocation2 + $0x180] sm:$0xff]
        %v1420 = vld [vmem:[#allocation2 + $0x188] sm:$0xff]
        %v1421 = vld [vmem:[#allocation2 + $0x190] sm:$0xff]
        %v1422 = vld [vmem:[#allocation2 + $0x198] sm:$0xff]
        %v1423 = vld [vmem:[#allocation2 + $0x1a0] sm:$0xff]
        %v1424 = vld [vmem:[#allocation2 + $0x1a8] sm:$0xff]
        %v1425 = vld [vmem:[#allocation2 + $0x1b0] sm:$0xff]
        %v1426 = vld [vmem:[#allocation2 + $0x1b8] sm:$0xff]
        %v1427 = vld [vmem:[#allocation2 + $0x1c0] sm:$0xff]
        %v1428 = vld [vmem:[#allocation2 + $0x1c8] sm:$0xff]
        %v1429 = vld [vmem:[#allocation2 + $0x1d0] sm:$0xff]
        %v1430 = vld [vmem:[#allocation2 + $0x1d8] sm:$0xff]
        %v1431 = vld [vmem:[#allocation2 + $0x1e0] sm:$0xff]
        %v1432 = vld [vmem:[#allocation2 + $0x1e8] sm:$0xff]
        %v1433 = vld [vmem:[#allocation2 + $0x1f0] sm:$0xff]
        %v1434 = vld [vmem:[#allocation2 + $0x1f8] sm:$0xff]
        %v1435 = vmax.f32 %v1419, %v1403
        %v1436 = vmax.f32 %v1420, %v1404
        %v1437 = vmax.f32 %v1421, %v1405
        %v1438 = vmax.f32 %v1422, %v1406
        %v1439 = vmax.f32 %v1423, %v1407
        %v1440 = vmax.f32 %v1424, %v1408
        %v1441 = vmax.f32 %v1425, %v1409
        %v1442 = vmax.f32 %v1426, %v1410
        %v1443 = vmax.f32 %v1427, %v1411
        %v1444 = vmax.f32 %v1428, %v1412
        %v1445 = vmax.f32 %v1429, %v1413
        %v1446 = vmax.f32 %v1430, %v1414
        %v1447 = vmax.f32 %v1431, %v1415
        %v1448 = vmax.f32 %v1432, %v1416
        %v1449 = vmax.f32 %v1433, %v1417
        %v1450 = vmax.f32 %v1434, %v1418
        %1451 = vst [vmem:[#allocation2 + $0x180] sm:$0xff] %v1435
        %1452 = vst [vmem:[#allocation2 + $0x188] sm:$0xff] %v1436
        %1453 = vst [vmem:[#allocation2 + $0x190] sm:$0xff] %v1437
        %1454 = vst [vmem:[#allocation2 + $0x198] sm:$0xff] %v1438
        %1455 = vst [vmem:[#allocation2 + $0x1a0] sm:$0xff] %v1439
        %1456 = vst [vmem:[#allocation2 + $0x1a8] sm:$0xff] %v1440
        %1457 = vst [vmem:[#allocation2 + $0x1b0] sm:$0xff] %v1441
        %1458 = vst [vmem:[#allocation2 + $0x1b8] sm:$0xff] %v1442
        %1459 = vst [vmem:[#allocation2 + $0x1c0] sm:$0xff] %v1443
        %1460 = vst [vmem:[#allocation2 + $0x1c8] sm:$0xff] %v1444
        %1461 = vst [vmem:[#allocation2 + $0x1d0] sm:$0xff] %v1445
        %1462 = vst [vmem:[#allocation2 + $0x1d8] sm:$0xff] %v1446
        %1463 = vst [vmem:[#allocation2 + $0x1e0] sm:$0xff] %v1447
        %1464 = vst [vmem:[#allocation2 + $0x1e8] sm:$0xff] %v1448
        %1465 = vst [vmem:[#allocation2 + $0x1f0] sm:$0xff] %v1449
        %1466 = vst [vmem:[#allocation2 + $0x1f8] sm:$0xff] %v1450
        %v1467 = vld [vmem:[%s1 + $0x200] sm:$0xff]
        %v1468 = vld [vmem:[%s1 + $0x208] sm:$0xff]
        %v1469 = vld [vmem:[%s1 + $0x210] sm:$0xff]
        %v1470 = vld [vmem:[%s1 + $0x218] sm:$0xff]
        %v1471 = vld [vmem:[%s1 + $0x220] sm:$0xff]
        %v1472 = vld [vmem:[%s1 + $0x228] sm:$0xff]
        %v1473 = vld [vmem:[%s1 + $0x230] sm:$0xff]
        %v1474 = vld [vmem:[%s1 + $0x238] sm:$0xff]
        %v1475 = vld [vmem:[%s1 + $0x240] sm:$0xff]
        %v1476 = vld [vmem:[%s1 + $0x248] sm:$0xff]
        %v1477 = vld [vmem:[%s1 + $0x250] sm:$0xff]
        %v1478 = vld [vmem:[%s1 + $0x258] sm:$0xff]
        %v1479 = vld [vmem:[%s1 + $0x260] sm:$0xff]
        %v1480 = vld [vmem:[%s1 + $0x268] sm:$0xff]
        %v1481 = vld [vmem:[%s1 + $0x270] sm:$0xff]
        %v1482 = vld [vmem:[%s1 + $0x278] sm:$0xff]
        %v1483 = vld [vmem:[%s199] sm:$0xff]
        %v1484 = vld [vmem:[%s199 + $0x8] sm:$0xff]
        %v1486 = vsel %vm376, %v1467, 0
        %v1489 = vsel %vm376, %v1468, 0
        %v1492 = vsel %vm376, %v1469, 0
        %v1495 = vsel %vm376, %v1470, 0
        %v1498 = vsel %vm376, %v1471, 0
        %v1501 = vsel %vm376, %v1472, 0
        %v1504 = vsel %vm376, %v1473, 0
        %v1507 = vsel %vm376, %v1474, 0
        %v1510 = vsel %vm376, %v1475, 0
        %v1513 = vsel %vm376, %v1476, 0
        %v1516 = vsel %vm376, %v1477, 0
        %v1519 = vsel %vm376, %v1478, 0
        %v1522 = vsel %vm376, %v1479, 0
        %v1525 = vsel %vm376, %v1480, 0
        %v1528 = vsel %vm376, %v1481, 0
        %v1531 = vsel %vm376, %v1482, 0
        %1533 = vmatprep.subr.mxu0 0.0
        %1534 = vmatpush1.msra.mxu0 %v1483
        %1535 = vmatprep.subr.mxu0 0.0
        %1536 = vmatpush1.msra.mxu0 %v1484
        %1537 = vmatprep.subr.mxu0 0.0
        %1538 = vmatpush1.msra.mxu0 0.0
        %1539 = vmatprep.subr.mxu0 0.0
        %1540 = vmatpush1.msra.mxu0 0.0
        %1541 = vmatprep.subr.mxu0 0.0
        %1542 = vmatpush1.msra.mxu0 0.0
        %1543 = vmatprep.subr.mxu0 0.0
        %1544 = vmatpush1.msra.mxu0 0.0
        %1545 = vmatprep.subr.mxu0 0.0
        %1546 = vmatpush1.msra.mxu0 0.0
        %1547 = vmatprep.subr.mxu0 0.0
        %1548 = vmatpush1.msra.mxu0 0.0
        %1549 = vmatprep.subr.mxu0 0.0
        %1550 = vmatpush1.msra.mxu0 0.0
        %1551 = vmatprep.subr.mxu0 0.0
        %1552 = vmatpush1.msra.mxu0 0.0
        %1553 = vmatprep.subr.mxu0 0.0
        %1554 = vmatpush1.msra.mxu0 0.0
        %1555 = vmatprep.subr.mxu0 0.0
        %1556 = vmatpush1.msra.mxu0 0.0
        %1557 = vmatprep.subr.mxu0 0.0
        %1558 = vmatpush1.msra.mxu0 0.0
        %1559 = vmatprep.subr.mxu0 0.0
        %1560 = vmatpush1.msra.mxu0 0.0
        %1561 = vmatprep.subr.mxu0 0.0
        %1562 = vmatpush1.msra.mxu0 0.0
        %1563 = vmatprep.subr.mxu0 0.0
        %1564 = vmatpush1.msra.mxu0 0.0
        %1565 = vmatprep.subr.mxu0 0.0
        %1566 = vmatpush1.msra.mxu0 0.0
        %1567 = vmatprep.subr.mxu0 0.0
        %1568 = vmatpush1.msra.mxu0 0.0
        %1569 = vmatprep.subr.mxu0 0.0
        %1570 = vmatpush1.msra.mxu0 0.0
        %1571 = vmatprep.subr.mxu0 0.0
        %1572 = vmatpush1.msra.mxu0 0.0
        %1573 = vmatprep.subr.mxu0 0.0
        %1574 = vmatpush1.msra.mxu0 0.0
        %1575 = vmatprep.subr.mxu0 0.0
        %1576 = vmatpush1.msra.mxu0 0.0
        %1577 = vmatprep.subr.mxu0 0.0
        %1578 = vmatpush1.msra.mxu0 0.0
        %1579 = vmatprep.subr.mxu0 0.0
        %1580 = vmatpush1.msra.mxu0 0.0
        %1581 = vmatprep.subr.mxu0 0.0
        %1582 = vmatpush1.msra.mxu0 0.0
        %1583 = vmatprep.subr.mxu0 0.0
        %1584 = vmatpush1.msra.mxu0 0.0
        %1585 = vmatprep.subr.mxu0 0.0
        %1586 = vmatpush1.msra.mxu0 0.0
        %1587 = vmatprep.subr.mxu0 0.0
        %1588 = vmatpush1.msra.mxu0 0.0
        %1589 = vmatprep.subr.mxu0 0.0
        %1590 = vmatpush1.msra.mxu0 0.0
        %1591 = vmatprep.subr.mxu0 0.0
        %1592 = vmatpush1.msra.mxu0 0.0
        %1593 = vmatprep.subr.mxu0 0.0
        %1594 = vmatpush1.msra.mxu0 0.0
        %1595 = vmatprep.subr.mxu0 0.0
        %1596 = vmatpush1.msra.mxu0 0.0
        %1597 = vmatprep.mubr.f32.mxu0 0.0
        %1598 = vmatmul.mubr.f32.gmra.mrb[0].mxu0 %v1486
        %v1599 = vpop.f32.mrb[0].mxu0
        %v1600 = vadd.f32 0.0, %v1599
        %v1601 = vpop.f32.mrb[0].mxu0
        %1602 = vmatprep.mubr.f32.mxu0 0.0
        %1603 = vmatmul.mubr.f32.gmra.mrb[0].mxu0 %v1489
        %v1604 = vpop.f32.mrb[0].mxu0
        %v1605 = vadd.f32 0.0, %v1604
        %v1606 = vpop.f32.mrb[0].mxu0
        %1607 = vmatprep.mubr.f32.mxu0 0.0
        %1608 = vmatmul.mubr.f32.gmra.mrb[0].mxu0 %v1492
        %v1609 = vpop.f32.mrb[0].mxu0
        %v1610 = vadd.f32 0.0, %v1609
        %v1611 = vpop.f32.mrb[0].mxu0
        %1612 = vmatprep.mubr.f32.mxu0 0.0
        %1613 = vmatmul.mubr.f32.gmra.mrb[0].mxu0 %v1495
        %v1614 = vpop.f32.mrb[0].mxu0
        %v1615 = vadd.f32 0.0, %v1614
        %v1616 = vpop.f32.mrb[0].mxu0
        %1617 = vmatprep.mubr.f32.mxu0 0.0
        %1618 = vmatmul.mubr.f32.gmra.mrb[0].mxu0 %v1498
        %v1619 = vpop.f32.mrb[0].mxu0
        %v1620 = vadd.f32 0.0, %v1619
        %v1621 = vpop.f32.mrb[0].mxu0
        %1622 = vmatprep.mubr.f32.mxu0 0.0
        %1623 = vmatmul.mubr.f32.gmra.mrb[0].mxu0 %v1501
        %v1624 = vpop.f32.mrb[0].mxu0
        %v1625 = vadd.f32 0.0, %v1624
        %v1626 = vpop.f32.mrb[0].mxu0
        %1627 = vmatprep.mubr.f32.mxu0 0.0
        %1628 = vmatmul.mubr.f32.gmra.mrb[0].mxu0 %v1504
        %v1629 = vpop.f32.mrb[0].mxu0
        %v1630 = vadd.f32 0.0, %v1629
        %v1631 = vpop.f32.mrb[0].mxu0
        %1632 = vmatprep.mubr.f32.mxu0 0.0
        %1633 = vmatmul.mubr.f32.gmra.mrb[0].mxu0 %v1507
        %v1634 = vpop.f32.mrb[0].mxu0
        %v1635 = vadd.f32 0.0, %v1634
        %v1636 = vpop.f32.mrb[0].mxu0
        %1637 = vmatprep.mubr.f32.mxu0 0.0
        %1638 = vmatmul.mubr.f32.gmra.mrb[0].mxu0 %v1510
        %v1639 = vpop.f32.mrb[0].mxu0
        %v1640 = vadd.f32 0.0, %v1639
        %v1641 = vpop.f32.mrb[0].mxu0
        %1642 = vmatprep.mubr.f32.mxu0 0.0
        %1643 = vmatmul.mubr.f32.gmra.mrb[0].mxu0 %v1513
        %v1644 = vpop.f32.mrb[0].mxu0
        %v1645 = vadd.f32 0.0, %v1644
        %v1646 = vpop.f32.mrb[0].mxu0
        %1647 = vmatprep.mubr.f32.mxu0 0.0
        %1648 = vmatmul.mubr.f32.gmra.mrb[0].mxu0 %v1516
        %v1649 = vpop.f32.mrb[0].mxu0
        %v1650 = vadd.f32 0.0, %v1649
        %v1651 = vpop.f32.mrb[0].mxu0
        %1652 = vmatprep.mubr.f32.mxu0 0.0
        %1653 = vmatmul.mubr.f32.gmra.mrb[0].mxu0 %v1519
        %v1654 = vpop.f32.mrb[0].mxu0
        %v1655 = vadd.f32 0.0, %v1654
        %v1656 = vpop.f32.mrb[0].mxu0
        %1657 = vmatprep.mubr.f32.mxu0 0.0
        %1658 = vmatmul.mubr.f32.gmra.mrb[0].mxu0 %v1522
        %v1659 = vpop.f32.mrb[0].mxu0
        %v1660 = vadd.f32 0.0, %v1659
        %v1661 = vpop.f32.mrb[0].mxu0
        %1662 = vmatprep.mubr.f32.mxu0 0.0
        %1663 = vmatmul.mubr.f32.gmra.mrb[0].mxu0 %v1525
        %v1664 = vpop.f32.mrb[0].mxu0
        %v1665 = vadd.f32 0.0, %v1664
        %v1666 = vpop.f32.mrb[0].mxu0
        %1667 = vmatprep.mubr.f32.mxu0 0.0
        %1668 = vmatmul.mubr.f32.gmra.mrb[0].mxu0 %v1528
        %v1669 = vpop.f32.mrb[0].mxu0
        %v1670 = vadd.f32 0.0, %v1669
        %v1671 = vpop.f32.mrb[0].mxu0
        %1672 = vmatprep.mubr.f32.mxu0 0.0
        %1673 = vmatmul.mubr.f32.gmra.mrb[0].mxu0 %v1531
        %v1674 = vpop.f32.mrb[0].mxu0
        %v1675 = vadd.f32 0.0, %v1674
        %v1676 = vpop.f32.mrb[0].mxu0
        %1677 = vdwg.mxu0
        %v1678 = vsel %vm577, %v1600, -inf
        %v1679 = vsel %vm577, %v1605, -inf
        %v1680 = vsel %vm577, %v1610, -inf
        %v1681 = vsel %vm577, %v1615, -inf
        %v1682 = vsel %vm577, %v1620, -inf
        %v1683 = vsel %vm577, %v1625, -inf
        %v1684 = vsel %vm577, %v1630, -inf
        %v1685 = vsel %vm577, %v1635, -inf
        %v1686 = vsel %vm577, %v1640, -inf
        %v1687 = vsel %vm577, %v1645, -inf
        %v1688 = vsel %vm577, %v1650, -inf
        %v1689 = vsel %vm577, %v1655, -inf
        %v1690 = vsel %vm577, %v1660, -inf
        %v1691 = vsel %vm577, %v1665, -inf
        %v1692 = vsel %vm577, %v1670, -inf
        %v1693 = vsel %vm577, %v1675, -inf
        %v1694 = vld [vmem:[#allocation2 + $0x200] sm:$0xff]
        %v1695 = vld [vmem:[#allocation2 + $0x208] sm:$0xff]
        %v1696 = vld [vmem:[#allocation2 + $0x210] sm:$0xff]
        %v1697 = vld [vmem:[#allocation2 + $0x218] sm:$0xff]
        %v1698 = vld [vmem:[#allocation2 + $0x220] sm:$0xff]
        %v1699 = vld [vmem:[#allocation2 + $0x228] sm:$0xff]
        %v1700 = vld [vmem:[#allocation2 + $0x230] sm:$0xff]
        %v1701 = vld [vmem:[#allocation2 + $0x238] sm:$0xff]
        %v1702 = vld [vmem:[#allocation2 + $0x240] sm:$0xff]
        %v1703 = vld [vmem:[#allocation2 + $0x248] sm:$0xff]
        %v1704 = vld [vmem:[#allocation2 + $0x250] sm:$0xff]
        %v1705 = vld [vmem:[#allocation2 + $0x258] sm:$0xff]
        %v1706 = vld [vmem:[#allocation2 + $0x260] sm:$0xff]
        %v1707 = vld [vmem:[#allocation2 + $0x268] sm:$0xff]
        %v1708 = vld [vmem:[#allocation2 + $0x270] sm:$0xff]
        %v1709 = vld [vmem:[#allocation2 + $0x278] sm:$0xff]
        %v1710 = vmax.f32 %v1694, %v1678
        %v1711 = vmax.f32 %v1695, %v1679
        %v1712 = vmax.f32 %v1696, %v1680
        %v1713 = vmax.f32 %v1697, %v1681
        %v1714 = vmax.f32 %v1698, %v1682
        %v1715 = vmax.f32 %v1699, %v1683
        %v1716 = vmax.f32 %v1700, %v1684
        %v1717 = vmax.f32 %v1701, %v1685
        %v1718 = vmax.f32 %v1702, %v1686
        %v1719 = vmax.f32 %v1703, %v1687
        %v1720 = vmax.f32 %v1704, %v1688
        %v1721 = vmax.f32 %v1705, %v1689
        %v1722 = vmax.f32 %v1706, %v1690
        %v1723 = vmax.f32 %v1707, %v1691
        %v1724 = vmax.f32 %v1708, %v1692
        %v1725 = vmax.f32 %v1709, %v1693
        %1726 = vst [vmem:[#allocation2 + $0x200] sm:$0xff] %v1710
        %1727 = vst [vmem:[#allocation2 + $0x208] sm:$0xff] %v1711
        %1728 = vst [vmem:[#allocation2 + $0x210] sm:$0xff] %v1712
        %1729 = vst [vmem:[#allocation2 + $0x218] sm:$0xff] %v1713
        %1730 = vst [vmem:[#allocation2 + $0x220] sm:$0xff] %v1714
        %1731 = vst [vmem:[#allocation2 + $0x228] sm:$0xff] %v1715
        %1732 = vst [vmem:[#allocation2 + $0x230] sm:$0xff] %v1716
        %1733 = vst [vmem:[#allocation2 + $0x238] sm:$0xff] %v1717
        %1734 = vst [vmem:[#allocation2 + $0x240] sm:$0xff] %v1718
        %1735 = vst [vmem:[#allocation2 + $0x248] sm:$0xff] %v1719
        %1736 = vst [vmem:[#allocation2 + $0x250] sm:$0xff] %v1720
        %1737 = vst [vmem:[#allocation2 + $0x258] sm:$0xff] %v1721
        %1738 = vst [vmem:[#allocation2 + $0x260] sm:$0xff] %v1722
        %1739 = vst [vmem:[#allocation2 + $0x268] sm:$0xff] %v1723
        %1740 = vst [vmem:[#allocation2 + $0x270] sm:$0xff] %v1724
        %1741 = vst [vmem:[#allocation2 + $0x278] sm:$0xff] %v1725
        %v1742 = vld [vmem:[%s1 + $0x280] sm:$0xff]
        %v1743 = vld [vmem:[%s1 + $0x288] sm:$0xff]
        %v1744 = vld [vmem:[%s1 + $0x290] sm:$0xff]
        %v1745 = vld [vmem:[%s1 + $0x298] sm:$0xff]
        %v1746 = vld [vmem:[%s1 + $0x2a0] sm:$0xff]
        %v1747 = vld [vmem:[%s1 + $0x2a8] sm:$0xff]
        %v1748 = vld [vmem:[%s1 + $0x2b0] sm:$0xff]
        %v1749 = vld [vmem:[%s1 + $0x2b8] sm:$0xff]
        %v1750 = vld [vmem:[%s1 + $0x2c0] sm:$0xff]
        %v1751 = vld [vmem:[%s1 + $0x2c8] sm:$0xff]
        %v1752 = vld [vmem:[%s1 + $0x2d0] sm:$0xff]
        %v1753 = vld [vmem:[%s1 + $0x2d8] sm:$0xff]
        %v1754 = vld [vmem:[%s1 + $0x2e0] sm:$0xff]
        %v1755 = vld [vmem:[%s1 + $0x2e8] sm:$0xff]
        %v1756 = vld [vmem:[%s1 + $0x2f0] sm:$0xff]
        %v1757 = vld [vmem:[%s1 + $0x2f8] sm:$0xff]
        %v1758 = vld [vmem:[%s199] sm:$0xff]
        %v1759 = vld [vmem:[%s199 + $0x8] sm:$0xff]
        %v1761 = vsel %vm376, %v1742, 0
        %v1764 = vsel %vm376, %v1743, 0
        %v1767 = vsel %vm376, %v1744, 0
        %v1770 = vsel %vm376, %v1745, 0
        %v1773 = vsel %vm376, %v1746, 0
        %v1776 = vsel %vm376, %v1747, 0
        %v1779 = vsel %vm376, %v1748, 0
        %v1782 = vsel %vm376, %v1749, 0
        %v1785 = vsel %vm376, %v1750, 0
        %v1788 = vsel %vm376, %v1751, 0
        %v1791 = vsel %vm376, %v1752, 0
        %v1794 = vsel %vm376, %v1753, 0
        %v1797 = vsel %vm376, %v1754, 0
        %v1800 = vsel %vm376, %v1755, 0
        %v1803 = vsel %vm376, %v1756, 0
        %v1806 = vsel %vm376, %v1757, 0
        %1808 = vmatprep.subr.mxu0 0.0
        %1809 = vmatpush1.msra.mxu0 %v1758
        %1810 = vmatprep.subr.mxu0 0.0
        %1811 = vmatpush1.msra.mxu0 %v1759
        %1812 = vmatprep.subr.mxu0 0.0
        %1813 = vmatpush1.msra.mxu0 0.0
        %1814 = vmatprep.subr.mxu0 0.0
        %1815 = vmatpush1.msra.mxu0 0.0
        %1816 = vmatprep.subr.mxu0 0.0
        %1817 = vmatpush1.msra.mxu0 0.0
        %1818 = vmatprep.subr.mxu0 0.0
        %1819 = vmatpush1.msra.mxu0 0.0
        %1820 = vmatprep.subr.mxu0 0.0
        %1821 = vmatpush1.msra.mxu0 0.0
        %1822 = vmatprep.subr.mxu0 0.0
        %1823 = vmatpush1.msra.mxu0 0.0
        %1824 = vmatprep.subr.mxu0 0.0
        %1825 = vmatpush1.msra.mxu0 0.0
        %1826 = vmatprep.subr.mxu0 0.0
        %1827 = vmatpush1.msra.mxu0 0.0
        %1828 = vmatprep.subr.mxu0 0.0
        %1829 = vmatpush1.msra.mxu0 0.0
        %1830 = vmatprep.subr.mxu0 0.0
        %1831 = vmatpush1.msra.mxu0 0.0
        %1832 = vmatprep.subr.mxu0 0.0
        %1833 = vmatpush1.msra.mxu0 0.0
        %1834 = vmatprep.subr.mxu0 0.0
        %1835 = vmatpush1.msra.mxu0 0.0
        %1836 = vmatprep.subr.mxu0 0.0
        %1837 = vmatpush1.msra.mxu0 0.0
        %1838 = vmatprep.subr.mxu0 0.0
        %1839 = vmatpush1.msra.mxu0 0.0
        %1840 = vmatprep.subr.mxu0 0.0
        %1841 = vmatpush1.msra.mxu0 0.0
        %1842 = vmatprep.subr.mxu0 0.0
        %1843 = vmatpush1.msra.mxu0 0.0
        %1844 = vmatprep.subr.mxu0 0.0
        %1845 = vmatpush1.msra.mxu0 0.0
        %1846 = vmatprep.subr.mxu0 0.0
        %1847 = vmatpush1.msra.mxu0 0.0
        %1848 = vmatprep.subr.mxu0 0.0
        %1849 = vmatpush1.msra.mxu0 0.0
        %1850 = vmatprep.subr.mxu0 0.0
        %1851 = vmatpush1.msra.mxu0 0.0
        %1852 = vmatprep.subr.mxu0 0.0
        %1853 = vmatpush1.msra.mxu0 0.0
        %1854 = vmatprep.subr.mxu0 0.0
        %1855 = vmatpush1.msra.mxu0 0.0
        %1856 = vmatprep.subr.mxu0 0.0
        %1857 = vmatpush1.msra.mxu0 0.0
        %1858 = vmatprep.subr.mxu0 0.0
        %1859 = vmatpush1.msra.mxu0 0.0
        %1860 = vmatprep.subr.mxu0 0.0
        %1861 = vmatpush1.msra.mxu0 0.0
        %1862 = vmatprep.subr.mxu0 0.0
        %1863 = vmatpush1.msra.mxu0 0.0
        %1864 = vmatprep.subr.mxu0 0.0
        %1865 = vmatpush1.msra.mxu0 0.0
        %1866 = vmatprep.subr.mxu0 0.0
        %1867 = vmatpush1.msra.mxu0 0.0
        %1868 = vmatprep.subr.mxu0 0.0
        %1869 = vmatpush1.msra.mxu0 0.0
        %1870 = vmatprep.subr.mxu0 0.0
        %1871 = vmatpush1.msra.mxu0 0.0
        %1872 = vmatprep.mubr.f32.mxu0 0.0
        %1873 = vmatmul.mubr.f32.gmra.mrb[0].mxu0 %v1761
        %v1874 = vpop.f32.mrb[0].mxu0
        %v1875 = vadd.f32 0.0, %v1874
        %v1876 = vpop.f32.mrb[0].mxu0
        %1877 = vmatprep.mubr.f32.mxu0 0.0
        %1878 = vmatmul.mubr.f32.gmra.mrb[0].mxu0 %v1764
        %v1879 = vpop.f32.mrb[0].mxu0
        %v1880 = vadd.f32 0.0, %v1879
        %v1881 = vpop.f32.mrb[0].mxu0
        %1882 = vmatprep.mubr.f32.mxu0 0.0
        %1883 = vmatmul.mubr.f32.gmra.mrb[0].mxu0 %v1767
        %v1884 = vpop.f32.mrb[0].mxu0
        %v1885 = vadd.f32 0.0, %v1884
        %v1886 = vpop.f32.mrb[0].mxu0
        %1887 = vmatprep.mubr.f32.mxu0 0.0
        %1888 = vmatmul.mubr.f32.gmra.mrb[0].mxu0 %v1770
        %v1889 = vpop.f32.mrb[0].mxu0
        %v1890 = vadd.f32 0.0, %v1889
        %v1891 = vpop.f32.mrb[0].mxu0
        %1892 = vmatprep.mubr.f32.mxu0 0.0
        %1893 = vmatmul.mubr.f32.gmra.mrb[0].mxu0 %v1773
        %v1894 = vpop.f32.mrb[0].mxu0
        %v1895 = vadd.f32 0.0, %v1894
        %v1896 = vpop.f32.mrb[0].mxu0
        %1897 = vmatprep.mubr.f32.mxu0 0.0
        %1898 = vmatmul.mubr.f32.gmra.mrb[0].mxu0 %v1776
        %v1899 = vpop.f32.mrb[0].mxu0
        %v1900 = vadd.f32 0.0, %v1899
        %v1901 = vpop.f32.mrb[0].mxu0
        %1902 = vmatprep.mubr.f32.mxu0 0.0
        %1903 = vmatmul.mubr.f32.gmra.mrb[0].mxu0 %v1779
        %v1904 = vpop.f32.mrb[0].mxu0
        %v1905 = vadd.f32 0.0, %v1904
        %v1906 = vpop.f32.mrb[0].mxu0
        %1907 = vmatprep.mubr.f32.mxu0 0.0
        %1908 = vmatmul.mubr.f32.gmra.mrb[0].mxu0 %v1782
        %v1909 = vpop.f32.mrb[0].mxu0
        %v1910 = vadd.f32 0.0, %v1909
        %v1911 = vpop.f32.mrb[0].mxu0
        %1912 = vmatprep.mubr.f32.mxu0 0.0
        %1913 = vmatmul.mubr.f32.gmra.mrb[0].mxu0 %v1785
        %v1914 = vpop.f32.mrb[0].mxu0
        %v1915 = vadd.f32 0.0, %v1914
        %v1916 = vpop.f32.mrb[0].mxu0
        %1917 = vmatprep.mubr.f32.mxu0 0.0
        %1918 = vmatmul.mubr.f32.gmra.mrb[0].mxu0 %v1788
        %v1919 = vpop.f32.mrb[0].mxu0
        %v1920 = vadd.f32 0.0, %v1919
        %v1921 = vpop.f32.mrb[0].mxu0
        %1922 = vmatprep.mubr.f32.mxu0 0.0
        %1923 = vmatmul.mubr.f32.gmra.mrb[0].mxu0 %v1791
        %v1924 = vpop.f32.mrb[0].mxu0
        %v1925 = vadd.f32 0.0, %v1924
        %v1926 = vpop.f32.mrb[0].mxu0
        %1927 = vmatprep.mubr.f32.mxu0 0.0
        %1928 = vmatmul.mubr.f32.gmra.mrb[0].mxu0 %v1794
        %v1929 = vpop.f32.mrb[0].mxu0
        %v1930 = vadd.f32 0.0, %v1929
        %v1931 = vpop.f32.mrb[0].mxu0
        %1932 = vmatprep.mubr.f32.mxu0 0.0
        %1933 = vmatmul.mubr.f32.gmra.mrb[0].mxu0 %v1797
        %v1934 = vpop.f32.mrb[0].mxu0
        %v1935 = vadd.f32 0.0, %v1934
        %v1936 = vpop.f32.mrb[0].mxu0
        %1937 = vmatprep.mubr.f32.mxu0 0.0
        %1938 = vmatmul.mubr.f32.gmra.mrb[0].mxu0 %v1800
        %v1939 = vpop.f32.mrb[0].mxu0
        %v1940 = vadd.f32 0.0, %v1939
        %v1941 = vpop.f32.mrb[0].mxu0
        %1942 = vmatprep.mubr.f32.mxu0 0.0
        %1943 = vmatmul.mubr.f32.gmra.mrb[0].mxu0 %v1803
        %v1944 = vpop.f32.mrb[0].mxu0
        %v1945 = vadd.f32 0.0, %v1944
        %v1946 = vpop.f32.mrb[0].mxu0
        %1947 = vmatprep.mubr.f32.mxu0 0.0
        %1948 = vmatmul.mubr.f32.gmra.mrb[0].mxu0 %v1806
        %v1949 = vpop.f32.mrb[0].mxu0
        %v1950 = vadd.f32 0.0, %v1949
        %v1951 = vpop.f32.mrb[0].mxu0
        %1952 = vdwg.mxu0
        %v1953 = vsel %vm577, %v1875, -inf
        %v1954 = vsel %vm577, %v1880, -inf
        %v1955 = vsel %vm577, %v1885, -inf
        %v1956 = vsel %vm577, %v1890, -inf
        %v1957 = vsel %vm577, %v1895, -inf
        %v1958 = vsel %vm577, %v1900, -inf
        %v1959 = vsel %vm577, %v1905, -inf
        %v1960 = vsel %vm577, %v1910, -inf
        %v1961 = vsel %vm577, %v1915, -inf
        %v1962 = vsel %vm577, %v1920, -inf
        %v1963 = vsel %vm577, %v1925, -inf
        %v1964 = vsel %vm577, %v1930, -inf
        %v1965 = vsel %vm577, %v1935, -inf
        %v1966 = vsel %vm577, %v1940, -inf
        %v1967 = vsel %vm577, %v1945, -inf
        %v1968 = vsel %vm577, %v1950, -inf
        %v1969 = vld [vmem:[#allocation2 + $0x280] sm:$0xff]
        %v1970 = vld [vmem:[#allocation2 + $0x288] sm:$0xff]
        %v1971 = vld [vmem:[#allocation2 + $0x290] sm:$0xff]
        %v1972 = vld [vmem:[#allocation2 + $0x298] sm:$0xff]
        %v1973 = vld [vmem:[#allocation2 + $0x2a0] sm:$0xff]
        %v1974 = vld [vmem:[#allocation2 + $0x2a8] sm:$0xff]
        %v1975 = vld [vmem:[#allocation2 + $0x2b0] sm:$0xff]
        %v1976 = vld [vmem:[#allocation2 + $0x2b8] sm:$0xff]
        %v1977 = vld [vmem:[#allocation2 + $0x2c0] sm:$0xff]
        %v1978 = vld [vmem:[#allocation2 + $0x2c8] sm:$0xff]
        %v1979 = vld [vmem:[#allocation2 + $0x2d0] sm:$0xff]
        %v1980 = vld [vmem:[#allocation2 + $0x2d8] sm:$0xff]
        %v1981 = vld [vmem:[#allocation2 + $0x2e0] sm:$0xff]
        %v1982 = vld [vmem:[#allocation2 + $0x2e8] sm:$0xff]
        %v1983 = vld [vmem:[#allocation2 + $0x2f0] sm:$0xff]
        %v1984 = vld [vmem:[#allocation2 + $0x2f8] sm:$0xff]
        %v1985 = vmax.f32 %v1969, %v1953
        %v1986 = vmax.f32 %v1970, %v1954
        %v1987 = vmax.f32 %v1971, %v1955
        %v1988 = vmax.f32 %v1972, %v1956
        %v1989 = vmax.f32 %v1973, %v1957
        %v1990 = vmax.f32 %v1974, %v1958
        %v1991 = vmax.f32 %v1975, %v1959
        %v1992 = vmax.f32 %v1976, %v1960
        %v1993 = vmax.f32 %v1977, %v1961
        %v1994 = vmax.f32 %v1978, %v1962
        %v1995 = vmax.f32 %v1979, %v1963
        %v1996 = vmax.f32 %v1980, %v1964
        %v1997 = vmax.f32 %v1981, %v1965
        %v1998 = vmax.f32 %v1982, %v1966
        %v1999 = vmax.f32 %v1983, %v1967
        %v2000 = vmax.f32 %v1984, %v1968
        %2001 = vst [vmem:[#allocation2 + $0x280] sm:$0xff] %v1985
        %2002 = vst [vmem:[#allocation2 + $0x288] sm:$0xff] %v1986
        %2003 = vst [vmem:[#allocation2 + $0x290] sm:$0xff] %v1987
        %2004 = vst [vmem:[#allocation2 + $0x298] sm:$0xff] %v1988
        %2005 = vst [vmem:[#allocation2 + $0x2a0] sm:$0xff] %v1989
        %2006 = vst [vmem:[#allocation2 + $0x2a8] sm:$0xff] %v1990
        %2007 = vst [vmem:[#allocation2 + $0x2b0] sm:$0xff] %v1991
        %2008 = vst [vmem:[#allocation2 + $0x2b8] sm:$0xff] %v1992
        %2009 = vst [vmem:[#allocation2 + $0x2c0] sm:$0xff] %v1993
        %2010 = vst [vmem:[#allocation2 + $0x2c8] sm:$0xff] %v1994
        %2011 = vst [vmem:[#allocation2 + $0x2d0] sm:$0xff] %v1995
        %2012 = vst [vmem:[#allocation2 + $0x2d8] sm:$0xff] %v1996
        %2013 = vst [vmem:[#allocation2 + $0x2e0] sm:$0xff] %v1997
        %2014 = vst [vmem:[#allocation2 + $0x2e8] sm:$0xff] %v1998
        %2015 = vst [vmem:[#allocation2 + $0x2f0] sm:$0xff] %v1999
        %2016 = vst [vmem:[#allocation2 + $0x2f8] sm:$0xff] %v2000
        %v2017 = vld [vmem:[%s1 + $0x300] sm:$0xff]
        %v2018 = vld [vmem:[%s1 + $0x308] sm:$0xff]
        %v2019 = vld [vmem:[%s1 + $0x310] sm:$0xff]
        %v2020 = vld [vmem:[%s1 + $0x318] sm:$0xff]
        %v2021 = vld [vmem:[%s1 + $0x320] sm:$0xff]
        %v2022 = vld [vmem:[%s1 + $0x328] sm:$0xff]
        %v2023 = vld [vmem:[%s1 + $0x330] sm:$0xff]
        %v2024 = vld [vmem:[%s1 + $0x338] sm:$0xff]
        %v2025 = vld [vmem:[%s1 + $0x340] sm:$0xff]
        %v2026 = vld [vmem:[%s1 + $0x348] sm:$0xff]
        %v2027 = vld [vmem:[%s1 + $0x350] sm:$0xff]
        %v2028 = vld [vmem:[%s1 + $0x358] sm:$0xff]
        %v2029 = vld [vmem:[%s1 + $0x360] sm:$0xff]
        %v2030 = vld [vmem:[%s1 + $0x368] sm:$0xff]
        %v2031 = vld [vmem:[%s1 + $0x370] sm:$0xff]
        %v2032 = vld [vmem:[%s1 + $0x378] sm:$0xff]
        %v2033 = vld [vmem:[%s199] sm:$0xff]
        %v2034 = vld [vmem:[%s199 + $0x8] sm:$0xff]
        %v2036 = vsel %vm376, %v2017, 0
        %v2039 = vsel %vm376, %v2018, 0
        %v2042 = vsel %vm376, %v2019, 0
        %v2045 = vsel %vm376, %v2020, 0
        %v2048 = vsel %vm376, %v2021, 0
        %v2051 = vsel %vm376, %v2022, 0
        %v2054 = vsel %vm376, %v2023, 0
        %v2057 = vsel %vm376, %v2024, 0
        %v2060 = vsel %vm376, %v2025, 0
        %v2063 = vsel %vm376, %v2026, 0
        %v2066 = vsel %vm376, %v2027, 0
        %v2069 = vsel %vm376, %v2028, 0
        %v2072 = vsel %vm376, %v2029, 0
        %v2075 = vsel %vm376, %v2030, 0
        %v2078 = vsel %vm376, %v2031, 0
        %v2081 = vsel %vm376, %v2032, 0
        %2083 = vmatprep.subr.mxu0 0.0
        %2084 = vmatpush1.msra.mxu0 %v2033
        %2085 = vmatprep.subr.mxu0 0.0
        %2086 = vmatpush1.msra.mxu0 %v2034
        %2087 = vmatprep.subr.mxu0 0.0
        %2088 = vmatpush1.msra.mxu0 0.0
        %2089 = vmatprep.subr.mxu0 0.0
        %2090 = vmatpush1.msra.mxu0 0.0
        %2091 = vmatprep.subr.mxu0 0.0
        %2092 = vmatpush1.msra.mxu0 0.0
        %2093 = vmatprep.subr.mxu0 0.0
        %2094 = vmatpush1.msra.mxu0 0.0
        %2095 = vmatprep.subr.mxu0 0.0
        %2096 = vmatpush1.msra.mxu0 0.0
        %2097 = vmatprep.subr.mxu0 0.0
        %2098 = vmatpush1.msra.mxu0 0.0
        %2099 = vmatprep.subr.mxu0 0.0
        %2100 = vmatpush1.msra.mxu0 0.0
        %2101 = vmatprep.subr.mxu0 0.0
        %2102 = vmatpush1.msra.mxu0 0.0
        %2103 = vmatprep.subr.mxu0 0.0
        %2104 = vmatpush1.msra.mxu0 0.0
        %2105 = vmatprep.subr.mxu0 0.0
        %2106 = vmatpush1.msra.mxu0 0.0
        %2107 = vmatprep.subr.mxu0 0.0
        %2108 = vmatpush1.msra.mxu0 0.0
        %2109 = vmatprep.subr.mxu0 0.0
        %2110 = vmatpush1.msra.mxu0 0.0
        %2111 = vmatprep.subr.mxu0 0.0
        %2112 = vmatpush1.msra.mxu0 0.0
        %2113 = vmatprep.subr.mxu0 0.0
        %2114 = vmatpush1.msra.mxu0 0.0
        %2115 = vmatprep.subr.mxu0 0.0
        %2116 = vmatpush1.msra.mxu0 0.0
        %2117 = vmatprep.subr.mxu0 0.0
        %2118 = vmatpush1.msra.mxu0 0.0
        %2119 = vmatprep.subr.mxu0 0.0
        %2120 = vmatpush1.msra.mxu0 0.0
        %2121 = vmatprep.subr.mxu0 0.0
        %2122 = vmatpush1.msra.mxu0 0.0
        %2123 = vmatprep.subr.mxu0 0.0
        %2124 = vmatpush1.msra.mxu0 0.0
        %2125 = vmatprep.subr.mxu0 0.0
        %2126 = vmatpush1.msra.mxu0 0.0
        %2127 = vmatprep.subr.mxu0 0.0
        %2128 = vmatpush1.msra.mxu0 0.0
        %2129 = vmatprep.subr.mxu0 0.0
        %2130 = vmatpush1.msra.mxu0 0.0
        %2131 = vmatprep.subr.mxu0 0.0
        %2132 = vmatpush1.msra.mxu0 0.0
        %2133 = vmatprep.subr.mxu0 0.0
        %2134 = vmatpush1.msra.mxu0 0.0
        %2135 = vmatprep.subr.mxu0 0.0
        %2136 = vmatpush1.msra.mxu0 0.0
        %2137 = vmatprep.subr.mxu0 0.0
        %2138 = vmatpush1.msra.mxu0 0.0
        %2139 = vmatprep.subr.mxu0 0.0
        %2140 = vmatpush1.msra.mxu0 0.0
        %2141 = vmatprep.subr.mxu0 0.0
        %2142 = vmatpush1.msra.mxu0 0.0
        %2143 = vmatprep.subr.mxu0 0.0
        %2144 = vmatpush1.msra.mxu0 0.0
        %2145 = vmatprep.subr.mxu0 0.0
        %2146 = vmatpush1.msra.mxu0 0.0
        %2147 = vmatprep.mubr.f32.mxu0 0.0
        %2148 = vmatmul.mubr.f32.gmra.mrb[0].mxu0 %v2036
        %v2149 = vpop.f32.mrb[0].mxu0
        %v2150 = vadd.f32 0.0, %v2149
        %v2151 = vpop.f32.mrb[0].mxu0
        %2152 = vmatprep.mubr.f32.mxu0 0.0
        %2153 = vmatmul.mubr.f32.gmra.mrb[0].mxu0 %v2039
        %v2154 = vpop.f32.mrb[0].mxu0
        %v2155 = vadd.f32 0.0, %v2154
        %v2156 = vpop.f32.mrb[0].mxu0
        %2157 = vmatprep.mubr.f32.mxu0 0.0
        %2158 = vmatmul.mubr.f32.gmra.mrb[0].mxu0 %v2042
        %v2159 = vpop.f32.mrb[0].mxu0
        %v2160 = vadd.f32 0.0, %v2159
        %v2161 = vpop.f32.mrb[0].mxu0
        %2162 = vmatprep.mubr.f32.mxu0 0.0
        %2163 = vmatmul.mubr.f32.gmra.mrb[0].mxu0 %v2045
        %v2164 = vpop.f32.mrb[0].mxu0
        %v2165 = vadd.f32 0.0, %v2164
        %v2166 = vpop.f32.mrb[0].mxu0
        %2167 = vmatprep.mubr.f32.mxu0 0.0
        %2168 = vmatmul.mubr.f32.gmra.mrb[0].mxu0 %v2048
        %v2169 = vpop.f32.mrb[0].mxu0
        %v2170 = vadd.f32 0.0, %v2169
        %v2171 = vpop.f32.mrb[0].mxu0
        %2172 = vmatprep.mubr.f32.mxu0 0.0
        %2173 = vmatmul.mubr.f32.gmra.mrb[0].mxu0 %v2051
        %v2174 = vpop.f32.mrb[0].mxu0
        %v2175 = vadd.f32 0.0, %v2174
        %v2176 = vpop.f32.mrb[0].mxu0
        %2177 = vmatprep.mubr.f32.mxu0 0.0
        %2178 = vmatmul.mubr.f32.gmra.mrb[0].mxu0 %v2054
        %v2179 = vpop.f32.mrb[0].mxu0
        %v2180 = vadd.f32 0.0, %v2179
        %v2181 = vpop.f32.mrb[0].mxu0
        %2182 = vmatprep.mubr.f32.mxu0 0.0
        %2183 = vmatmul.mubr.f32.gmra.mrb[0].mxu0 %v2057
        %v2184 = vpop.f32.mrb[0].mxu0
        %v2185 = vadd.f32 0.0, %v2184
        %v2186 = vpop.f32.mrb[0].mxu0
        %2187 = vmatprep.mubr.f32.mxu0 0.0
        %2188 = vmatmul.mubr.f32.gmra.mrb[0].mxu0 %v2060
        %v2189 = vpop.f32.mrb[0].mxu0
        %v2190 = vadd.f32 0.0, %v2189
        %v2191 = vpop.f32.mrb[0].mxu0
        %2192 = vmatprep.mubr.f32.mxu0 0.0
        %2193 = vmatmul.mubr.f32.gmra.mrb[0].mxu0 %v2063
        %v2194 = vpop.f32.mrb[0].mxu0
        %v2195 = vadd.f32 0.0, %v2194
        %v2196 = vpop.f32.mrb[0].mxu0
        %2197 = vmatprep.mubr.f32.mxu0 0.0
        %2198 = vmatmul.mubr.f32.gmra.mrb[0].mxu0 %v2066
        %v2199 = vpop.f32.mrb[0].mxu0
        %v2200 = vadd.f32 0.0, %v2199
        %v2201 = vpop.f32.mrb[0].mxu0
        %2202 = vmatprep.mubr.f32.mxu0 0.0
        %2203 = vmatmul.mubr.f32.gmra.mrb[0].mxu0 %v2069
        %v2204 = vpop.f32.mrb[0].mxu0
        %v2205 = vadd.f32 0.0, %v2204
        %v2206 = vpop.f32.mrb[0].mxu0
        %2207 = vmatprep.mubr.f32.mxu0 0.0
        %2208 = vmatmul.mubr.f32.gmra.mrb[0].mxu0 %v2072
        %v2209 = vpop.f32.mrb[0].mxu0
        %v2210 = vadd.f32 0.0, %v2209
        %v2211 = vpop.f32.mrb[0].mxu0
        %2212 = vmatprep.mubr.f32.mxu0 0.0
        %2213 = vmatmul.mubr.f32.gmra.mrb[0].mxu0 %v2075
        %v2214 = vpop.f32.mrb[0].mxu0
        %v2215 = vadd.f32 0.0, %v2214
        %v2216 = vpop.f32.mrb[0].mxu0
        %2217 = vmatprep.mubr.f32.mxu0 0.0
        %2218 = vmatmul.mubr.f32.gmra.mrb[0].mxu0 %v2078
        %v2219 = vpop.f32.mrb[0].mxu0
        %v2220 = vadd.f32 0.0, %v2219
        %v2221 = vpop.f32.mrb[0].mxu0
        %2222 = vmatprep.mubr.f32.mxu0 0.0
        %2223 = vmatmul.mubr.f32.gmra.mrb[0].mxu0 %v2081
        %v2224 = vpop.f32.mrb[0].mxu0
        %v2225 = vadd.f32 0.0, %v2224
        %v2226 = vpop.f32.mrb[0].mxu0
        %2227 = vdwg.mxu0
        %v2228 = vsel %vm577, %v2150, -inf
        %v2229 = vsel %vm577, %v2155, -inf
        %v2230 = vsel %vm577, %v2160, -inf
        %v2231 = vsel %vm577, %v2165, -inf
        %v2232 = vsel %vm577, %v2170, -inf
        %v2233 = vsel %vm577, %v2175, -inf
        %v2234 = vsel %vm577, %v2180, -inf
        %v2235 = vsel %vm577, %v2185, -inf
        %v2236 = vsel %vm577, %v2190, -inf
        %v2237 = vsel %vm577, %v2195, -inf
        %v2238 = vsel %vm577, %v2200, -inf
        %v2239 = vsel %vm577, %v2205, -inf
        %v2240 = vsel %vm577, %v2210, -inf
        %v2241 = vsel %vm577, %v2215, -inf
        %v2242 = vsel %vm577, %v2220, -inf
        %v2243 = vsel %vm577, %v2225, -inf
        %v2244 = vld [vmem:[#allocation2 + $0x300] sm:$0xff]
        %v2245 = vld [vmem:[#allocation2 + $0x308] sm:$0xff]
        %v2246 = vld [vmem:[#allocation2 + $0x310] sm:$0xff]
        %v2247 = vld [vmem:[#allocation2 + $0x318] sm:$0xff]
        %v2248 = vld [vmem:[#allocation2 + $0x320] sm:$0xff]
        %v2249 = vld [vmem:[#allocation2 + $0x328] sm:$0xff]
        %v2250 = vld [vmem:[#allocation2 + $0x330] sm:$0xff]
        %v2251 = vld [vmem:[#allocation2 + $0x338] sm:$0xff]
        %v2252 = vld [vmem:[#allocation2 + $0x340] sm:$0xff]
        %v2253 = vld [vmem:[#allocation2 + $0x348] sm:$0xff]
        %v2254 = vld [vmem:[#allocation2 + $0x350] sm:$0xff]
        %v2255 = vld [vmem:[#allocation2 + $0x358] sm:$0xff]
        %v2256 = vld [vmem:[#allocation2 + $0x360] sm:$0xff]
        %v2257 = vld [vmem:[#allocation2 + $0x368] sm:$0xff]
        %v2258 = vld [vmem:[#allocation2 + $0x370] sm:$0xff]
        %v2259 = vld [vmem:[#allocation2 + $0x378] sm:$0xff]
        %v2260 = vmax.f32 %v2244, %v2228
        %v2261 = vmax.f32 %v2245, %v2229
        %v2262 = vmax.f32 %v2246, %v2230
        %v2263 = vmax.f32 %v2247, %v2231
        %v2264 = vmax.f32 %v2248, %v2232
        %v2265 = vmax.f32 %v2249, %v2233
        %v2266 = vmax.f32 %v2250, %v2234
        %v2267 = vmax.f32 %v2251, %v2235
        %v2268 = vmax.f32 %v2252, %v2236
        %v2269 = vmax.f32 %v2253, %v2237
        %v2270 = vmax.f32 %v2254, %v2238
        %v2271 = vmax.f32 %v2255, %v2239
        %v2272 = vmax.f32 %v2256, %v2240
        %v2273 = vmax.f32 %v2257, %v2241
        %v2274 = vmax.f32 %v2258, %v2242
        %v2275 = vmax.f32 %v2259, %v2243
        %2276 = vst [vmem:[#allocation2 + $0x300] sm:$0xff] %v2260
        %2277 = vst [vmem:[#allocation2 + $0x308] sm:$0xff] %v2261
        %2278 = vst [vmem:[#allocation2 + $0x310] sm:$0xff] %v2262
        %2279 = vst [vmem:[#allocation2 + $0x318] sm:$0xff] %v2263
        %2280 = vst [vmem:[#allocation2 + $0x320] sm:$0xff] %v2264
        %2281 = vst [vmem:[#allocation2 + $0x328] sm:$0xff] %v2265
        %2282 = vst [vmem:[#allocation2 + $0x330] sm:$0xff] %v2266
        %2283 = vst [vmem:[#allocation2 + $0x338] sm:$0xff] %v2267
        %2284 = vst [vmem:[#allocation2 + $0x340] sm:$0xff] %v2268
        %2285 = vst [vmem:[#allocation2 + $0x348] sm:$0xff] %v2269
        %2286 = vst [vmem:[#allocation2 + $0x350] sm:$0xff] %v2270
        %2287 = vst [vmem:[#allocation2 + $0x358] sm:$0xff] %v2271
        %2288 = vst [vmem:[#allocation2 + $0x360] sm:$0xff] %v2272
        %2289 = vst [vmem:[#allocation2 + $0x368] sm:$0xff] %v2273
        %2290 = vst [vmem:[#allocation2 + $0x370] sm:$0xff] %v2274
        %2291 = vst [vmem:[#allocation2 + $0x378] sm:$0xff] %v2275
        %v2292 = vld [vmem:[%s1 + $0x380] sm:$0xff]
        %v2293 = vld [vmem:[%s1 + $0x388] sm:$0xff]
        %v2294 = vld [vmem:[%s1 + $0x390] sm:$0xff]
        %v2295 = vld [vmem:[%s1 + $0x398] sm:$0xff]
        %v2296 = vld [vmem:[%s1 + $0x3a0] sm:$0xff]
        %v2297 = vld [vmem:[%s1 + $0x3a8] sm:$0xff]
        %v2298 = vld [vmem:[%s1 + $0x3b0] sm:$0xff]
        %v2299 = vld [vmem:[%s1 + $0x3b8] sm:$0xff]
        %v2300 = vld [vmem:[%s1 + $0x3c0] sm:$0xff]
        %v2301 = vld [vmem:[%s1 + $0x3c8] sm:$0xff]
        %v2302 = vld [vmem:[%s1 + $0x3d0] sm:$0xff]
        %v2303 = vld [vmem:[%s1 + $0x3d8] sm:$0xff]
        %v2304 = vld [vmem:[%s1 + $0x3e0] sm:$0xff]
        %v2305 = vld [vmem:[%s1 + $0x3e8] sm:$0xff]
        %v2306 = vld [vmem:[%s1 + $0x3f0] sm:$0xff]
        %v2307 = vld [vmem:[%s1 + $0x3f8] sm:$0xff]
        %v2308 = vld [vmem:[%s199] sm:$0xff]
        %v2309 = vld [vmem:[%s199 + $0x8] sm:$0xff]
        %v2311 = vsel %vm376, %v2292, 0
        %v2314 = vsel %vm376, %v2293, 0
        %v2317 = vsel %vm376, %v2294, 0
        %v2320 = vsel %vm376, %v2295, 0
        %v2323 = vsel %vm376, %v2296, 0
        %v2326 = vsel %vm376, %v2297, 0
        %v2329 = vsel %vm376, %v2298, 0
        %v2332 = vsel %vm376, %v2299, 0
        %v2335 = vsel %vm376, %v2300, 0
        %v2338 = vsel %vm376, %v2301, 0
        %v2341 = vsel %vm376, %v2302, 0
        %v2344 = vsel %vm376, %v2303, 0
        %v2347 = vsel %vm376, %v2304, 0
        %v2350 = vsel %vm376, %v2305, 0
        %v2353 = vsel %vm376, %v2306, 0
        %v2356 = vsel %vm376, %v2307, 0
        %2358 = vmatprep.subr.mxu0 0.0
        %2359 = vmatpush1.msra.mxu0 %v2308
        %2360 = vmatprep.subr.mxu0 0.0
        %2361 = vmatpush1.msra.mxu0 %v2309
        %2362 = vmatprep.subr.mxu0 0.0
        %2363 = vmatpush1.msra.mxu0 0.0
        %2364 = vmatprep.subr.mxu0 0.0
        %2365 = vmatpush1.msra.mxu0 0.0
        %2366 = vmatprep.subr.mxu0 0.0
        %2367 = vmatpush1.msra.mxu0 0.0
        %2368 = vmatprep.subr.mxu0 0.0
        %2369 = vmatpush1.msra.mxu0 0.0
        %2370 = vmatprep.subr.mxu0 0.0
        %2371 = vmatpush1.msra.mxu0 0.0
        %2372 = vmatprep.subr.mxu0 0.0
        %2373 = vmatpush1.msra.mxu0 0.0
        %2374 = vmatprep.subr.mxu0 0.0
        %2375 = vmatpush1.msra.mxu0 0.0
        %2376 = vmatprep.subr.mxu0 0.0
        %2377 = vmatpush1.msra.mxu0 0.0
        %2378 = vmatprep.subr.mxu0 0.0
        %2379 = vmatpush1.msra.mxu0 0.0
        %2380 = vmatprep.subr.mxu0 0.0
        %2381 = vmatpush1.msra.mxu0 0.0
        %2382 = vmatprep.subr.mxu0 0.0
        %2383 = vmatpush1.msra.mxu0 0.0
        %2384 = vmatprep.subr.mxu0 0.0
        %2385 = vmatpush1.msra.mxu0 0.0
        %2386 = vmatprep.subr.mxu0 0.0
        %2387 = vmatpush1.msra.mxu0 0.0
        %2388 = vmatprep.subr.mxu0 0.0
        %2389 = vmatpush1.msra.mxu0 0.0
        %2390 = vmatprep.subr.mxu0 0.0
        %2391 = vmatpush1.msra.mxu0 0.0
        %2392 = vmatprep.subr.mxu0 0.0
        %2393 = vmatpush1.msra.mxu0 0.0
        %2394 = vmatprep.subr.mxu0 0.0
        %2395 = vmatpush1.msra.mxu0 0.0
        %2396 = vmatprep.subr.mxu0 0.0
        %2397 = vmatpush1.msra.mxu0 0.0
        %2398 = vmatprep.subr.mxu0 0.0
        %2399 = vmatpush1.msra.mxu0 0.0
        %2400 = vmatprep.subr.mxu0 0.0
        %2401 = vmatpush1.msra.mxu0 0.0
        %2402 = vmatprep.subr.mxu0 0.0
        %2403 = vmatpush1.msra.mxu0 0.0
        %2404 = vmatprep.subr.mxu0 0.0
        %2405 = vmatpush1.msra.mxu0 0.0
        %2406 = vmatprep.subr.mxu0 0.0
        %2407 = vmatpush1.msra.mxu0 0.0
        %2408 = vmatprep.subr.mxu0 0.0
        %2409 = vmatpush1.msra.mxu0 0.0
        %2410 = vmatprep.subr.mxu0 0.0
        %2411 = vmatpush1.msra.mxu0 0.0
        %2412 = vmatprep.subr.mxu0 0.0
        %2413 = vmatpush1.msra.mxu0 0.0
        %2414 = vmatprep.subr.mxu0 0.0
        %2415 = vmatpush1.msra.mxu0 0.0
        %2416 = vmatprep.subr.mxu0 0.0
        %2417 = vmatpush1.msra.mxu0 0.0
        %2418 = vmatprep.subr.mxu0 0.0
        %2419 = vmatpush1.msra.mxu0 0.0
        %2420 = vmatprep.subr.mxu0 0.0
        %2421 = vmatpush1.msra.mxu0 0.0
        %2422 = vmatprep.mubr.f32.mxu0 0.0
        %2423 = vmatmul.mubr.f32.gmra.mrb[0].mxu0 %v2311
        %v2424 = vpop.f32.mrb[0].mxu0
        %v2425 = vadd.f32 0.0, %v2424
        %v2426 = vpop.f32.mrb[0].mxu0
        %2427 = vmatprep.mubr.f32.mxu0 0.0
        %2428 = vmatmul.mubr.f32.gmra.mrb[0].mxu0 %v2314
        %v2429 = vpop.f32.mrb[0].mxu0
        %v2430 = vadd.f32 0.0, %v2429
        %v2431 = vpop.f32.mrb[0].mxu0
        %2432 = vmatprep.mubr.f32.mxu0 0.0
        %2433 = vmatmul.mubr.f32.gmra.mrb[0].mxu0 %v2317
        %v2434 = vpop.f32.mrb[0].mxu0
        %v2435 = vadd.f32 0.0, %v2434
        %v2436 = vpop.f32.mrb[0].mxu0
        %2437 = vmatprep.mubr.f32.mxu0 0.0
        %2438 = vmatmul.mubr.f32.gmra.mrb[0].mxu0 %v2320
        %v2439 = vpop.f32.mrb[0].mxu0
        %v2440 = vadd.f32 0.0, %v2439
        %v2441 = vpop.f32.mrb[0].mxu0
        %2442 = vmatprep.mubr.f32.mxu0 0.0
        %2443 = vmatmul.mubr.f32.gmra.mrb[0].mxu0 %v2323
        %v2444 = vpop.f32.mrb[0].mxu0
        %v2445 = vadd.f32 0.0, %v2444
        %v2446 = vpop.f32.mrb[0].mxu0
        %2447 = vmatprep.mubr.f32.mxu0 0.0
        %2448 = vmatmul.mubr.f32.gmra.mrb[0].mxu0 %v2326
        %v2449 = vpop.f32.mrb[0].mxu0
        %v2450 = vadd.f32 0.0, %v2449
        %v2451 = vpop.f32.mrb[0].mxu0
        %2452 = vmatprep.mubr.f32.mxu0 0.0
        %2453 = vmatmul.mubr.f32.gmra.mrb[0].mxu0 %v2329
        %v2454 = vpop.f32.mrb[0].mxu0
        %v2455 = vadd.f32 0.0, %v2454
        %v2456 = vpop.f32.mrb[0].mxu0
        %2457 = vmatprep.mubr.f32.mxu0 0.0
        %2458 = vmatmul.mubr.f32.gmra.mrb[0].mxu0 %v2332
        %v2459 = vpop.f32.mrb[0].mxu0
        %v2460 = vadd.f32 0.0, %v2459
        %v2461 = vpop.f32.mrb[0].mxu0
        %2462 = vmatprep.mubr.f32.mxu0 0.0
        %2463 = vmatmul.mubr.f32.gmra.mrb[0].mxu0 %v2335
        %v2464 = vpop.f32.mrb[0].mxu0
        %v2465 = vadd.f32 0.0, %v2464
        %v2466 = vpop.f32.mrb[0].mxu0
        %2467 = vmatprep.mubr.f32.mxu0 0.0
        %2468 = vmatmul.mubr.f32.gmra.mrb[0].mxu0 %v2338
        %v2469 = vpop.f32.mrb[0].mxu0
        %v2470 = vadd.f32 0.0, %v2469
        %v2471 = vpop.f32.mrb[0].mxu0
        %2472 = vmatprep.mubr.f32.mxu0 0.0
        %2473 = vmatmul.mubr.f32.gmra.mrb[0].mxu0 %v2341
        %v2474 = vpop.f32.mrb[0].mxu0
        %v2475 = vadd.f32 0.0, %v2474
        %v2476 = vpop.f32.mrb[0].mxu0
        %2477 = vmatprep.mubr.f32.mxu0 0.0
        %2478 = vmatmul.mubr.f32.gmra.mrb[0].mxu0 %v2344
        %v2479 = vpop.f32.mrb[0].mxu0
        %v2480 = vadd.f32 0.0, %v2479
        %v2481 = vpop.f32.mrb[0].mxu0
        %2482 = vmatprep.mubr.f32.mxu0 0.0
        %2483 = vmatmul.mubr.f32.gmra.mrb[0].mxu0 %v2347
        %v2484 = vpop.f32.mrb[0].mxu0
        %v2485 = vadd.f32 0.0, %v2484
        %v2486 = vpop.f32.mrb[0].mxu0
        %2487 = vmatprep.mubr.f32.mxu0 0.0
        %2488 = vmatmul.mubr.f32.gmra.mrb[0].mxu0 %v2350
        %v2489 = vpop.f32.mrb[0].mxu0
        %v2490 = vadd.f32 0.0, %v2489
        %v2491 = vpop.f32.mrb[0].mxu0
        %2492 = vmatprep.mubr.f32.mxu0 0.0
        %2493 = vmatmul.mubr.f32.gmra.mrb[0].mxu0 %v2353
        %v2494 = vpop.f32.mrb[0].mxu0
        %v2495 = vadd.f32 0.0, %v2494
        %v2496 = vpop.f32.mrb[0].mxu0
        %2497 = vmatprep.mubr.f32.mxu0 0.0
        %2498 = vmatmul.mubr.f32.gmra.mrb[0].mxu0 %v2356
        %v2499 = vpop.f32.mrb[0].mxu0
        %v2500 = vadd.f32 0.0, %v2499
        %v2501 = vpop.f32.mrb[0].mxu0
        %2502 = vdwg.mxu0
        %v2503 = vsel %vm577, %v2425, -inf
        %v2504 = vsel %vm577, %v2430, -inf
        %v2505 = vsel %vm577, %v2435, -inf
        %v2506 = vsel %vm577, %v2440, -inf
        %v2507 = vsel %vm577, %v2445, -inf
        %v2508 = vsel %vm577, %v2450, -inf
        %v2509 = vsel %vm577, %v2455, -inf
        %v2510 = vsel %vm577, %v2460, -inf
        %v2511 = vsel %vm577, %v2465, -inf
        %v2512 = vsel %vm577, %v2470, -inf
        %v2513 = vsel %vm577, %v2475, -inf
        %v2514 = vsel %vm577, %v2480, -inf
        %v2515 = vsel %vm577, %v2485, -inf
        %v2516 = vsel %vm577, %v2490, -inf
        %v2517 = vsel %vm577, %v2495, -inf
        %v2518 = vsel %vm577, %v2500, -inf
        %v2519 = vld [vmem:[#allocation2 + $0x380] sm:$0xff]
        %v2520 = vld [vmem:[#allocation2 + $0x388] sm:$0xff]
        %v2521 = vld [vmem:[#allocation2 + $0x390] sm:$0xff]
        %v2522 = vld [vmem:[#allocation2 + $0x398] sm:$0xff]
        %v2523 = vld [vmem:[#allocation2 + $0x3a0] sm:$0xff]
        %v2524 = vld [vmem:[#allocation2 + $0x3a8] sm:$0xff]
        %v2525 = vld [vmem:[#allocation2 + $0x3b0] sm:$0xff]
        %v2526 = vld [vmem:[#allocation2 + $0x3b8] sm:$0xff]
        %v2527 = vld [vmem:[#allocation2 + $0x3c0] sm:$0xff]
        %v2528 = vld [vmem:[#allocation2 + $0x3c8] sm:$0xff]
        %v2529 = vld [vmem:[#allocation2 + $0x3d0] sm:$0xff]
        %v2530 = vld [vmem:[#allocation2 + $0x3d8] sm:$0xff]
        %v2531 = vld [vmem:[#allocation2 + $0x3e0] sm:$0xff]
        %v2532 = vld [vmem:[#allocation2 + $0x3e8] sm:$0xff]
        %v2533 = vld [vmem:[#allocation2 + $0x3f0] sm:$0xff]
        %v2534 = vld [vmem:[#allocation2 + $0x3f8] sm:$0xff]
        %v2535 = vmax.f32 %v2519, %v2503
        %v2536 = vmax.f32 %v2520, %v2504
        %v2537 = vmax.f32 %v2521, %v2505
        %v2538 = vmax.f32 %v2522, %v2506
        %v2539 = vmax.f32 %v2523, %v2507
        %v2540 = vmax.f32 %v2524, %v2508
        %v2541 = vmax.f32 %v2525, %v2509
        %v2542 = vmax.f32 %v2526, %v2510
        %v2543 = vmax.f32 %v2527, %v2511
        %v2544 = vmax.f32 %v2528, %v2512
        %v2545 = vmax.f32 %v2529, %v2513
        %v2546 = vmax.f32 %v2530, %v2514
        %v2547 = vmax.f32 %v2531, %v2515
        %v2548 = vmax.f32 %v2532, %v2516
        %v2549 = vmax.f32 %v2533, %v2517
        %v2550 = vmax.f32 %v2534, %v2518
        %2551 = vst [vmem:[#allocation2 + $0x380] sm:$0xff] %v2535
        %2552 = vst [vmem:[#allocation2 + $0x388] sm:$0xff] %v2536
        %2553 = vst [vmem:[#allocation2 + $0x390] sm:$0xff] %v2537
        %2554 = vst [vmem:[#allocation2 + $0x398] sm:$0xff] %v2538
        %2555 = vst [vmem:[#allocation2 + $0x3a0] sm:$0xff] %v2539
        %2556 = vst [vmem:[#allocation2 + $0x3a8] sm:$0xff] %v2540
        %2557 = vst [vmem:[#allocation2 + $0x3b0] sm:$0xff] %v2541
        %2558 = vst [vmem:[#allocation2 + $0x3b8] sm:$0xff] %v2542
        %2559 = vst [vmem:[#allocation2 + $0x3c0] sm:$0xff] %v2543
        %2560 = vst [vmem:[#allocation2 + $0x3c8] sm:$0xff] %v2544
        %2561 = vst [vmem:[#allocation2 + $0x3d0] sm:$0xff] %v2545
        %2562 = vst [vmem:[#allocation2 + $0x3d8] sm:$0xff] %v2546
        %2563 = vst [vmem:[#allocation2 + $0x3e0] sm:$0xff] %v2547
        %2564 = vst [vmem:[#allocation2 + $0x3e8] sm:$0xff] %v2548
        %2565 = vst [vmem:[#allocation2 + $0x3f0] sm:$0xff] %v2549
        %2566 = vst [vmem:[#allocation2 + $0x3f8] sm:$0xff] %v2550
        %p2567 = scmp.eq.s32.totalorder %s19, 2
        // Predicated region
        $region75: #{tpu_custom_call.1} parent=65 // pred_check
          %p2568 = pneg %p2567
        $region76: #{tpu_custom_call.1} parent=65 // pred_check_branch
          %2570 = sbr.rel (%p2568) target = $region78
        $region77: #{tpu_custom_call.1} parent=65 // pred_region
          %v2571 = vld [vmem:[#allocation2] sm:$0xff]
          %v2572 = vld [vmem:[#allocation2 + $0x8] sm:$0xff]
          %v2573 = vld [vmem:[#allocation2 + $0x10] sm:$0xff]
          %v2574 = vld [vmem:[#allocation2 + $0x18] sm:$0xff]
          %v2575 = vld [vmem:[#allocation2 + $0x20] sm:$0xff]
          %v2576 = vld [vmem:[#allocation2 + $0x28] sm:$0xff]
          %v2577 = vld [vmem:[#allocation2 + $0x30] sm:$0xff]
          %v2578 = vld [vmem:[#allocation2 + $0x38] sm:$0xff]
          %v2579 = vld [vmem:[#allocation2 + $0x40] sm:$0xff]
          %v2580 = vld [vmem:[#allocation2 + $0x48] sm:$0xff]
          %v2581 = vld [vmem:[#allocation2 + $0x50] sm:$0xff]
          %v2582 = vld [vmem:[#allocation2 + $0x58] sm:$0xff]
          %v2583 = vld [vmem:[#allocation2 + $0x60] sm:$0xff]
          %v2584 = vld [vmem:[#allocation2 + $0x68] sm:$0xff]
          %v2585 = vld [vmem:[#allocation2 + $0x70] sm:$0xff]
          %v2586 = vld [vmem:[#allocation2 + $0x78] sm:$0xff]
          %v2587 = vld [vmem:[#allocation2 + $0x80] sm:$0xff]
          %v2588 = vld [vmem:[#allocation2 + $0x88] sm:$0xff]
          %v2589 = vld [vmem:[#allocation2 + $0x90] sm:$0xff]
          %v2590 = vld [vmem:[#allocation2 + $0x98] sm:$0xff]
          %v2591 = vld [vmem:[#allocation2 + $0xa0] sm:$0xff]
          %v2592 = vld [vmem:[#allocation2 + $0xa8] sm:$0xff]
          %v2593 = vld [vmem:[#allocation2 + $0xb0] sm:$0xff]
          %v2594 = vld [vmem:[#allocation2 + $0xb8] sm:$0xff]
          %v2595 = vld [vmem:[#allocation2 + $0xc0] sm:$0xff]
          %v2596 = vld [vmem:[#allocation2 + $0xc8] sm:$0xff]
          %v2597 = vld [vmem:[#allocation2 + $0xd0] sm:$0xff]
          %v2598 = vld [vmem:[#allocation2 + $0xd8] sm:$0xff]
          %v2599 = vld [vmem:[#allocation2 + $0xe0] sm:$0xff]
          %v2600 = vld [vmem:[#allocation2 + $0xe8] sm:$0xff]
          %v2601 = vld [vmem:[#allocation2 + $0xf0] sm:$0xff]
          %v2602 = vld [vmem:[#allocation2 + $0xf8] sm:$0xff]
          %v2603 = vld [vmem:[#allocation2 + $0x100] sm:$0xff]
          %v2604 = vld [vmem:[#allocation2 + $0x108] sm:$0xff]
          %v2605 = vld [vmem:[#allocation2 + $0x110] sm:$0xff]
          %v2606 = vld [vmem:[#allocation2 + $0x118] sm:$0xff]
          %v2607 = vld [vmem:[#allocation2 + $0x120] sm:$0xff]
          %v2608 = vld [vmem:[#allocation2 + $0x128] sm:$0xff]
          %v2609 = vld [vmem:[#allocation2 + $0x130] sm:$0xff]
          %v2610 = vld [vmem:[#allocation2 + $0x138] sm:$0xff]
          %v2611 = vld [vmem:[#allocation2 + $0x140] sm:$0xff]
          %v2612 = vld [vmem:[#allocation2 + $0x148] sm:$0xff]
          %v2613 = vld [vmem:[#allocation2 + $0x150] sm:$0xff]
          %v2614 = vld [vmem:[#allocation2 + $0x158] sm:$0xff]
          %v2615 = vld [vmem:[#allocation2 + $0x160] sm:$0xff]
          %v2616 = vld [vmem:[#allocation2 + $0x168] sm:$0xff]
          %v2617 = vld [vmem:[#allocation2 + $0x170] sm:$0xff]
          %v2618 = vld [vmem:[#allocation2 + $0x178] sm:$0xff]
          %v2619 = vld [vmem:[#allocation2 + $0x180] sm:$0xff]
          %v2620 = vld [vmem:[#allocation2 + $0x188] sm:$0xff]
          %v2621 = vld [vmem:[#allocation2 + $0x190] sm:$0xff]
          %v2622 = vld [vmem:[#allocation2 + $0x198] sm:$0xff]
          %v2623 = vld [vmem:[#allocation2 + $0x1a0] sm:$0xff]
          %v2624 = vld [vmem:[#allocation2 + $0x1a8] sm:$0xff]
          %v2625 = vld [vmem:[#allocation2 + $0x1b0] sm:$0xff]
          %v2626 = vld [vmem:[#allocation2 + $0x1b8] sm:$0xff]
          %v2627 = vld [vmem:[#allocation2 + $0x1c0] sm:$0xff]
          %v2628 = vld [vmem:[#allocation2 + $0x1c8] sm:$0xff]
          %v2629 = vld [vmem:[#allocation2 + $0x1d0] sm:$0xff]
          %v2630 = vld [vmem:[#allocation2 + $0x1d8] sm:$0xff]
          %v2631 = vld [vmem:[#allocation2 + $0x1e0] sm:$0xff]
          %v2632 = vld [vmem:[#allocation2 + $0x1e8] sm:$0xff]
          %v2633 = vld [vmem:[#allocation2 + $0x1f0] sm:$0xff]
          %v2634 = vld [vmem:[#allocation2 + $0x1f8] sm:$0xff]
          %v2635 = vld [vmem:[#allocation2 + $0x200] sm:$0xff]
          %v2636 = vld [vmem:[#allocation2 + $0x208] sm:$0xff]
          %v2637 = vld [vmem:[#allocation2 + $0x210] sm:$0xff]
          %v2638 = vld [vmem:[#allocation2 + $0x218] sm:$0xff]
          %v2639 = vld [vmem:[#allocation2 + $0x220] sm:$0xff]
          %v2640 = vld [vmem:[#allocation2 + $0x228] sm:$0xff]
          %v2641 = vld [vmem:[#allocation2 + $0x230] sm:$0xff]
          %v2642 = vld [vmem:[#allocation2 + $0x238] sm:$0xff]
          %v2643 = vld [vmem:[#allocation2 + $0x240] sm:$0xff]
          %v2644 = vld [vmem:[#allocation2 + $0x248] sm:$0xff]
          %v2645 = vld [vmem:[#allocation2 + $0x250] sm:$0xff]
          %v2646 = vld [vmem:[#allocation2 + $0x258] sm:$0xff]
          %v2647 = vld [vmem:[#allocation2 + $0x260] sm:$0xff]
          %v2648 = vld [vmem:[#allocation2 + $0x268] sm:$0xff]
          %v2649 = vld [vmem:[#allocation2 + $0x270] sm:$0xff]
          %v2650 = vld [vmem:[#allocation2 + $0x278] sm:$0xff]
          %v2651 = vld [vmem:[#allocation2 + $0x280] sm:$0xff]
          %v2652 = vld [vmem:[#allocation2 + $0x288] sm:$0xff]
          %v2653 = vld [vmem:[#allocation2 + $0x290] sm:$0xff]
          %v2654 = vld [vmem:[#allocation2 + $0x298] sm:$0xff]
          %v2655 = vld [vmem:[#allocation2 + $0x2a0] sm:$0xff]
          %v2656 = vld [vmem:[#allocation2 + $0x2a8] sm:$0xff]
          %v2657 = vld [vmem:[#allocation2 + $0x2b0] sm:$0xff]
          %v2658 = vld [vmem:[#allocation2 + $0x2b8] sm:$0xff]
          %v2659 = vld [vmem:[#allocation2 + $0x2c0] sm:$0xff]
          %v2660 = vld [vmem:[#allocation2 + $0x2c8] sm:$0xff]
          %v2661 = vld [vmem:[#allocation2 + $0x2d0] sm:$0xff]
          %v2662 = vld [vmem:[#allocation2 + $0x2d8] sm:$0xff]
          %v2663 = vld [vmem:[#allocation2 + $0x2e0] sm:$0xff]
          %v2664 = vld [vmem:[#allocation2 + $0x2e8] sm:$0xff]
          %v2665 = vld [vmem:[#allocation2 + $0x2f0] sm:$0xff]
          %v2666 = vld [vmem:[#allocation2 + $0x2f8] sm:$0xff]
          %v2667 = vld [vmem:[#allocation2 + $0x300] sm:$0xff]
          %v2668 = vld [vmem:[#allocation2 + $0x308] sm:$0xff]
          %v2669 = vld [vmem:[#allocation2 + $0x310] sm:$0xff]
          %v2670 = vld [vmem:[#allocation2 + $0x318] sm:$0xff]
          %v2671 = vld [vmem:[#allocation2 + $0x320] sm:$0xff]
          %v2672 = vld [vmem:[#allocation2 + $0x328] sm:$0xff]
          %v2673 = vld [vmem:[#allocation2 + $0x330] sm:$0xff]
          %v2674 = vld [vmem:[#allocation2 + $0x338] sm:$0xff]
          %v2675 = vld [vmem:[#allocation2 + $0x340] sm:$0xff]
          %v2676 = vld [vmem:[#allocation2 + $0x348] sm:$0xff]
          %v2677 = vld [vmem:[#allocation2 + $0x350] sm:$0xff]
          %v2678 = vld [vmem:[#allocation2 + $0x358] sm:$0xff]
          %v2679 = vld [vmem:[#allocation2 + $0x360] sm:$0xff]
          %v2680 = vld [vmem:[#allocation2 + $0x368] sm:$0xff]
          %v2681 = vld [vmem:[#allocation2 + $0x370] sm:$0xff]
          %v2682 = vld [vmem:[#allocation2 + $0x378] sm:$0xff]
          %v2683 = vld [vmem:[#allocation2 + $0x380] sm:$0xff]
          %v2684 = vld [vmem:[#allocation2 + $0x388] sm:$0xff]
          %v2685 = vld [vmem:[#allocation2 + $0x390] sm:$0xff]
          %v2686 = vld [vmem:[#allocation2 + $0x398] sm:$0xff]
          %v2687 = vld [vmem:[#allocation2 + $0x3a0] sm:$0xff]
          %v2688 = vld [vmem:[#allocation2 + $0x3a8] sm:$0xff]
          %v2689 = vld [vmem:[#allocation2 + $0x3b0] sm:$0xff]
          %v2690 = vld [vmem:[#allocation2 + $0x3b8] sm:$0xff]
          %v2691 = vld [vmem:[#allocation2 + $0x3c0] sm:$0xff]
          %v2692 = vld [vmem:[#allocation2 + $0x3c8] sm:$0xff]
          %v2693 = vld [vmem:[#allocation2 + $0x3d0] sm:$0xff]
          %v2694 = vld [vmem:[#allocation2 + $0x3d8] sm:$0xff]
          %v2695 = vld [vmem:[#allocation2 + $0x3e0] sm:$0xff]
          %v2696 = vld [vmem:[#allocation2 + $0x3e8] sm:$0xff]
          %v2697 = vld [vmem:[#allocation2 + $0x3f0] sm:$0xff]
          %v2698 = vld [vmem:[#allocation2 + $0x3f8] sm:$0xff]
          %2699 = vmax.xlane.f32.xlu0 %v2571
          %v2700 = vpop.xlane.xlu0 %2699
          %2701 = vmax.xlane.f32.xlu0 %v2572
          %v2702 = vpop.xlane.xlu0 %2701
          %2703 = vmax.xlane.f32.xlu0 %v2573
          %v2704 = vpop.xlane.xlu0 %2703
          %2705 = vmax.xlane.f32.xlu0 %v2574
          %v2706 = vpop.xlane.xlu0 %2705
          %2707 = vmax.xlane.f32.xlu0 %v2575
          %v2708 = vpop.xlane.xlu0 %2707
          %2709 = vmax.xlane.f32.xlu0 %v2576
          %v2710 = vpop.xlane.xlu0 %2709
          %2711 = vmax.xlane.f32.xlu0 %v2577
          %v2712 = vpop.xlane.xlu0 %2711
          %2713 = vmax.xlane.f32.xlu0 %v2578
          %v2714 = vpop.xlane.xlu0 %2713
          %2715 = vmax.xlane.f32.xlu0 %v2579
          %v2716 = vpop.xlane.xlu0 %2715
          %2717 = vmax.xlane.f32.xlu0 %v2580
          %v2718 = vpop.xlane.xlu0 %2717
          %2719 = vmax.xlane.f32.xlu0 %v2581
          %v2720 = vpop.xlane.xlu0 %2719
          %2721 = vmax.xlane.f32.xlu0 %v2582
          %v2722 = vpop.xlane.xlu0 %2721
          %2723 = vmax.xlane.f32.xlu0 %v2583
          %v2724 = vpop.xlane.xlu0 %2723
          %2725 = vmax.xlane.f32.xlu0 %v2584
          %v2726 = vpop.xlane.xlu0 %2725
          %2727 = vmax.xlane.f32.xlu0 %v2585
          %v2728 = vpop.xlane.xlu0 %2727
          %2729 = vmax.xlane.f32.xlu0 %v2586
          %v2730 = vpop.xlane.xlu0 %2729
          %2731 = vmax.xlane.f32.xlu0 %v2587
          %v2732 = vpop.xlane.xlu0 %2731
          %2733 = vmax.xlane.f32.xlu0 %v2588
          %v2734 = vpop.xlane.xlu0 %2733
          %2735 = vmax.xlane.f32.xlu0 %v2589
          %v2736 = vpop.xlane.xlu0 %2735
          %2737 = vmax.xlane.f32.xlu0 %v2590
          %v2738 = vpop.xlane.xlu0 %2737
          %2739 = vmax.xlane.f32.xlu0 %v2591
          %v2740 = vpop.xlane.xlu0 %2739
          %2741 = vmax.xlane.f32.xlu0 %v2592
          %v2742 = vpop.xlane.xlu0 %2741
          %2743 = vmax.xlane.f32.xlu0 %v2593
          %v2744 = vpop.xlane.xlu0 %2743
          %2745 = vmax.xlane.f32.xlu0 %v2594
          %v2746 = vpop.xlane.xlu0 %2745
          %2747 = vmax.xlane.f32.xlu0 %v2595
          %v2748 = vpop.xlane.xlu0 %2747
          %2749 = vmax.xlane.f32.xlu0 %v2596
          %v2750 = vpop.xlane.xlu0 %2749
          %2751 = vmax.xlane.f32.xlu0 %v2597
          %v2752 = vpop.xlane.xlu0 %2751
          %2753 = vmax.xlane.f32.xlu0 %v2598
          %v2754 = vpop.xlane.xlu0 %2753
          %2755 = vmax.xlane.f32.xlu0 %v2599
          %v2756 = vpop.xlane.xlu0 %2755
          %2757 = vmax.xlane.f32.xlu0 %v2600
          %v2758 = vpop.xlane.xlu0 %2757
          %2759 = vmax.xlane.f32.xlu0 %v2601
          %v2760 = vpop.xlane.xlu0 %2759
          %2761 = vmax.xlane.f32.xlu0 %v2602
          %v2762 = vpop.xlane.xlu0 %2761
          %2763 = vmax.xlane.f32.xlu0 %v2603
          %v2764 = vpop.xlane.xlu0 %2763
          %2765 = vmax.xlane.f32.xlu0 %v2604
          %v2766 = vpop.xlane.xlu0 %2765
          %2767 = vmax.xlane.f32.xlu0 %v2605
          %v2768 = vpop.xlane.xlu0 %2767
          %2769 = vmax.xlane.f32.xlu0 %v2606
          %v2770 = vpop.xlane.xlu0 %2769
          %2771 = vmax.xlane.f32.xlu0 %v2607
          %v2772 = vpop.xlane.xlu0 %2771
          %2773 = vmax.xlane.f32.xlu0 %v2608
          %v2774 = vpop.xlane.xlu0 %2773
          %2775 = vmax.xlane.f32.xlu0 %v2609
          %v2776 = vpop.xlane.xlu0 %2775
          %2777 = vmax.xlane.f32.xlu0 %v2610
          %v2778 = vpop.xlane.xlu0 %2777
          %2779 = vmax.xlane.f32.xlu0 %v2611
          %v2780 = vpop.xlane.xlu0 %2779
          %2781 = vmax.xlane.f32.xlu0 %v2612
          %v2782 = vpop.xlane.xlu0 %2781
          %2783 = vmax.xlane.f32.xlu0 %v2613
          %v2784 = vpop.xlane.xlu0 %2783
          %2785 = vmax.xlane.f32.xlu0 %v2614
          %v2786 = vpop.xlane.xlu0 %2785
          %2787 = vmax.xlane.f32.xlu0 %v2615
          %v2788 = vpop.xlane.xlu0 %2787
          %2789 = vmax.xlane.f32.xlu0 %v2616
          %v2790 = vpop.xlane.xlu0 %2789
          %2791 = vmax.xlane.f32.xlu0 %v2617
          %v2792 = vpop.xlane.xlu0 %2791
          %2793 = vmax.xlane.f32.xlu0 %v2618
          %v2794 = vpop.xlane.xlu0 %2793
          %2795 = vmax.xlane.f32.xlu0 %v2619
          %v2796 = vpop.xlane.xlu0 %2795
          %2797 = vmax.xlane.f32.xlu0 %v2620
          %v2798 = vpop.xlane.xlu0 %2797
          %2799 = vmax.xlane.f32.xlu0 %v2621
          %v2800 = vpop.xlane.xlu0 %2799
          %2801 = vmax.xlane.f32.xlu0 %v2622
          %v2802 = vpop.xlane.xlu0 %2801
          %2803 = vmax.xlane.f32.xlu0 %v2623
          %v2804 = vpop.xlane.xlu0 %2803
          %2805 = vmax.xlane.f32.xlu0 %v2624
          %v2806 = vpop.xlane.xlu0 %2805
          %2807 = vmax.xlane.f32.xlu0 %v2625
          %v2808 = vpop.xlane.xlu0 %2807
          %2809 = vmax.xlane.f32.xlu0 %v2626
          %v2810 = vpop.xlane.xlu0 %2809
          %2811 = vmax.xlane.f32.xlu0 %v2627
          %v2812 = vpop.xlane.xlu0 %2811
          %2813 = vmax.xlane.f32.xlu0 %v2628
          %v2814 = vpop.xlane.xlu0 %2813
          %2815 = vmax.xlane.f32.xlu0 %v2629
          %v2816 = vpop.xlane.xlu0 %2815
          %2817 = vmax.xlane.f32.xlu0 %v2630
          %v2818 = vpop.xlane.xlu0 %2817
          %2819 = vmax.xlane.f32.xlu0 %v2631
          %v2820 = vpop.xlane.xlu0 %2819
          %2821 = vmax.xlane.f32.xlu0 %v2632
          %v2822 = vpop.xlane.xlu0 %2821
          %2823 = vmax.xlane.f32.xlu0 %v2633
          %v2824 = vpop.xlane.xlu0 %2823
          %2825 = vmax.xlane.f32.xlu0 %v2634
          %v2826 = vpop.xlane.xlu0 %2825
          %2827 = vmax.xlane.f32.xlu0 %v2635
          %v2828 = vpop.xlane.xlu0 %2827
          %2829 = vmax.xlane.f32.xlu0 %v2636
          %v2830 = vpop.xlane.xlu0 %2829
          %2831 = vmax.xlane.f32.xlu0 %v2637
          %v2832 = vpop.xlane.xlu0 %2831
          %2833 = vmax.xlane.f32.xlu0 %v2638
          %v2834 = vpop.xlane.xlu0 %2833
          %2835 = vmax.xlane.f32.xlu0 %v2639
          %v2836 = vpop.xlane.xlu0 %2835
          %2837 = vmax.xlane.f32.xlu0 %v2640
          %v2838 = vpop.xlane.xlu0 %2837
          %2839 = vmax.xlane.f32.xlu0 %v2641
          %v2840 = vpop.xlane.xlu0 %2839
          %2841 = vmax.xlane.f32.xlu0 %v2642
          %v2842 = vpop.xlane.xlu0 %2841
          %2843 = vmax.xlane.f32.xlu0 %v2643
          %v2844 = vpop.xlane.xlu0 %2843
          %2845 = vmax.xlane.f32.xlu0 %v2644
          %v2846 = vpop.xlane.xlu0 %2845
          %2847 = vmax.xlane.f32.xlu0 %v2645
          %v2848 = vpop.xlane.xlu0 %2847
          %2849 = vmax.xlane.f32.xlu0 %v2646
          %v2850 = vpop.xlane.xlu0 %2849
          %2851 = vmax.xlane.f32.xlu0 %v2647
          %v2852 = vpop.xlane.xlu0 %2851
          %2853 = vmax.xlane.f32.xlu0 %v2648
          %v2854 = vpop.xlane.xlu0 %2853
          %2855 = vmax.xlane.f32.xlu0 %v2649
          %v2856 = vpop.xlane.xlu0 %2855
          %2857 = vmax.xlane.f32.xlu0 %v2650
          %v2858 = vpop.xlane.xlu0 %2857
          %2859 = vmax.xlane.f32.xlu0 %v2651
          %v2860 = vpop.xlane.xlu0 %2859
          %2861 = vmax.xlane.f32.xlu0 %v2652
          %v2862 = vpop.xlane.xlu0 %2861
          %2863 = vmax.xlane.f32.xlu0 %v2653
          %v2864 = vpop.xlane.xlu0 %2863
          %2865 = vmax.xlane.f32.xlu0 %v2654
          %v2866 = vpop.xlane.xlu0 %2865
          %2867 = vmax.xlane.f32.xlu0 %v2655
          %v2868 = vpop.xlane.xlu0 %2867
          %2869 = vmax.xlane.f32.xlu0 %v2656
          %v2870 = vpop.xlane.xlu0 %2869
          %2871 = vmax.xlane.f32.xlu0 %v2657
          %v2872 = vpop.xlane.xlu0 %2871
          %2873 = vmax.xlane.f32.xlu0 %v2658
          %v2874 = vpop.xlane.xlu0 %2873
          %2875 = vmax.xlane.f32.xlu0 %v2659
          %v2876 = vpop.xlane.xlu0 %2875
          %2877 = vmax.xlane.f32.xlu0 %v2660
          %v2878 = vpop.xlane.xlu0 %2877
          %2879 = vmax.xlane.f32.xlu0 %v2661
          %v2880 = vpop.xlane.xlu0 %2879
          %2881 = vmax.xlane.f32.xlu0 %v2662
          %v2882 = vpop.xlane.xlu0 %2881
          %2883 = vmax.xlane.f32.xlu0 %v2663
          %v2884 = vpop.xlane.xlu0 %2883
          %2885 = vmax.xlane.f32.xlu0 %v2664
          %v2886 = vpop.xlane.xlu0 %2885
          %2887 = vmax.xlane.f32.xlu0 %v2665
          %v2888 = vpop.xlane.xlu0 %2887
          %2889 = vmax.xlane.f32.xlu0 %v2666
          %v2890 = vpop.xlane.xlu0 %2889
          %2891 = vmax.xlane.f32.xlu0 %v2667
          %v2892 = vpop.xlane.xlu0 %2891
          %2893 = vmax.xlane.f32.xlu0 %v2668
          %v2894 = vpop.xlane.xlu0 %2893
          %2895 = vmax.xlane.f32.xlu0 %v2669
          %v2896 = vpop.xlane.xlu0 %2895
          %2897 = vmax.xlane.f32.xlu0 %v2670
          %v2898 = vpop.xlane.xlu0 %2897
          %2899 = vmax.xlane.f32.xlu0 %v2671
          %v2900 = vpop.xlane.xlu0 %2899
          %2901 = vmax.xlane.f32.xlu0 %v2672
          %v2902 = vpop.xlane.xlu0 %2901
          %2903 = vmax.xlane.f32.xlu0 %v2673
          %v2904 = vpop.xlane.xlu0 %2903
          %2905 = vmax.xlane.f32.xlu0 %v2674
          %v2906 = vpop.xlane.xlu0 %2905
          %2907 = vmax.xlane.f32.xlu0 %v2675
          %v2908 = vpop.xlane.xlu0 %2907
          %2909 = vmax.xlane.f32.xlu0 %v2676
          %v2910 = vpop.xlane.xlu0 %2909
          %2911 = vmax.xlane.f32.xlu0 %v2677
          %v2912 = vpop.xlane.xlu0 %2911
          %2913 = vmax.xlane.f32.xlu0 %v2678
          %v2914 = vpop.xlane.xlu0 %2913
          %2915 = vmax.xlane.f32.xlu0 %v2679
          %v2916 = vpop.xlane.xlu0 %2915
          %2917 = vmax.xlane.f32.xlu0 %v2680
          %v2918 = vpop.xlane.xlu0 %2917
          %2919 = vmax.xlane.f32.xlu0 %v2681
          %v2920 = vpop.xlane.xlu0 %2919
          %2921 = vmax.xlane.f32.xlu0 %v2682
          %v2922 = vpop.xlane.xlu0 %2921
          %2923 = vmax.xlane.f32.xlu0 %v2683
          %v2924 = vpop.xlane.xlu0 %2923
          %2925 = vmax.xlane.f32.xlu0 %v2684
          %v2926 = vpop.xlane.xlu0 %2925
          %2927 = vmax.xlane.f32.xlu0 %v2685
          %v2928 = vpop.xlane.xlu0 %2927
          %2929 = vmax.xlane.f32.xlu0 %v2686
          %v2930 = vpop.xlane.xlu0 %2929
          %2931 = vmax.xlane.f32.xlu0 %v2687
          %v2932 = vpop.xlane.xlu0 %2931
          %2933 = vmax.xlane.f32.xlu0 %v2688
          %v2934 = vpop.xlane.xlu0 %2933
          %2935 = vmax.xlane.f32.xlu0 %v2689
          %v2936 = vpop.xlane.xlu0 %2935
          %2937 = vmax.xlane.f32.xlu0 %v2690
          %v2938 = vpop.xlane.xlu0 %2937
          %2939 = vmax.xlane.f32.xlu0 %v2691
          %v2940 = vpop.xlane.xlu0 %2939
          %2941 = vmax.xlane.f32.xlu0 %v2692
          %v2942 = vpop.xlane.xlu0 %2941
          %2943 = vmax.xlane.f32.xlu0 %v2693
          %v2944 = vpop.xlane.xlu0 %2943
          %2945 = vmax.xlane.f32.xlu0 %v2694
          %v2946 = vpop.xlane.xlu0 %2945
          %2947 = vmax.xlane.f32.xlu0 %v2695
          %v2948 = vpop.xlane.xlu0 %2947
          %2949 = vmax.xlane.f32.xlu0 %v2696
          %v2950 = vpop.xlane.xlu0 %2949
          %2951 = vmax.xlane.f32.xlu0 %v2697
          %v2952 = vpop.xlane.xlu0 %2951
          %2953 = vmax.xlane.f32.xlu0 %v2698
          %v2954 = vpop.xlane.xlu0 %2953
          %v2955 = vld [vmem:[%s2] sm:$0xff]
          %v2956 = vld [vmem:[%s2 + $0x8] sm:$0xff]
          %v2957 = vld [vmem:[%s2 + $0x10] sm:$0xff]
          %v2958 = vld [vmem:[%s2 + $0x18] sm:$0xff]
          %v2959 = vld [vmem:[%s2 + $0x20] sm:$0xff]
          %v2960 = vld [vmem:[%s2 + $0x28] sm:$0xff]
          %v2961 = vld [vmem:[%s2 + $0x30] sm:$0xff]
          %v2962 = vld [vmem:[%s2 + $0x38] sm:$0xff]
          %v2963 = vld [vmem:[%s2 + $0x40] sm:$0xff]
          %v2964 = vld [vmem:[%s2 + $0x48] sm:$0xff]
          %v2965 = vld [vmem:[%s2 + $0x50] sm:$0xff]
          %v2966 = vld [vmem:[%s2 + $0x58] sm:$0xff]
          %v2967 = vld [vmem:[%s2 + $0x60] sm:$0xff]
          %v2968 = vld [vmem:[%s2 + $0x68] sm:$0xff]
          %v2969 = vld [vmem:[%s2 + $0x70] sm:$0xff]
          %v2970 = vld [vmem:[%s2 + $0x78] sm:$0xff]
          %v2971 = vld [vmem:[%s2 + $0x80] sm:$0xff]
          %v2972 = vld [vmem:[%s2 + $0x88] sm:$0xff]
          %v2973 = vld [vmem:[%s2 + $0x90] sm:$0xff]
          %v2974 = vld [vmem:[%s2 + $0x98] sm:$0xff]
          %v2975 = vld [vmem:[%s2 + $0xa0] sm:$0xff]
          %v2976 = vld [vmem:[%s2 + $0xa8] sm:$0xff]
          %v2977 = vld [vmem:[%s2 + $0xb0] sm:$0xff]
          %v2978 = vld [vmem:[%s2 + $0xb8] sm:$0xff]
          %v2979 = vld [vmem:[%s2 + $0xc0] sm:$0xff]
          %v2980 = vld [vmem:[%s2 + $0xc8] sm:$0xff]
          %v2981 = vld [vmem:[%s2 + $0xd0] sm:$0xff]
          %v2982 = vld [vmem:[%s2 + $0xd8] sm:$0xff]
          %v2983 = vld [vmem:[%s2 + $0xe0] sm:$0xff]
          %v2984 = vld [vmem:[%s2 + $0xe8] sm:$0xff]
          %v2985 = vld [vmem:[%s2 + $0xf0] sm:$0xff]
          %v2986 = vld [vmem:[%s2 + $0xf8] sm:$0xff]
          %v2987 = vld [vmem:[%s2 + $0x100] sm:$0xff]
          %v2988 = vld [vmem:[%s2 + $0x108] sm:$0xff]
          %v2989 = vld [vmem:[%s2 + $0x110] sm:$0xff]
          %v2990 = vld [vmem:[%s2 + $0x118] sm:$0xff]
          %v2991 = vld [vmem:[%s2 + $0x120] sm:$0xff]
          %v2992 = vld [vmem:[%s2 + $0x128] sm:$0xff]
          %v2993 = vld [vmem:[%s2 + $0x130] sm:$0xff]
          %v2994 = vld [vmem:[%s2 + $0x138] sm:$0xff]
          %v2995 = vld [vmem:[%s2 + $0x140] sm:$0xff]
          %v2996 = vld [vmem:[%s2 + $0x148] sm:$0xff]
          %v2997 = vld [vmem:[%s2 + $0x150] sm:$0xff]
          %v2998 = vld [vmem:[%s2 + $0x158] sm:$0xff]
          %v2999 = vld [vmem:[%s2 + $0x160] sm:$0xff]
          %v3000 = vld [vmem:[%s2 + $0x168] sm:$0xff]
          %v3001 = vld [vmem:[%s2 + $0x170] sm:$0xff]
          %v3002 = vld [vmem:[%s2 + $0x178] sm:$0xff]
          %v3003 = vld [vmem:[%s2 + $0x180] sm:$0xff]
          %v3004 = vld [vmem:[%s2 + $0x188] sm:$0xff]
          %v3005 = vld [vmem:[%s2 + $0x190] sm:$0xff]
          %v3006 = vld [vmem:[%s2 + $0x198] sm:$0xff]
          %v3007 = vld [vmem:[%s2 + $0x1a0] sm:$0xff]
          %v3008 = vld [vmem:[%s2 + $0x1a8] sm:$0xff]
          %v3009 = vld [vmem:[%s2 + $0x1b0] sm:$0xff]
          %v3010 = vld [vmem:[%s2 + $0x1b8] sm:$0xff]
          %v3011 = vld [vmem:[%s2 + $0x1c0] sm:$0xff]
          %v3012 = vld [vmem:[%s2 + $0x1c8] sm:$0xff]
          %v3013 = vld [vmem:[%s2 + $0x1d0] sm:$0xff]
          %v3014 = vld [vmem:[%s2 + $0x1d8] sm:$0xff]
          %v3015 = vld [vmem:[%s2 + $0x1e0] sm:$0xff]
          %v3016 = vld [vmem:[%s2 + $0x1e8] sm:$0xff]
          %v3017 = vld [vmem:[%s2 + $0x1f0] sm:$0xff]
          %v3018 = vld [vmem:[%s2 + $0x1f8] sm:$0xff]
          %v3019 = vld [vmem:[%s2 + $0x200] sm:$0xff]
          %v3020 = vld [vmem:[%s2 + $0x208] sm:$0xff]
          %v3021 = vld [vmem:[%s2 + $0x210] sm:$0xff]
          %v3022 = vld [vmem:[%s2 + $0x218] sm:$0xff]
          %v3023 = vld [vmem:[%s2 + $0x220] sm:$0xff]
          %v3024 = vld [vmem:[%s2 + $0x228] sm:$0xff]
          %v3025 = vld [vmem:[%s2 + $0x230] sm:$0xff]
          %v3026 = vld [vmem:[%s2 + $0x238] sm:$0xff]
          %v3027 = vld [vmem:[%s2 + $0x240] sm:$0xff]
          %v3028 = vld [vmem:[%s2 + $0x248] sm:$0xff]
          %v3029 = vld [vmem:[%s2 + $0x250] sm:$0xff]
          %v3030 = vld [vmem:[%s2 + $0x258] sm:$0xff]
          %v3031 = vld [vmem:[%s2 + $0x260] sm:$0xff]
          %v3032 = vld [vmem:[%s2 + $0x268] sm:$0xff]
          %v3033 = vld [vmem:[%s2 + $0x270] sm:$0xff]
          %v3034 = vld [vmem:[%s2 + $0x278] sm:$0xff]
          %v3035 = vld [vmem:[%s2 + $0x280] sm:$0xff]
          %v3036 = vld [vmem:[%s2 + $0x288] sm:$0xff]
          %v3037 = vld [vmem:[%s2 + $0x290] sm:$0xff]
          %v3038 = vld [vmem:[%s2 + $0x298] sm:$0xff]
          %v3039 = vld [vmem:[%s2 + $0x2a0] sm:$0xff]
          %v3040 = vld [vmem:[%s2 + $0x2a8] sm:$0xff]
          %v3041 = vld [vmem:[%s2 + $0x2b0] sm:$0xff]
          %v3042 = vld [vmem:[%s2 + $0x2b8] sm:$0xff]
          %v3043 = vld [vmem:[%s2 + $0x2c0] sm:$0xff]
          %v3044 = vld [vmem:[%s2 + $0x2c8] sm:$0xff]
          %v3045 = vld [vmem:[%s2 + $0x2d0] sm:$0xff]
          %v3046 = vld [vmem:[%s2 + $0x2d8] sm:$0xff]
          %v3047 = vld [vmem:[%s2 + $0x2e0] sm:$0xff]
          %v3048 = vld [vmem:[%s2 + $0x2e8] sm:$0xff]
          %v3049 = vld [vmem:[%s2 + $0x2f0] sm:$0xff]
          %v3050 = vld [vmem:[%s2 + $0x2f8] sm:$0xff]
          %v3051 = vld [vmem:[%s2 + $0x300] sm:$0xff]
          %v3052 = vld [vmem:[%s2 + $0x308] sm:$0xff]
          %v3053 = vld [vmem:[%s2 + $0x310] sm:$0xff]
          %v3054 = vld [vmem:[%s2 + $0x318] sm:$0xff]
          %v3055 = vld [vmem:[%s2 + $0x320] sm:$0xff]
          %v3056 = vld [vmem:[%s2 + $0x328] sm:$0xff]
          %v3057 = vld [vmem:[%s2 + $0x330] sm:$0xff]
          %v3058 = vld [vmem:[%s2 + $0x338] sm:$0xff]
          %v3059 = vld [vmem:[%s2 + $0x340] sm:$0xff]
          %v3060 = vld [vmem:[%s2 + $0x348] sm:$0xff]
          %v3061 = vld [vmem:[%s2 + $0x350] sm:$0xff]
          %v3062 = vld [vmem:[%s2 + $0x358] sm:$0xff]
          %v3063 = vld [vmem:[%s2 + $0x360] sm:$0xff]
          %v3064 = vld [vmem:[%s2 + $0x368] sm:$0xff]
          %v3065 = vld [vmem:[%s2 + $0x370] sm:$0xff]
          %v3066 = vld [vmem:[%s2 + $0x378] sm:$0xff]
          %v3067 = vld [vmem:[%s2 + $0x380] sm:$0xff]
          %v3068 = vld [vmem:[%s2 + $0x388] sm:$0xff]
          %v3069 = vld [vmem:[%s2 + $0x390] sm:$0xff]
          %v3070 = vld [vmem:[%s2 + $0x398] sm:$0xff]
          %v3071 = vld [vmem:[%s2 + $0x3a0] sm:$0xff]
          %v3072 = vld [vmem:[%s2 + $0x3a8] sm:$0xff]
          %v3073 = vld [vmem:[%s2 + $0x3b0] sm:$0xff]
          %v3074 = vld [vmem:[%s2 + $0x3b8] sm:$0xff]
          %v3075 = vld [vmem:[%s2 + $0x3c0] sm:$0xff]
          %v3076 = vld [vmem:[%s2 + $0x3c8] sm:$0xff]
          %v3077 = vld [vmem:[%s2 + $0x3d0] sm:$0xff]
          %v3078 = vld [vmem:[%s2 + $0x3d8] sm:$0xff]
          %v3079 = vld [vmem:[%s2 + $0x3e0] sm:$0xff]
          %v3080 = vld [vmem:[%s2 + $0x3e8] sm:$0xff]
          %v3081 = vld [vmem:[%s2 + $0x3f0] sm:$0xff]
          %v3082 = vld [vmem:[%s2 + $0x3f8] sm:$0xff]
          %v3083 = vadd.f32 %v2700, %v2955
          %v3084 = vadd.f32 %v2702, %v2956
          %v3085 = vadd.f32 %v2704, %v2957
          %v3086 = vadd.f32 %v2706, %v2958
          %v3087 = vadd.f32 %v2708, %v2959
          %v3088 = vadd.f32 %v2710, %v2960
          %v3089 = vadd.f32 %v2712, %v2961
          %v3090 = vadd.f32 %v2714, %v2962
          %v3091 = vadd.f32 %v2716, %v2963
          %v3092 = vadd.f32 %v2718, %v2964
          %v3093 = vadd.f32 %v2720, %v2965
          %v3094 = vadd.f32 %v2722, %v2966
          %v3095 = vadd.f32 %v2724, %v2967
          %v3096 = vadd.f32 %v2726, %v2968
          %v3097 = vadd.f32 %v2728, %v2969
          %v3098 = vadd.f32 %v2730, %v2970
          %v3099 = vadd.f32 %v2732, %v2971
          %v3100 = vadd.f32 %v2734, %v2972
          %v3101 = vadd.f32 %v2736, %v2973
          %v3102 = vadd.f32 %v2738, %v2974
          %v3103 = vadd.f32 %v2740, %v2975
          %v3104 = vadd.f32 %v2742, %v2976
          %v3105 = vadd.f32 %v2744, %v2977
          %v3106 = vadd.f32 %v2746, %v2978
          %v3107 = vadd.f32 %v2748, %v2979
          %v3108 = vadd.f32 %v2750, %v2980
          %v3109 = vadd.f32 %v2752, %v2981
          %v3110 = vadd.f32 %v2754, %v2982
          %v3111 = vadd.f32 %v2756, %v2983
          %v3112 = vadd.f32 %v2758, %v2984
          %v3113 = vadd.f32 %v2760, %v2985
          %v3114 = vadd.f32 %v2762, %v2986
          %v3115 = vadd.f32 %v2764, %v2987
          %v3116 = vadd.f32 %v2766, %v2988
          %v3117 = vadd.f32 %v2768, %v2989
          %v3118 = vadd.f32 %v2770, %v2990
          %v3119 = vadd.f32 %v2772, %v2991
          %v3120 = vadd.f32 %v2774, %v2992
          %v3121 = vadd.f32 %v2776, %v2993
          %v3122 = vadd.f32 %v2778, %v2994
          %v3123 = vadd.f32 %v2780, %v2995
          %v3124 = vadd.f32 %v2782, %v2996
          %v3125 = vadd.f32 %v2784, %v2997
          %v3126 = vadd.f32 %v2786, %v2998
          %v3127 = vadd.f32 %v2788, %v2999
          %v3128 = vadd.f32 %v2790, %v3000
          %v3129 = vadd.f32 %v2792, %v3001
          %v3130 = vadd.f32 %v2794, %v3002
          %v3131 = vadd.f32 %v2796, %v3003
          %v3132 = vadd.f32 %v2798, %v3004
          %v3133 = vadd.f32 %v2800, %v3005
          %v3134 = vadd.f32 %v2802, %v3006
          %v3135 = vadd.f32 %v2804, %v3007
          %v3136 = vadd.f32 %v2806, %v3008
          %v3137 = vadd.f32 %v2808, %v3009
          %v3138 = vadd.f32 %v2810, %v3010
          %v3139 = vadd.f32 %v2812, %v3011
          %v3140 = vadd.f32 %v2814, %v3012
          %v3141 = vadd.f32 %v2816, %v3013
          %v3142 = vadd.f32 %v2818, %v3014
          %v3143 = vadd.f32 %v2820, %v3015
          %v3144 = vadd.f32 %v2822, %v3016
          %v3145 = vadd.f32 %v2824, %v3017
          %v3146 = vadd.f32 %v2826, %v3018
          %v3147 = vadd.f32 %v2828, %v3019
          %v3148 = vadd.f32 %v2830, %v3020
          %v3149 = vadd.f32 %v2832, %v3021
          %v3150 = vadd.f32 %v2834, %v3022
          %v3151 = vadd.f32 %v2836, %v3023
          %v3152 = vadd.f32 %v2838, %v3024
          %v3153 = vadd.f32 %v2840, %v3025
          %v3154 = vadd.f32 %v2842, %v3026
          %v3155 = vadd.f32 %v2844, %v3027
          %v3156 = vadd.f32 %v2846, %v3028
          %v3157 = vadd.f32 %v2848, %v3029
          %v3158 = vadd.f32 %v2850, %v3030
          %v3159 = vadd.f32 %v2852, %v3031
          %v3160 = vadd.f32 %v2854, %v3032
          %v3161 = vadd.f32 %v2856, %v3033
          %v3162 = vadd.f32 %v2858, %v3034
          %v3163 = vadd.f32 %v2860, %v3035
          %v3164 = vadd.f32 %v2862, %v3036
          %v3165 = vadd.f32 %v2864, %v3037
          %v3166 = vadd.f32 %v2866, %v3038
          %v3167 = vadd.f32 %v2868, %v3039
          %v3168 = vadd.f32 %v2870, %v3040
          %v3169 = vadd.f32 %v2872, %v3041
          %v3170 = vadd.f32 %v2874, %v3042
          %v3171 = vadd.f32 %v2876, %v3043
          %v3172 = vadd.f32 %v2878, %v3044
          %v3173 = vadd.f32 %v2880, %v3045
          %v3174 = vadd.f32 %v2882, %v3046
          %v3175 = vadd.f32 %v2884, %v3047
          %v3176 = vadd.f32 %v2886, %v3048
          %v3177 = vadd.f32 %v2888, %v3049
          %v3178 = vadd.f32 %v2890, %v3050
          %v3179 = vadd.f32 %v2892, %v3051
          %v3180 = vadd.f32 %v2894, %v3052
          %v3181 = vadd.f32 %v2896, %v3053
          %v3182 = vadd.f32 %v2898, %v3054
          %v3183 = vadd.f32 %v2900, %v3055
          %v3184 = vadd.f32 %v2902, %v3056
          %v3185 = vadd.f32 %v2904, %v3057
          %v3186 = vadd.f32 %v2906, %v3058
          %v3187 = vadd.f32 %v2908, %v3059
          %v3188 = vadd.f32 %v2910, %v3060
          %v3189 = vadd.f32 %v2912, %v3061
          %v3190 = vadd.f32 %v2914, %v3062
          %v3191 = vadd.f32 %v2916, %v3063
          %v3192 = vadd.f32 %v2918, %v3064
          %v3193 = vadd.f32 %v2920, %v3065
          %v3194 = vadd.f32 %v2922, %v3066
          %v3195 = vadd.f32 %v2924, %v3067
          %v3196 = vadd.f32 %v2926, %v3068
          %v3197 = vadd.f32 %v2928, %v3069
          %v3198 = vadd.f32 %v2930, %v3070
          %v3199 = vadd.f32 %v2932, %v3071
          %v3200 = vadd.f32 %v2934, %v3072
          %v3201 = vadd.f32 %v2936, %v3073
          %v3202 = vadd.f32 %v2938, %v3074
          %v3203 = vadd.f32 %v2940, %v3075
          %v3204 = vadd.f32 %v2942, %v3076
          %v3205 = vadd.f32 %v2944, %v3077
          %v3206 = vadd.f32 %v2946, %v3078
          %v3207 = vadd.f32 %v2948, %v3079
          %v3208 = vadd.f32 %v2950, %v3080
          %v3209 = vadd.f32 %v2952, %v3081
          %v3210 = vadd.f32 %v2954, %v3082
          %vm3211 = vcmp.gt.f32.partialorder %v3083, 0.0
          %vm3212 = vcmp.gt.f32.partialorder %v3084, 0.0
          %vm3213 = vcmp.gt.f32.partialorder %v3085, 0.0
          %vm3214 = vcmp.gt.f32.partialorder %v3086, 0.0
          %vm3215 = vcmp.gt.f32.partialorder %v3087, 0.0
          %vm3216 = vcmp.gt.f32.partialorder %v3088, 0.0
          %vm3217 = vcmp.gt.f32.partialorder %v3089, 0.0
          %vm3218 = vcmp.gt.f32.partialorder %v3090, 0.0
          %vm3219 = vcmp.gt.f32.partialorder %v3091, 0.0
          %vm3220 = vcmp.gt.f32.partialorder %v3092, 0.0
          %vm3221 = vcmp.gt.f32.partialorder %v3093, 0.0
          %vm3222 = vcmp.gt.f32.partialorder %v3094, 0.0
          %vm3223 = vcmp.gt.f32.partialorder %v3095, 0.0
          %vm3224 = vcmp.gt.f32.partialorder %v3096, 0.0
          %vm3225 = vcmp.gt.f32.partialorder %v3097, 0.0
          %vm3226 = vcmp.gt.f32.partialorder %v3098, 0.0
          %vm3227 = vcmp.gt.f32.partialorder %v3099, 0.0
          %vm3228 = vcmp.gt.f32.partialorder %v3100, 0.0
          %vm3229 = vcmp.gt.f32.partialorder %v3101, 0.0
          %vm3230 = vcmp.gt.f32.partialorder %v3102, 0.0
          %vm3231 = vcmp.gt.f32.partialorder %v3103, 0.0
          %vm3232 = vcmp.gt.f32.partialorder %v3104, 0.0
          %vm3233 = vcmp.gt.f32.partialorder %v3105, 0.0
          %vm3234 = vcmp.gt.f32.partialorder %v3106, 0.0
          %vm3235 = vcmp.gt.f32.partialorder %v3107, 0.0
          %vm3236 = vcmp.gt.f32.partialorder %v3108, 0.0
          %vm3237 = vcmp.gt.f32.partialorder %v3109, 0.0
          %vm3238 = vcmp.gt.f32.partialorder %v3110, 0.0
          %vm3239 = vcmp.gt.f32.partialorder %v3111, 0.0
          %vm3240 = vcmp.gt.f32.partialorder %v3112, 0.0
          %vm3241 = vcmp.gt.f32.partialorder %v3113, 0.0
          %vm3242 = vcmp.gt.f32.partialorder %v3114, 0.0
          %vm3243 = vcmp.gt.f32.partialorder %v3115, 0.0
          %vm3244 = vcmp.gt.f32.partialorder %v3116, 0.0
          %vm3245 = vcmp.gt.f32.partialorder %v3117, 0.0
          %vm3246 = vcmp.gt.f32.partialorder %v3118, 0.0
          %vm3247 = vcmp.gt.f32.partialorder %v3119, 0.0
          %vm3248 = vcmp.gt.f32.partialorder %v3120, 0.0
          %vm3249 = vcmp.gt.f32.partialorder %v3121, 0.0
          %vm3250 = vcmp.gt.f32.partialorder %v3122, 0.0
          %vm3251 = vcmp.gt.f32.partialorder %v3123, 0.0
          %vm3252 = vcmp.gt.f32.partialorder %v3124, 0.0
          %vm3253 = vcmp.gt.f32.partialorder %v3125, 0.0
          %vm3254 = vcmp.gt.f32.partialorder %v3126, 0.0
          %vm3255 = vcmp.gt.f32.partialorder %v3127, 0.0
          %vm3256 = vcmp.gt.f32.partialorder %v3128, 0.0
          %vm3257 = vcmp.gt.f32.partialorder %v3129, 0.0
          %vm3258 = vcmp.gt.f32.partialorder %v3130, 0.0
          %vm3259 = vcmp.gt.f32.partialorder %v3131, 0.0
          %vm3260 = vcmp.gt.f32.partialorder %v3132, 0.0
          %vm3261 = vcmp.gt.f32.partialorder %v3133, 0.0
          %vm3262 = vcmp.gt.f32.partialorder %v3134, 0.0
          %vm3263 = vcmp.gt.f32.partialorder %v3135, 0.0
          %vm3264 = vcmp.gt.f32.partialorder %v3136, 0.0
          %vm3265 = vcmp.gt.f32.partialorder %v3137, 0.0
          %vm3266 = vcmp.gt.f32.partialorder %v3138, 0.0
          %vm3267 = vcmp.gt.f32.partialorder %v3139, 0.0
          %vm3268 = vcmp.gt.f32.partialorder %v3140, 0.0
          %vm3269 = vcmp.gt.f32.partialorder %v3141, 0.0
          %vm3270 = vcmp.gt.f32.partialorder %v3142, 0.0
          %vm3271 = vcmp.gt.f32.partialorder %v3143, 0.0
          %vm3272 = vcmp.gt.f32.partialorder %v3144, 0.0
          %vm3273 = vcmp.gt.f32.partialorder %v3145, 0.0
          %vm3274 = vcmp.gt.f32.partialorder %v3146, 0.0
          %vm3275 = vcmp.gt.f32.partialorder %v3147, 0.0
          %vm3276 = vcmp.gt.f32.partialorder %v3148, 0.0
          %vm3277 = vcmp.gt.f32.partialorder %v3149, 0.0
          %vm3278 = vcmp.gt.f32.partialorder %v3150, 0.0
          %vm3279 = vcmp.gt.f32.partialorder %v3151, 0.0
          %vm3280 = vcmp.gt.f32.partialorder %v3152, 0.0
          %vm3281 = vcmp.gt.f32.partialorder %v3153, 0.0
          %vm3282 = vcmp.gt.f32.partialorder %v3154, 0.0
          %vm3283 = vcmp.gt.f32.partialorder %v3155, 0.0
          %vm3284 = vcmp.gt.f32.partialorder %v3156, 0.0
          %vm3285 = vcmp.gt.f32.partialorder %v3157, 0.0
          %vm3286 = vcmp.gt.f32.partialorder %v3158, 0.0
          %vm3287 = vcmp.gt.f32.partialorder %v3159, 0.0
          %vm3288 = vcmp.gt.f32.partialorder %v3160, 0.0
          %vm3289 = vcmp.gt.f32.partialorder %v3161, 0.0
          %vm3290 = vcmp.gt.f32.partialorder %v3162, 0.0
          %vm3291 = vcmp.gt.f32.partialorder %v3163, 0.0
          %vm3292 = vcmp.gt.f32.partialorder %v3164, 0.0
          %vm3293 = vcmp.gt.f32.partialorder %v3165, 0.0
          %vm3294 = vcmp.gt.f32.partialorder %v3166, 0.0
          %vm3295 = vcmp.gt.f32.partialorder %v3167, 0.0
          %vm3296 = vcmp.gt.f32.partialorder %v3168, 0.0
          %vm3297 = vcmp.gt.f32.partialorder %v3169, 0.0
          %vm3298 = vcmp.gt.f32.partialorder %v3170, 0.0
          %vm3299 = vcmp.gt.f32.partialorder %v3171, 0.0
          %vm3300 = vcmp.gt.f32.partialorder %v3172, 0.0
          %vm3301 = vcmp.gt.f32.partialorder %v3173, 0.0
          %vm3302 = vcmp.gt.f32.partialorder %v3174, 0.0
          %vm3303 = vcmp.gt.f32.partialorder %v3175, 0.0
          %vm3304 = vcmp.gt.f32.partialorder %v3176, 0.0
          %vm3305 = vcmp.gt.f32.partialorder %v3177, 0.0
          %vm3306 = vcmp.gt.f32.partialorder %v3178, 0.0
          %vm3307 = vcmp.gt.f32.partialorder %v3179, 0.0
          %vm3308 = vcmp.gt.f32.partialorder %v3180, 0.0
          %vm3309 = vcmp.gt.f32.partialorder %v3181, 0.0
          %vm3310 = vcmp.gt.f32.partialorder %v3182, 0.0
          %vm3311 = vcmp.gt.f32.partialorder %v3183, 0.0
          %vm3312 = vcmp.gt.f32.partialorder %v3184, 0.0
          %vm3313 = vcmp.gt.f32.partialorder %v3185, 0.0
          %vm3314 = vcmp.gt.f32.partialorder %v3186, 0.0
          %vm3315 = vcmp.gt.f32.partialorder %v3187, 0.0
          %vm3316 = vcmp.gt.f32.partialorder %v3188, 0.0
          %vm3317 = vcmp.gt.f32.partialorder %v3189, 0.0
          %vm3318 = vcmp.gt.f32.partialorder %v3190, 0.0
          %vm3319 = vcmp.gt.f32.partialorder %v3191, 0.0
          %vm3320 = vcmp.gt.f32.partialorder %v3192, 0.0
          %vm3321 = vcmp.gt.f32.partialorder %v3193, 0.0
          %vm3322 = vcmp.gt.f32.partialorder %v3194, 0.0
          %vm3323 = vcmp.gt.f32.partialorder %v3195, 0.0
          %vm3324 = vcmp.gt.f32.partialorder %v3196, 0.0
          %vm3325 = vcmp.gt.f32.partialorder %v3197, 0.0
          %vm3326 = vcmp.gt.f32.partialorder %v3198, 0.0
          %vm3327 = vcmp.gt.f32.partialorder %v3199, 0.0
          %vm3328 = vcmp.gt.f32.partialorder %v3200, 0.0
          %vm3329 = vcmp.gt.f32.partialorder %v3201, 0.0
          %vm3330 = vcmp.gt.f32.partialorder %v3202, 0.0
          %vm3331 = vcmp.gt.f32.partialorder %v3203, 0.0
          %vm3332 = vcmp.gt.f32.partialorder %v3204, 0.0
          %vm3333 = vcmp.gt.f32.partialorder %v3205, 0.0
          %vm3334 = vcmp.gt.f32.partialorder %v3206, 0.0
          %vm3335 = vcmp.gt.f32.partialorder %v3207, 0.0
          %vm3336 = vcmp.gt.f32.partialorder %v3208, 0.0
          %vm3337 = vcmp.gt.f32.partialorder %v3209, 0.0
          %vm3338 = vcmp.gt.f32.partialorder %v3210, 0.0
          %v3339 = vmul.f32 %v3083, 0.2
          %v3340 = vmul.f32 %v3084, 0.2
          %v3341 = vmul.f32 %v3085, 0.2
          %v3342 = vmul.f32 %v3086, 0.2
          %v3343 = vmul.f32 %v3087, 0.2
          %v3344 = vmul.f32 %v3088, 0.2
          %v3345 = vmul.f32 %v3089, 0.2
          %v3346 = vmul.f32 %v3090, 0.2
          %v3347 = vmul.f32 %v3091, 0.2
          %v3348 = vmul.f32 %v3092, 0.2
          %v3349 = vmul.f32 %v3093, 0.2
          %v3350 = vmul.f32 %v3094, 0.2
          %v3351 = vmul.f32 %v3095, 0.2
          %v3352 = vmul.f32 %v3096, 0.2
          %v3353 = vmul.f32 %v3097, 0.2
          %v3354 = vmul.f32 %v3098, 0.2
          %v3355 = vmul.f32 %v3099, 0.2
          %v3356 = vmul.f32 %v3100, 0.2
          %v3357 = vmul.f32 %v3101, 0.2
          %v3358 = vmul.f32 %v3102, 0.2
          %v3359 = vmul.f32 %v3103, 0.2
          %v3360 = vmul.f32 %v3104, 0.2
          %v3361 = vmul.f32 %v3105, 0.2
          %v3362 = vmul.f32 %v3106, 0.2
          %v3363 = vmul.f32 %v3107, 0.2
          %v3364 = vmul.f32 %v3108, 0.2
          %v3365 = vmul.f32 %v3109, 0.2
          %v3366 = vmul.f32 %v3110, 0.2
          %v3367 = vmul.f32 %v3111, 0.2
          %v3368 = vmul.f32 %v3112, 0.2
          %v3369 = vmul.f32 %v3113, 0.2
          %v3370 = vmul.f32 %v3114, 0.2
          %v3371 = vmul.f32 %v3115, 0.2
          %v3372 = vmul.f32 %v3116, 0.2
          %v3373 = vmul.f32 %v3117, 0.2
          %v3374 = vmul.f32 %v3118, 0.2
          %v3375 = vmul.f32 %v3119, 0.2
          %v3376 = vmul.f32 %v3120, 0.2
          %v3377 = vmul.f32 %v3121, 0.2
          %v3378 = vmul.f32 %v3122, 0.2
          %v3379 = vmul.f32 %v3123, 0.2
          %v3380 = vmul.f32 %v3124, 0.2
          %v3381 = vmul.f32 %v3125, 0.2
          %v3382 = vmul.f32 %v3126, 0.2
          %v3383 = vmul.f32 %v3127, 0.2
          %v3384 = vmul.f32 %v3128, 0.2
          %v3385 = vmul.f32 %v3129, 0.2
          %v3386 = vmul.f32 %v3130, 0.2
          %v3387 = vmul.f32 %v3131, 0.2
          %v3388 = vmul.f32 %v3132, 0.2
          %v3389 = vmul.f32 %v3133, 0.2
          %v3390 = vmul.f32 %v3134, 0.2
          %v3391 = vmul.f32 %v3135, 0.2
          %v3392 = vmul.f32 %v3136, 0.2
          %v3393 = vmul.f32 %v3137, 0.2
          %v3394 = vmul.f32 %v3138, 0.2
          %v3395 = vmul.f32 %v3139, 0.2
          %v3396 = vmul.f32 %v3140, 0.2
          %v3397 = vmul.f32 %v3141, 0.2
          %v3398 = vmul.f32 %v3142, 0.2
          %v3399 = vmul.f32 %v3143, 0.2
          %v3400 = vmul.f32 %v3144, 0.2
          %v3401 = vmul.f32 %v3145, 0.2
          %v3402 = vmul.f32 %v3146, 0.2
          %v3403 = vmul.f32 %v3147, 0.2
          %v3404 = vmul.f32 %v3148, 0.2
          %v3405 = vmul.f32 %v3149, 0.2
          %v3406 = vmul.f32 %v3150, 0.2
          %v3407 = vmul.f32 %v3151, 0.2
          %v3408 = vmul.f32 %v3152, 0.2
          %v3409 = vmul.f32 %v3153, 0.2
          %v3410 = vmul.f32 %v3154, 0.2
          %v3411 = vmul.f32 %v3155, 0.2
          %v3412 = vmul.f32 %v3156, 0.2
          %v3413 = vmul.f32 %v3157, 0.2
          %v3414 = vmul.f32 %v3158, 0.2
          %v3415 = vmul.f32 %v3159, 0.2
          %v3416 = vmul.f32 %v3160, 0.2
          %v3417 = vmul.f32 %v3161, 0.2
          %v3418 = vmul.f32 %v3162, 0.2
          %v3419 = vmul.f32 %v3163, 0.2
          %v3420 = vmul.f32 %v3164, 0.2
          %v3421 = vmul.f32 %v3165, 0.2
          %v3422 = vmul.f32 %v3166, 0.2
          %v3423 = vmul.f32 %v3167, 0.2
          %v3424 = vmul.f32 %v3168, 0.2
          %v3425 = vmul.f32 %v3169, 0.2
          %v3426 = vmul.f32 %v3170, 0.2
          %v3427 = vmul.f32 %v3171, 0.2
          %v3428 = vmul.f32 %v3172, 0.2
          %v3429 = vmul.f32 %v3173, 0.2
          %v3430 = vmul.f32 %v3174, 0.2
          %v3431 = vmul.f32 %v3175, 0.2
          %v3432 = vmul.f32 %v3176, 0.2
          %v3433 = vmul.f32 %v3177, 0.2
          %v3434 = vmul.f32 %v3178, 0.2
          %v3435 = vmul.f32 %v3179, 0.2
          %v3436 = vmul.f32 %v3180, 0.2
          %v3437 = vmul.f32 %v3181, 0.2
          %v3438 = vmul.f32 %v3182, 0.2
          %v3439 = vmul.f32 %v3183, 0.2
          %v3440 = vmul.f32 %v3184, 0.2
          %v3441 = vmul.f32 %v3185, 0.2
          %v3442 = vmul.f32 %v3186, 0.2
          %v3443 = vmul.f32 %v3187, 0.2
          %v3444 = vmul.f32 %v3188, 0.2
          %v3445 = vmul.f32 %v3189, 0.2
          %v3446 = vmul.f32 %v3190, 0.2
          %v3447 = vmul.f32 %v3191, 0.2
          %v3448 = vmul.f32 %v3192, 0.2
          %v3449 = vmul.f32 %v3193, 0.2
          %v3450 = vmul.f32 %v3194, 0.2
          %v3451 = vmul.f32 %v3195, 0.2
          %v3452 = vmul.f32 %v3196, 0.2
          %v3453 = vmul.f32 %v3197, 0.2
          %v3454 = vmul.f32 %v3198, 0.2
          %v3455 = vmul.f32 %v3199, 0.2
          %v3456 = vmul.f32 %v3200, 0.2
          %v3457 = vmul.f32 %v3201, 0.2
          %v3458 = vmul.f32 %v3202, 0.2
          %v3459 = vmul.f32 %v3203, 0.2
          %v3460 = vmul.f32 %v3204, 0.2
          %v3461 = vmul.f32 %v3205, 0.2
          %v3462 = vmul.f32 %v3206, 0.2
          %v3463 = vmul.f32 %v3207, 0.2
          %v3464 = vmul.f32 %v3208, 0.2
          %v3465 = vmul.f32 %v3209, 0.2
          %v3466 = vmul.f32 %v3210, 0.2
          %v3467 = vsel %vm3211, %v3083, %v3339
          %v3468 = vsel %vm3212, %v3084, %v3340
          %v3469 = vsel %vm3213, %v3085, %v3341
          %v3470 = vsel %vm3214, %v3086, %v3342
          %v3471 = vsel %vm3215, %v3087, %v3343
          %v3472 = vsel %vm3216, %v3088, %v3344
          %v3473 = vsel %vm3217, %v3089, %v3345
          %v3474 = vsel %vm3218, %v3090, %v3346
          %v3475 = vsel %vm3219, %v3091, %v3347
          %v3476 = vsel %vm3220, %v3092, %v3348
          %v3477 = vsel %vm3221, %v3093, %v3349
          %v3478 = vsel %vm3222, %v3094, %v3350
          %v3479 = vsel %vm3223, %v3095, %v3351
          %v3480 = vsel %vm3224, %v3096, %v3352
          %v3481 = vsel %vm3225, %v3097, %v3353
          %v3482 = vsel %vm3226, %v3098, %v3354
          %v3483 = vsel %vm3227, %v3099, %v3355
          %v3484 = vsel %vm3228, %v3100, %v3356
          %v3485 = vsel %vm3229, %v3101, %v3357
          %v3486 = vsel %vm3230, %v3102, %v3358
          %v3487 = vsel %vm3231, %v3103, %v3359
          %v3488 = vsel %vm3232, %v3104, %v3360
          %v3489 = vsel %vm3233, %v3105, %v3361
          %v3490 = vsel %vm3234, %v3106, %v3362
          %v3491 = vsel %vm3235, %v3107, %v3363
          %v3492 = vsel %vm3236, %v3108, %v3364
          %v3493 = vsel %vm3237, %v3109, %v3365
          %v3494 = vsel %vm3238, %v3110, %v3366
          %v3495 = vsel %vm3239, %v3111, %v3367
          %v3496 = vsel %vm3240, %v3112, %v3368
          %v3497 = vsel %vm3241, %v3113, %v3369
          %v3498 = vsel %vm3242, %v3114, %v3370
          %v3499 = vsel %vm3243, %v3115, %v3371
          %v3500 = vsel %vm3244, %v3116, %v3372
          %v3501 = vsel %vm3245, %v3117, %v3373
          %v3502 = vsel %vm3246, %v3118, %v3374
          %v3503 = vsel %vm3247, %v3119, %v3375
          %v3504 = vsel %vm3248, %v3120, %v3376
          %v3505 = vsel %vm3249, %v3121, %v3377
          %v3506 = vsel %vm3250, %v3122, %v3378
          %v3507 = vsel %vm3251, %v3123, %v3379
          %v3508 = vsel %vm3252, %v3124, %v3380
          %v3509 = vsel %vm3253, %v3125, %v3381
          %v3510 = vsel %vm3254, %v3126, %v3382
          %v3511 = vsel %vm3255, %v3127, %v3383
          %v3512 = vsel %vm3256, %v3128, %v3384
          %v3513 = vsel %vm3257, %v3129, %v3385
          %v3514 = vsel %vm3258, %v3130, %v3386
          %v3515 = vsel %vm3259, %v3131, %v3387
          %v3516 = vsel %vm3260, %v3132, %v3388
          %v3517 = vsel %vm3261, %v3133, %v3389
          %v3518 = vsel %vm3262, %v3134, %v3390
          %v3519 = vsel %vm3263, %v3135, %v3391
          %v3520 = vsel %vm3264, %v3136, %v3392
          %v3521 = vsel %vm3265, %v3137, %v3393
          %v3522 = vsel %vm3266, %v3138, %v3394
          %v3523 = vsel %vm3267, %v3139, %v3395
          %v3524 = vsel %vm3268, %v3140, %v3396
          %v3525 = vsel %vm3269, %v3141, %v3397
          %v3526 = vsel %vm3270, %v3142, %v3398
          %v3527 = vsel %vm3271, %v3143, %v3399
          %v3528 = vsel %vm3272, %v3144, %v3400
          %v3529 = vsel %vm3273, %v3145, %v3401
          %v3530 = vsel %vm3274, %v3146, %v3402
          %v3531 = vsel %vm3275, %v3147, %v3403
          %v3532 = vsel %vm3276, %v3148, %v3404
          %v3533 = vsel %vm3277, %v3149, %v3405
          %v3534 = vsel %vm3278, %v3150, %v3406
          %v3535 = vsel %vm3279, %v3151, %v3407
          %v3536 = vsel %vm3280, %v3152, %v3408
          %v3537 = vsel %vm3281, %v3153, %v3409
          %v3538 = vsel %vm3282, %v3154, %v3410
          %v3539 = vsel %vm3283, %v3155, %v3411
          %v3540 = vsel %vm3284, %v3156, %v3412
          %v3541 = vsel %vm3285, %v3157, %v3413
          %v3542 = vsel %vm3286, %v3158, %v3414
          %v3543 = vsel %vm3287, %v3159, %v3415
          %v3544 = vsel %vm3288, %v3160, %v3416
          %v3545 = vsel %vm3289, %v3161, %v3417
          %v3546 = vsel %vm3290, %v3162, %v3418
          %v3547 = vsel %vm3291, %v3163, %v3419
          %v3548 = vsel %vm3292, %v3164, %v3420
          %v3549 = vsel %vm3293, %v3165, %v3421
          %v3550 = vsel %vm3294, %v3166, %v3422
          %v3551 = vsel %vm3295, %v3167, %v3423
          %v3552 = vsel %vm3296, %v3168, %v3424
          %v3553 = vsel %vm3297, %v3169, %v3425
          %v3554 = vsel %vm3298, %v3170, %v3426
          %v3555 = vsel %vm3299, %v3171, %v3427
          %v3556 = vsel %vm3300, %v3172, %v3428
          %v3557 = vsel %vm3301, %v3173, %v3429
          %v3558 = vsel %vm3302, %v3174, %v3430
          %v3559 = vsel %vm3303, %v3175, %v3431
          %v3560 = vsel %vm3304, %v3176, %v3432
          %v3561 = vsel %vm3305, %v3177, %v3433
          %v3562 = vsel %vm3306, %v3178, %v3434
          %v3563 = vsel %vm3307, %v3179, %v3435
          %v3564 = vsel %vm3308, %v3180, %v3436
          %v3565 = vsel %vm3309, %v3181, %v3437
          %v3566 = vsel %vm3310, %v3182, %v3438
          %v3567 = vsel %vm3311, %v3183, %v3439
          %v3568 = vsel %vm3312, %v3184, %v3440
          %v3569 = vsel %vm3313, %v3185, %v3441
          %v3570 = vsel %vm3314, %v3186, %v3442
          %v3571 = vsel %vm3315, %v3187, %v3443
          %v3572 = vsel %vm3316, %v3188, %v3444
          %v3573 = vsel %vm3317, %v3189, %v3445
          %v3574 = vsel %vm3318, %v3190, %v3446
          %v3575 = vsel %vm3319, %v3191, %v3447
          %v3576 = vsel %vm3320, %v3192, %v3448
          %v3577 = vsel %vm3321, %v3193, %v3449
          %v3578 = vsel %vm3322, %v3194, %v3450
          %v3579 = vsel %vm3323, %v3195, %v3451
          %v3580 = vsel %vm3324, %v3196, %v3452
          %v3581 = vsel %vm3325, %v3197, %v3453
          %v3582 = vsel %vm3326, %v3198, %v3454
          %v3583 = vsel %vm3327, %v3199, %v3455
          %v3584 = vsel %vm3328, %v3200, %v3456
          %v3585 = vsel %vm3329, %v3201, %v3457
          %v3586 = vsel %vm3330, %v3202, %v3458
          %v3587 = vsel %vm3331, %v3203, %v3459
          %v3588 = vsel %vm3332, %v3204, %v3460
          %v3589 = vsel %vm3333, %v3205, %v3461
          %v3590 = vsel %vm3334, %v3206, %v3462
          %v3591 = vsel %vm3335, %v3207, %v3463
          %v3592 = vsel %vm3336, %v3208, %v3464
          %v3593 = vsel %vm3337, %v3209, %v3465
          %v3594 = vsel %vm3338, %v3210, %v3466
          %vm3595 = vcmask 7168
          %3596 = vst.msk [vmem:[%s224] sm:$0xff] %vm3595, %v3467
          %3597 = vst.msk [vmem:[%s224 + $0x8] sm:$0xff] %vm3595, %v3468
          %3598 = vst.msk [vmem:[%s224 + $0x10] sm:$0xff] %vm3595, %v3469
          %3599 = vst.msk [vmem:[%s224 + $0x18] sm:$0xff] %vm3595, %v3470
          %3600 = vst.msk [vmem:[%s224 + $0x20] sm:$0xff] %vm3595, %v3471
          %3601 = vst.msk [vmem:[%s224 + $0x28] sm:$0xff] %vm3595, %v3472
          %3602 = vst.msk [vmem:[%s224 + $0x30] sm:$0xff] %vm3595, %v3473
          %3603 = vst.msk [vmem:[%s224 + $0x38] sm:$0xff] %vm3595, %v3474
          %3604 = vst.msk [vmem:[%s224 + $0x40] sm:$0xff] %vm3595, %v3475
          %3605 = vst.msk [vmem:[%s224 + $0x48] sm:$0xff] %vm3595, %v3476
          %3606 = vst.msk [vmem:[%s224 + $0x50] sm:$0xff] %vm3595, %v3477
          %3607 = vst.msk [vmem:[%s224 + $0x58] sm:$0xff] %vm3595, %v3478
          %3608 = vst.msk [vmem:[%s224 + $0x60] sm:$0xff] %vm3595, %v3479
          %3609 = vst.msk [vmem:[%s224 + $0x68] sm:$0xff] %vm3595, %v3480
          %3610 = vst.msk [vmem:[%s224 + $0x70] sm:$0xff] %vm3595, %v3481
          %3611 = vst.msk [vmem:[%s224 + $0x78] sm:$0xff] %vm3595, %v3482
          %3612 = vst.msk [vmem:[%s224 + $0x80] sm:$0xff] %vm3595, %v3483
          %3613 = vst.msk [vmem:[%s224 + $0x88] sm:$0xff] %vm3595, %v3484
          %3614 = vst.msk [vmem:[%s224 + $0x90] sm:$0xff] %vm3595, %v3485
          %3615 = vst.msk [vmem:[%s224 + $0x98] sm:$0xff] %vm3595, %v3486
          %3616 = vst.msk [vmem:[%s224 + $0xa0] sm:$0xff] %vm3595, %v3487
          %3617 = vst.msk [vmem:[%s224 + $0xa8] sm:$0xff] %vm3595, %v3488
          %3618 = vst.msk [vmem:[%s224 + $0xb0] sm:$0xff] %vm3595, %v3489
          %3619 = vst.msk [vmem:[%s224 + $0xb8] sm:$0xff] %vm3595, %v3490
          %3620 = vst.msk [vmem:[%s224 + $0xc0] sm:$0xff] %vm3595, %v3491
          %3621 = vst.msk [vmem:[%s224 + $0xc8] sm:$0xff] %vm3595, %v3492
          %3622 = vst.msk [vmem:[%s224 + $0xd0] sm:$0xff] %vm3595, %v3493
          %3623 = vst.msk [vmem:[%s224 + $0xd8] sm:$0xff] %vm3595, %v3494
          %3624 = vst.msk [vmem:[%s224 + $0xe0] sm:$0xff] %vm3595, %v3495
          %3625 = vst.msk [vmem:[%s224 + $0xe8] sm:$0xff] %vm3595, %v3496
          %3626 = vst.msk [vmem:[%s224 + $0xf0] sm:$0xff] %vm3595, %v3497
          %3627 = vst.msk [vmem:[%s224 + $0xf8] sm:$0xff] %vm3595, %v3498
          %3628 = vst.msk [vmem:[%s224 + $0x100] sm:$0xff] %vm3595, %v3499
          %3629 = vst.msk [vmem:[%s224 + $0x108] sm:$0xff] %vm3595, %v3500
          %3630 = vst.msk [vmem:[%s224 + $0x110] sm:$0xff] %vm3595, %v3501
          %3631 = vst.msk [vmem:[%s224 + $0x118] sm:$0xff] %vm3595, %v3502
          %3632 = vst.msk [vmem:[%s224 + $0x120] sm:$0xff] %vm3595, %v3503
          %3633 = vst.msk [vmem:[%s224 + $0x128] sm:$0xff] %vm3595, %v3504
          %3634 = vst.msk [vmem:[%s224 + $0x130] sm:$0xff] %vm3595, %v3505
          %3635 = vst.msk [vmem:[%s224 + $0x138] sm:$0xff] %vm3595, %v3506
          %3636 = vst.msk [vmem:[%s224 + $0x140] sm:$0xff] %vm3595, %v3507
          %3637 = vst.msk [vmem:[%s224 + $0x148] sm:$0xff] %vm3595, %v3508
          %3638 = vst.msk [vmem:[%s224 + $0x150] sm:$0xff] %vm3595, %v3509
          %3639 = vst.msk [vmem:[%s224 + $0x158] sm:$0xff] %vm3595, %v3510
          %3640 = vst.msk [vmem:[%s224 + $0x160] sm:$0xff] %vm3595, %v3511
          %3641 = vst.msk [vmem:[%s224 + $0x168] sm:$0xff] %vm3595, %v3512
          %3642 = vst.msk [vmem:[%s224 + $0x170] sm:$0xff] %vm3595, %v3513
          %3643 = vst.msk [vmem:[%s224 + $0x178] sm:$0xff] %vm3595, %v3514
          %3644 = vst.msk [vmem:[%s224 + $0x180] sm:$0xff] %vm3595, %v3515
          %3645 = vst.msk [vmem:[%s224 + $0x188] sm:$0xff] %vm3595, %v3516
          %3646 = vst.msk [vmem:[%s224 + $0x190] sm:$0xff] %vm3595, %v3517
          %3647 = vst.msk [vmem:[%s224 + $0x198] sm:$0xff] %vm3595, %v3518
          %3648 = vst.msk [vmem:[%s224 + $0x1a0] sm:$0xff] %vm3595, %v3519
          %3649 = vst.msk [vmem:[%s224 + $0x1a8] sm:$0xff] %vm3595, %v3520
          %3650 = vst.msk [vmem:[%s224 + $0x1b0] sm:$0xff] %vm3595, %v3521
          %3651 = vst.msk [vmem:[%s224 + $0x1b8] sm:$0xff] %vm3595, %v3522
          %3652 = vst.msk [vmem:[%s224 + $0x1c0] sm:$0xff] %vm3595, %v3523
          %3653 = vst.msk [vmem:[%s224 + $0x1c8] sm:$0xff] %vm3595, %v3524
          %3654 = vst.msk [vmem:[%s224 + $0x1d0] sm:$0xff] %vm3595, %v3525
          %3655 = vst.msk [vmem:[%s224 + $0x1d8] sm:$0xff] %vm3595, %v3526
          %3656 = vst.msk [vmem:[%s224 + $0x1e0] sm:$0xff] %vm3595, %v3527
          %3657 = vst.msk [vmem:[%s224 + $0x1e8] sm:$0xff] %vm3595, %v3528
          %3658 = vst.msk [vmem:[%s224 + $0x1f0] sm:$0xff] %vm3595, %v3529
          %3659 = vst.msk [vmem:[%s224 + $0x1f8] sm:$0xff] %vm3595, %v3530
          %3660 = vst.msk [vmem:[%s224 + $0x200] sm:$0xff] %vm3595, %v3531
          %3661 = vst.msk [vmem:[%s224 + $0x208] sm:$0xff] %vm3595, %v3532
          %3662 = vst.msk [vmem:[%s224 + $0x210] sm:$0xff] %vm3595, %v3533
          %3663 = vst.msk [vmem:[%s224 + $0x218] sm:$0xff] %vm3595, %v3534
          %3664 = vst.msk [vmem:[%s224 + $0x220] sm:$0xff] %vm3595, %v3535
          %3665 = vst.msk [vmem:[%s224 + $0x228] sm:$0xff] %vm3595, %v3536
          %3666 = vst.msk [vmem:[%s224 + $0x230] sm:$0xff] %vm3595, %v3537
          %3667 = vst.msk [vmem:[%s224 + $0x238] sm:$0xff] %vm3595, %v3538
          %3668 = vst.msk [vmem:[%s224 + $0x240] sm:$0xff] %vm3595, %v3539
          %3669 = vst.msk [vmem:[%s224 + $0x248] sm:$0xff] %vm3595, %v3540
          %3670 = vst.msk [vmem:[%s224 + $0x250] sm:$0xff] %vm3595, %v3541
          %3671 = vst.msk [vmem:[%s224 + $0x258] sm:$0xff] %vm3595, %v3542
          %3672 = vst.msk [vmem:[%s224 + $0x260] sm:$0xff] %vm3595, %v3543
          %3673 = vst.msk [vmem:[%s224 + $0x268] sm:$0xff] %vm3595, %v3544
          %3674 = vst.msk [vmem:[%s224 + $0x270] sm:$0xff] %vm3595, %v3545
          %3675 = vst.msk [vmem:[%s224 + $0x278] sm:$0xff] %vm3595, %v3546
          %3676 = vst.msk [vmem:[%s224 + $0x280] sm:$0xff] %vm3595, %v3547
          %3677 = vst.msk [vmem:[%s224 + $0x288] sm:$0xff] %vm3595, %v3548
          %3678 = vst.msk [vmem:[%s224 + $0x290] sm:$0xff] %vm3595, %v3549
          %3679 = vst.msk [vmem:[%s224 + $0x298] sm:$0xff] %vm3595, %v3550
          %3680 = vst.msk [vmem:[%s224 + $0x2a0] sm:$0xff] %vm3595, %v3551
          %3681 = vst.msk [vmem:[%s224 + $0x2a8] sm:$0xff] %vm3595, %v3552
          %3682 = vst.msk [vmem:[%s224 + $0x2b0] sm:$0xff] %vm3595, %v3553
          %3683 = vst.msk [vmem:[%s224 + $0x2b8] sm:$0xff] %vm3595, %v3554
          %3684 = vst.msk [vmem:[%s224 + $0x2c0] sm:$0xff] %vm3595, %v3555
          %3685 = vst.msk [vmem:[%s224 + $0x2c8] sm:$0xff] %vm3595, %v3556
          %3686 = vst.msk [vmem:[%s224 + $0x2d0] sm:$0xff] %vm3595, %v3557
          %3687 = vst.msk [vmem:[%s224 + $0x2d8] sm:$0xff] %vm3595, %v3558
          %3688 = vst.msk [vmem:[%s224 + $0x2e0] sm:$0xff] %vm3595, %v3559
          %3689 = vst.msk [vmem:[%s224 + $0x2e8] sm:$0xff] %vm3595, %v3560
          %3690 = vst.msk [vmem:[%s224 + $0x2f0] sm:$0xff] %vm3595, %v3561
          %3691 = vst.msk [vmem:[%s224 + $0x2f8] sm:$0xff] %vm3595, %v3562
          %3692 = vst.msk [vmem:[%s224 + $0x300] sm:$0xff] %vm3595, %v3563
          %3693 = vst.msk [vmem:[%s224 + $0x308] sm:$0xff] %vm3595, %v3564
          %3694 = vst.msk [vmem:[%s224 + $0x310] sm:$0xff] %vm3595, %v3565
          %3695 = vst.msk [vmem:[%s224 + $0x318] sm:$0xff] %vm3595, %v3566
          %3696 = vst.msk [vmem:[%s224 + $0x320] sm:$0xff] %vm3595, %v3567
          %3697 = vst.msk [vmem:[%s224 + $0x328] sm:$0xff] %vm3595, %v3568
          %3698 = vst.msk [vmem:[%s224 + $0x330] sm:$0xff] %vm3595, %v3569
          %3699 = vst.msk [vmem:[%s224 + $0x338] sm:$0xff] %vm3595, %v3570
          %3700 = vst.msk [vmem:[%s224 + $0x340] sm:$0xff] %vm3595, %v3571
          %3701 = vst.msk [vmem:[%s224 + $0x348] sm:$0xff] %vm3595, %v3572
          %3702 = vst.msk [vmem:[%s224 + $0x350] sm:$0xff] %vm3595, %v3573
          %3703 = vst.msk [vmem:[%s224 + $0x358] sm:$0xff] %vm3595, %v3574
          %3704 = vst.msk [vmem:[%s224 + $0x360] sm:$0xff] %vm3595, %v3575
          %3705 = vst.msk [vmem:[%s224 + $0x368] sm:$0xff] %vm3595, %v3576
          %3706 = vst.msk [vmem:[%s224 + $0x370] sm:$0xff] %vm3595, %v3577
          %3707 = vst.msk [vmem:[%s224 + $0x378] sm:$0xff] %vm3595, %v3578
          %3708 = vst.msk [vmem:[%s224 + $0x380] sm:$0xff] %vm3595, %v3579
          %3709 = vst.msk [vmem:[%s224 + $0x388] sm:$0xff] %vm3595, %v3580
          %3710 = vst.msk [vmem:[%s224 + $0x390] sm:$0xff] %vm3595, %v3581
          %3711 = vst.msk [vmem:[%s224 + $0x398] sm:$0xff] %vm3595, %v3582
          %3712 = vst.msk [vmem:[%s224 + $0x3a0] sm:$0xff] %vm3595, %v3583
          %3713 = vst.msk [vmem:[%s224 + $0x3a8] sm:$0xff] %vm3595, %v3584
          %3714 = vst.msk [vmem:[%s224 + $0x3b0] sm:$0xff] %vm3595, %v3585
          %3715 = vst.msk [vmem:[%s224 + $0x3b8] sm:$0xff] %vm3595, %v3586
          %3716 = vst.msk [vmem:[%s224 + $0x3c0] sm:$0xff] %vm3595, %v3587
          %3717 = vst.msk [vmem:[%s224 + $0x3c8] sm:$0xff] %vm3595, %v3588
          %3718 = vst.msk [vmem:[%s224 + $0x3d0] sm:$0xff] %vm3595, %v3589
          %3719 = vst.msk [vmem:[%s224 + $0x3d8] sm:$0xff] %vm3595, %v3590
          %3720 = vst.msk [vmem:[%s224 + $0x3e0] sm:$0xff] %vm3595, %v3591
          %3721 = vst.msk [vmem:[%s224 + $0x3e8] sm:$0xff] %vm3595, %v3592
          %3722 = vst.msk [vmem:[%s224 + $0x3f0] sm:$0xff] %vm3595, %v3593
          %3723 = vst.msk [vmem:[%s224 + $0x3f8] sm:$0xff] %vm3595, %v3594
        $region78: #{tpu_custom_call.1} parent=65 // pred_fallthru
          _
        %p3724 = scmp.lt.s32.totalorder %s18, 1
        %s3725 = scalar_select %p3724, %s18, 1
        %s3726 = smul.addr %s3725, 128
        %s3727 = smul.addr %s3726, 8
        %s3728 = scalar_lea.vmem %s3, %s3727
        // Predicated region
        $region79: #{tpu_custom_call.1} parent=65 // pred_check
          %p3729 = pneg %p114
        $region80: #{tpu_custom_call.1} parent=65 // pred_check_branch
          %3731 = sbr.rel (%p3729) target = $region82
        $region81: #{tpu_custom_call.1} parent=65 // pred_region
          _
        $region82: #{tpu_custom_call.1} parent=65 // pred_fallthru
          _
      $region66: #{tpu_custom_call.1} parent=5 // pred_fallthru
        _
      %p3732 = scmp.le.s32.totalorder 2, %s9
      // Predicated region
      $region83: #{tpu_custom_call.1} parent=5 // pred_check
        %p3733 = pneg %p3732
      $region84: #{tpu_custom_call.1} parent=5 // pred_check_branch
        %3735 = sbr.rel (%p3733) target = $region86
      $region85: #{tpu_custom_call.1} parent=5 // pred_region
        %s3736 = ssub.s32 %s9, 2
        // Predicated region
        $region87: #{tpu_custom_call.1} parent=85 // pred_check
          %p3737 = pneg %p120
        $region88: #{tpu_custom_call.1} parent=85 // pred_check_branch
          %3739 = sbr.rel (%p3737) target = $region90
        $region89: #{tpu_custom_call.1} parent=85 // pred_region
          %p3740 = scmp.lt.s32.totalorder %s20, 1
          %s3741 = scalar_select %p3740, %s20, 1
          %s3742 = smul.addr %s3741, 128
          %s3743 = smul.addr %s3742, 8
          %s3744 = scalar_lea.vmem %s3, %s3743
        $region90: #{tpu_custom_call.1} parent=85 // pred_fallthru
          _
      $region86: #{tpu_custom_call.1} parent=5 // pred_fallthru
        _
    $region6: #{tpu_custom_call.1} parent=1 // loop_footer
      %s13 = sadd.s32 1, %s9
    $region7: #{tpu_custom_call.1} parent=1 // loop_footer_branch
      %8 = sbr.rel target = $region3
    $region8: #{tpu_custom_call.1} parent=1 // loop_exit
      _

</llo_original>
